<compile_context>
chip_gen: v5e
topology: v5e:2x2
jax: 0.10.0
libtpu: 0.0.40
codegen_flags: <defaults>
</compile_context>

<pallas_src>
import jax
import jax.numpy as jnp
from jax.experimental import pallas as pl
from jax.experimental.pallas import tpu as pltpu

# ----------------------------- model config ---------------------------------
NUM_CLASSES = 5
MAX_FEATURES = 100
EMBEDDING_DIM = 16
HIDDEN_SIZE = 32
NUM_LAYERS = 3
NUM_DIRECTIONS = 2

BATCH = 2
SEQ_LEN = 8

BATCH_PAD = 8          # pad batch to one f32 sublane tile -> tile-aligned slices
VOCAB_PAD = 128        # pad vocab to one lane tile for the one-hot gather

assert BATCH <= BATCH_PAD
assert MAX_FEATURES <= VOCAB_PAD


# ----------------------------- fused kernel ---------------------------------
def _fused_rnn_kernel(word_ref, emb_proj_ref, wih12_ref, whh_ref, bias_ref,
                      h0_ref, c0_ref, wout_ref, bout_ref,
                      score_ref, hn_ref, cn_ref,
                      onehot_scr):
  """Entire forward pass in one grid-less kernel invocation.

  word_ref:     (B, T)           int32  SMEM  token ids
  emb_proj_ref: (2*VP, 8H)       bf16   folded embedding @ W_ih^T, both dirs
  wih12_ref:    (2, 4H, 8H)      bf16   fused layer-1/2 input weights
  whh_ref:      (3, 2H, 8H)      bf16   fused recurrent weights per layer
  bias_ref:     (3, 1, 8H)       f32    fused (b_ih + b_hh) per layer
  h0/c0_ref:    (6, B, H)        f32    initial states (PyTorch layout)
  wout_ref:     (2H, C) bf16, bout_ref: (1, C) f32
  outputs:      score (B, C), h_n (6, B, H), c_n (6, B, H)
  scratch:      onehot_scr (T*BP, 2*VP) f32  step-indexed doubled one-hot
  """
  H = HIDDEN_SIZE
  B = BATCH
  BP = BATCH_PAD
  T = SEQ_LEN
  VP = VOCAB_PAD
  f32 = jnp.float32
  bf16 = jnp.bfloat16

  # ---- in-kernel embedding gather as a one-hot MXU matmul -------------------
  # row (s*BP + b): lanes [0:VP)   = one_hot(token at time s)      (fwd half)
  #                 lanes [VP:2VP) = one_hot(token at time T-1-s)  (rev half)
  onehot_scr[...] = jnp.zeros((T * BP, 2 * VP), f32)
  lane_ids = jax.lax.broadcasted_iota(jnp.int32, (1, VP), 1)
  for t in range(T):
    for b in range(B):
      tok = word_ref[b, t]                              # SMEM scalar
      row = (lane_ids == tok).astype(f32)               # (1, VP)
      onehot_scr[pl.ds(t * BP + b, 1), pl.ds(0, VP)] = row
      onehot_scr[pl.ds((T - 1 - t) * BP + b, 1), pl.ds(VP, VP)] = row

  # Layer-0 hoisted input projection (+ bias): embedding lookup and W_ih are
  # pre-folded into emb_proj, gate-major fused over both directions.
  xp = jnp.dot(onehot_scr[...].astype(bf16), emb_proj_ref[...],
               preferred_element_type=f32) + bias_ref[0]        # (T*BP, 8H)

  zero_pad = jnp.zeros((BP - B, 2 * H), f32)
  h_steps = []
  hr_at_last_time = None
  h_cat = c_cat = None

  for layer in range(NUM_LAYERS):
    idx_f = 2 * layer
    idx_r = idx_f + 1

    if layer > 0:
      # Previous layer's step-indexed h_cat sequence -> doubled input:
      # lanes [hf(s) | hr(T-1-s) | hf(T-1-s) | hr(s)] per step s (the fused
      # wih12 weight rows are permuted to match this layout).
      a = jnp.concatenate(h_steps, axis=0)                      # (T*BP, 2H)
      a_flip = jnp.concatenate(h_steps[::-1], axis=0)           # step-reversed
      doubled = jnp.concatenate([a, a_flip], axis=1).astype(bf16)  # (T*BP, 4H)
      xp = jnp.dot(doubled, wih12_ref[layer - 1],
                   preferred_element_type=f32) + bias_ref[layer]

    whh = whh_ref[layer]                                        # (2H, 8H) bf16

    # Lane-concatenated, sublane-padded initial state [hf | hr].
    h_cat = jnp.concatenate(
        [jnp.concatenate([h0_ref[idx_f], h0_ref[idx_r]], axis=1), zero_pad],
        axis=0)                                                 # (BP, 2H)
    c_cat = jnp.concatenate(
        [jnp.concatenate([c0_ref[idx_f], c0_ref[idx_r]], axis=1), zero_pad],
        axis=0)

    h_steps = []
    is_last = layer == NUM_LAYERS - 1

    # ---- fully unrolled recurrence, both directions fused per step ---------
    for s in range(T):
      gates = xp[s * BP:(s + 1) * BP, :] + jnp.dot(
          h_cat.astype(bf16), whh, preferred_element_type=f32)  # (BP, 8H)
      sig = jax.nn.sigmoid(gates)      # one EUP pass over the fused gates
      th = jnp.tanh(gates)             # one EUP pass over the fused gates
      i_cat = sig[:, 0 * H:2 * H]      # [i_f | i_r]
      f_cat = sig[:, 2 * H:4 * H]      # [f_f | f_r]
      g_cat = th[:, 4 * H:6 * H]       # [g_f | g_r]
      o_cat = sig[:, 6 * H:8 * H]      # [o_f | o_r]
      c_cat = f_cat * c_cat + i_cat * g_cat
      h_cat = o_cat * jnp.tanh(c_cat)
      if not is_last:
        h_steps.append(h_cat)          # step-indexed: [hf(s) | hr(T-1-s)]
      if is_last and s == 0:
        hr_at_last_time = h_cat[:, H:2 * H]   # reverse output at time T-1

    # Final states of this layer (fwd after time T-1, rev after time 0).
    hn_ref[idx_f] = h_cat[0:B, 0:H]
    hn_ref[idx_r] = h_cat[0:B, H:2 * H]
    cn_ref[idx_f] = c_cat[0:B, 0:H]
    cn_ref[idx_r] = c_cat[0:B, H:2 * H]

  # ---- final Linear + tanh on the last timestep of the top layer ------------
  h_out = jnp.concatenate([h_cat[:, 0:H], hr_at_last_time], axis=1)  # (BP, 2H)
  score = jnp.tanh(
      jnp.dot(h_out.astype(bf16), wout_ref[...], preferred_element_type=f32)
      + bout_ref[...])
  score_ref[...] = score[0:B, :]


# --------------------------- parameter packing -------------------------------
def _place_gate_cols(w_t, direction):
  """Scatter (rows, 4H) [i|f|g|o] columns into the gate-major fused 8H layout."""
  h = HIDDEN_SIZE
  out = jnp.zeros((w_t.shape[0], 8 * h), jnp.float32)
  for g in range(4):
    dst = (2 * g + direction) * h
    out = out.at[:, dst:dst + h].set(w_t[:, g * h:(g + 1) * h])
  return out


def _build_kernel_params(raw):
  h = HIDDEN_SIZE
  p = {}

  # Fused embedding + layer-0 input projection table (2*VP, 8H).
  emb = raw["embedding"]                                     # (V, E)
  pf = _place_gate_cols(emb @ raw["w_ih"][0].T, 0)           # (V, 8H) fwd
  pr = _place_gate_cols(emb @ raw["w_ih"][1].T, 1)           # (V, 8H) rev
  tbl = jnp.zeros((2 * VOCAB_PAD, 8 * h), jnp.float32)
  tbl = tbl.at[0:MAX_FEATURES].set(pf)
  tbl = tbl.at[VOCAB_PAD:VOCAB_PAD + MAX_FEATURES].set(pr)
  p["emb_proj"] = tbl.astype(jnp.bfloat16)

  # Fused layer-1/2 input weights (4H, 8H), rows matched to the doubled input
  # lane layout [hf(s) | hr(T-1-s) | hf(T-1-s) | hr(s)].
  wih12 = []
  for layer in (1, 2):
    wf_t = raw["w_ih"][2 * layer + 0].T                      # (2H, 4H)
    wr_t = raw["w_ih"][2 * layer + 1].T
    w = jnp.zeros((4 * h, 8 * h), jnp.float32)
    w = w.at[0 * h:1 * h].set(_place_gate_cols(wf_t[0:h], 0))      # hf(s)
    w = w.at[1 * h:2 * h].set(_place_gate_cols(wr_t[h:2 * h], 1))  # hr(T-1-s)
    w = w.at[2 * h:3 * h].set(_place_gate_cols(wr_t[0:h], 1))      # hf(T-1-s)
    w = w.at[3 * h:4 * h].set(_place_gate_cols(wf_t[h:2 * h], 0))  # hr(s)
    wih12.append(w)
  p["wih12"] = jnp.stack(wih12).astype(jnp.bfloat16)         # (2, 4H, 8H)

  # Fused recurrent weights (2H, 8H) and biases (1, 8H) per layer.
  whh, bias = [], []
  for layer in range(NUM_LAYERS):
    fi, ri = 2 * layer, 2 * layer + 1
    whh.append(jnp.concatenate([_place_gate_cols(raw["w_hh"][fi].T, 0),
                                _place_gate_cols(raw["w_hh"][ri].T, 1)],
                               axis=0))
    bf = _place_gate_cols((raw["b_ih"][fi] + raw["b_hh"][fi]).reshape(1, 4 * h), 0)
    br = _place_gate_cols((raw["b_ih"][ri] + raw["b_hh"][ri]).reshape(1, 4 * h), 1)
    bias.append(bf + br)
  p["whh"] = jnp.stack(whh).astype(jnp.bfloat16)             # (3, 2H, 8H)
  p["bias"] = jnp.stack(bias)                                # (3, 1, 8H) f32

  p["out_w_t"] = raw["w_out"].T.astype(jnp.bfloat16)         # (2H, C)
  p["out_b"] = raw["b_out"].reshape(1, NUM_CLASSES)          # (1, C)
  return p


def init_params(key):
  n_keys = 1 + NUM_LAYERS * NUM_DIRECTIONS * 4 + 2
  keys = jax.random.split(key, n_keys)
  ki = iter(keys)
  raw = {}
  raw["embedding"] = jax.random.normal(
      next(ki), (MAX_FEATURES, EMBEDDING_DIM), jnp.float32) * 0.1

  scale = 1.0 / jnp.sqrt(float(HIDDEN_SIZE))
  w_ih, w_hh, b_ih, b_hh = [], [], [], []
  for layer in range(NUM_LAYERS):
    in_size = EMBEDDING_DIM if layer == 0 else NUM_DIRECTIONS * HIDDEN_SIZE
    for _ in range(NUM_DIRECTIONS):
      w_ih.append(jax.random.uniform(next(ki), (4 * HIDDEN_SIZE, in_size),
                                     jnp.float32, -scale, scale))
      w_hh.append(jax.random.uniform(next(ki), (4 * HIDDEN_SIZE, HIDDEN_SIZE),
                                     jnp.float32, -scale, scale))
      b_ih.append(jax.random.uniform(next(ki), (4 * HIDDEN_SIZE,),
                                     jnp.float32, -scale, scale))
      b_hh.append(jax.random.uniform(next(ki), (4 * HIDDEN_SIZE,),
                                     jnp.float32, -scale, scale))
  raw["w_ih"], raw["w_hh"], raw["b_ih"], raw["b_hh"] = w_ih, w_hh, b_ih, b_hh

  out_scale = 1.0 / jnp.sqrt(float(2 * HIDDEN_SIZE))
  raw["w_out"] = jax.random.uniform(
      next(ki), (NUM_CLASSES, NUM_DIRECTIONS * HIDDEN_SIZE), jnp.float32,
      -out_scale, out_scale)
  raw["b_out"] = jax.random.uniform(next(ki), (NUM_CLASSES,), jnp.float32,
                                    -out_scale, out_scale)
  return raw, _build_kernel_params(raw)


# ------------------------------ full model ----------------------------------
@jax.jit
def rnn_model_forward(params, word_seq, h_init):
  """Equivalent of RNN_Model.forward (eval mode) as a single pallas_call."""
  h0_all, c0_all = h_init
  n_states = NUM_LAYERS * NUM_DIRECTIONS

  vmem = pl.BlockSpec(memory_space=pltpu.MemorySpace.VMEM)
  score, h_n, c_n = pl.pallas_call(
      _fused_rnn_kernel,
      out_shape=(
          jax.ShapeDtypeStruct((BATCH, NUM_CLASSES), jnp.float32),
          jax.ShapeDtypeStruct((n_states, BATCH, HIDDEN_SIZE), jnp.float32),
          jax.ShapeDtypeStruct((n_states, BATCH, HIDDEN_SIZE), jnp.float32),
      ),
      in_specs=[
          pl.BlockSpec(memory_space=pltpu.MemorySpace.SMEM),   # word ids
          vmem, vmem, vmem, vmem, vmem, vmem, vmem, vmem,
      ],
      scratch_shapes=[
          pltpu.VMEM((SEQ_LEN * BATCH_PAD, 2 * VOCAB_PAD), jnp.float32),
      ],
  )(word_seq, params["emb_proj"], params["wih12"], params["whh"],
    params["bias"], h0_all, c0_all, params["out_w_t"], params["out_b"])

  return score, (h_n, c_n)


# --------------------------- pure-JAX reference ------------------------------
def _reference_forward(raw, word_seq, h0, c0):
  """f32 reference with PyTorch LSTM semantics (eval mode)."""
  with jax.default_matmul_precision("float32"):
    H = HIDDEN_SIZE
    emb = raw["embedding"][word_seq]                 # (B, T, E)
    layer_in = jnp.transpose(emb, (1, 0, 2))         # (T, B, E)
    h_n, c_n = [], []
    for layer in range(NUM_LAYERS):
      outs = []
      for d in range(NUM_DIRECTIONS):
        idx = 2 * layer + d
        w_ih, w_hh = raw["w_ih"][idx], raw["w_hh"][idx]
        b = raw["b_ih"][idx] + raw["b_hh"][idx]
        h, c = h0[idx], c0[idx]
        seq = layer_in if d == 0 else layer_in[::-1]
        hs = []
        for t in range(SEQ_LEN):
          g = seq[t] @ w_ih.T + b + h @ w_hh.T
          i = jax.nn.sigmoid(g[:, 0:H])
          f = jax.nn.sigmoid(g[:, H:2 * H])
          gg = jnp.tanh(g[:, 2 * H:3 * H])
          o = jax.nn.sigmoid(g[:, 3 * H:4 * H])
          c = f * c + i * gg
          h = o * jnp.tanh(c)
          hs.append(h)
        hs = jnp.stack(hs)
        if d == 1:
          hs = hs[::-1]
        outs.append(hs)
        h_n.append(h)
        c_n.append(c)
      layer_in = jnp.concatenate(outs, axis=-1)
    score = jnp.tanh(layer_in[-1] @ raw["w_out"].T + raw["b_out"])
    return score, jnp.stack(h_n), jnp.stack(c_n)


# --------------------------------- main --------------------------------------
if __name__ == "__main__":
  key = jax.random.PRNGKey(0)
  k_param, k_seq, k_h, k_c = jax.random.split(key, 4)

  raw_params, params = init_params(k_param)

  word_seq = jax.random.randint(k_seq, (BATCH, SEQ_LEN), 0, MAX_FEATURES,
                                dtype=jnp.int32)
  h0 = jax.random.normal(
      k_h, (NUM_LAYERS * NUM_DIRECTIONS, BATCH, HIDDEN_SIZE), jnp.float32) * 0.1
  c0 = jax.random.normal(
      k_c, (NUM_LAYERS * NUM_DIRECTIONS, BATCH, HIDDEN_SIZE), jnp.float32) * 0.1

  score_last, (h_n, c_n) = rnn_model_forward(params, word_seq, (h0, c0))
  jax.block_until_ready((score_last, h_n, c_n))

  assert score_last.shape == (BATCH, NUM_CLASSES)
  assert h_n.shape == (NUM_LAYERS * NUM_DIRECTIONS, BATCH, HIDDEN_SIZE)
  assert c_n.shape == (NUM_LAYERS * NUM_DIRECTIONS, BATCH, HIDDEN_SIZE)
  assert bool(jnp.all(jnp.isfinite(score_last)))

  # Correctness vs. an f32 pure-JAX reference (bf16 matmul operands in the
  # kernel -> compare with a loose tolerance).
  ref_score, ref_hn, ref_cn = _reference_forward(raw_params, word_seq, h0, c0)
  assert float(jnp.max(jnp.abs(score_last - ref_score))) < 5e-2
  assert float(jnp.max(jnp.abs(h_n - ref_hn))) < 5e-2
  assert float(jnp.max(jnp.abs(c_n - ref_cn))) < 5e-2

  print("KERNEL_OK")
</pallas_src>

<mosaic_0001>
module attributes {stable_mosaic.version = 11 : i64} {
  func.func @_fused_rnn_kernel(%arg0: memref<2x8xi32, #tpu.memory_space<smem>>, %arg1: memref<256x256xbf16, #tpu.memory_space<vmem>>, %arg2: memref<2x128x256xbf16, #tpu.memory_space<vmem>>, %arg3: memref<3x64x256xbf16, #tpu.memory_space<vmem>>, %arg4: memref<3x1x256xf32, #tpu.memory_space<vmem>>, %arg5: memref<6x2x32xf32, #tpu.memory_space<vmem>>, %arg6: memref<6x2x32xf32, #tpu.memory_space<vmem>>, %arg7: memref<64x5xbf16, #tpu.memory_space<vmem>>, %arg8: memref<1x5xf32, #tpu.memory_space<vmem>>, %arg9: memref<2x5xf32, #tpu.memory_space<vmem>>, %arg10: memref<6x2x32xf32, #tpu.memory_space<vmem>>, %arg11: memref<6x2x32xf32, #tpu.memory_space<vmem>>, %arg12: memref<64x256xf32, #tpu.memory_space<vmem>>) attributes {dimension_semantics = [], scalar_prefetch = 0 : i64, scratch_operands = 1 : i64, tpu.core_type = #tpu.core_type<tc>} {
    %cst = arith.constant 0.000000e+00 : f32
    %0 = vector.broadcast %cst : f32 to vector<64x256xf32>
    %c0 = arith.constant 0 : index
    %c0_0 = arith.constant 0 : index
    %1 = vector.load %arg12[%c0, %c0_0] : memref<64x256xf32, #tpu.memory_space<vmem>>, vector<64x256xf32>
    tpu.vector_store %arg12[%c0, %c0_0], %0 {strides = array<i32>} : memref<64x256xf32, #tpu.memory_space<vmem>>, vector<64x256xf32>,
    %2 = tpu.iota {dimensions = array<i32: 1>} : vector<1x128xi32>
    %c0_1 = arith.constant 0 : index
    %c0_2 = arith.constant 0 : index
    %3 = memref.load %arg0[%c0_1, %c0_2] : memref<2x8xi32, #tpu.memory_space<smem>>
    %4 = vector.broadcast %3 : i32 to vector<1x128xi32>
    %5 = arith.cmpi eq, %2, %4 : vector<1x128xi32>
    %6 = arith.extui %5 : vector<1x128xi1> to vector<1x128xi32>
    %7 = arith.sitofp %6 : vector<1x128xi32> to vector<1x128xf32>
    %c0_3 = arith.constant 0 : index
    %c0_4 = arith.constant 0 : index
    %8 = vector.load %arg12[%c0_3, %c0_4] : memref<64x256xf32, #tpu.memory_space<vmem>>, vector<1x128xf32>
    tpu.vector_store %arg12[%c0_3, %c0_4], %7 {strides = array<i32>} : memref<64x256xf32, #tpu.memory_space<vmem>>, vector<1x128xf32>,
    %c56 = arith.constant 56 : index
    %c128 = arith.constant 128 : index
    %9 = vector.load %arg12[%c56, %c128] : memref<64x256xf32, #tpu.memory_space<vmem>>, vector<1x128xf32>
    tpu.vector_store %arg12[%c56, %c128], %7 {strides = array<i32>} : memref<64x256xf32, #tpu.memory_space<vmem>>, vector<1x128xf32>,
    %c1 = arith.constant 1 : index
    %c0_5 = arith.constant 0 : index
    %10 = memref.load %arg0[%c1, %c0_5] : memref<2x8xi32, #tpu.memory_space<smem>>
    %11 = vector.broadcast %10 : i32 to vector<1x128xi32>
    %12 = arith.cmpi eq, %2, %11 : vector<1x128xi32>
    %13 = arith.extui %12 : vector<1x128xi1> to vector<1x128xi32>
    %14 = arith.sitofp %13 : vector<1x128xi32> to vector<1x128xf32>
    %c1_6 = arith.constant 1 : index
    %c0_7 = arith.constant 0 : index
    %15 = vector.load %arg12[%c1_6, %c0_7] : memref<64x256xf32, #tpu.memory_space<vmem>>, vector<1x128xf32>
    tpu.vector_store %arg12[%c1_6, %c0_7], %14 {strides = array<i32>} : memref<64x256xf32, #tpu.memory_space<vmem>>, vector<1x128xf32>,
    %c57 = arith.constant 57 : index
    %c128_8 = arith.constant 128 : index
    %16 = vector.load %arg12[%c57, %c128_8] : memref<64x256xf32, #tpu.memory_space<vmem>>, vector<1x128xf32>
    tpu.vector_store %arg12[%c57, %c128_8], %14 {strides = array<i32>} : memref<64x256xf32, #tpu.memory_space<vmem>>, vector<1x128xf32>,
    %c0_9 = arith.constant 0 : index
    %c1_10 = arith.constant 1 : index
    %17 = memref.load %arg0[%c0_9, %c1_10] : memref<2x8xi32, #tpu.memory_space<smem>>
    %18 = vector.broadcast %17 : i32 to vector<1x128xi32>
    %19 = arith.cmpi eq, %2, %18 : vector<1x128xi32>
    %20 = arith.extui %19 : vector<1x128xi1> to vector<1x128xi32>
    %21 = arith.sitofp %20 : vector<1x128xi32> to vector<1x128xf32>
    %c8 = arith.constant 8 : index
    %c0_11 = arith.constant 0 : index
    %22 = vector.load %arg12[%c8, %c0_11] : memref<64x256xf32, #tpu.memory_space<vmem>>, vector<1x128xf32>
    tpu.vector_store %arg12[%c8, %c0_11], %21 {strides = array<i32>} : memref<64x256xf32, #tpu.memory_space<vmem>>, vector<1x128xf32>,
    %c48 = arith.constant 48 : index
    %c128_12 = arith.constant 128 : index
    %23 = vector.load %arg12[%c48, %c128_12] : memref<64x256xf32, #tpu.memory_space<vmem>>, vector<1x128xf32>
    tpu.vector_store %arg12[%c48, %c128_12], %21 {strides = array<i32>} : memref<64x256xf32, #tpu.memory_space<vmem>>, vector<1x128xf32>,
    %c1_13 = arith.constant 1 : index
    %c1_14 = arith.constant 1 : index
    %24 = memref.load %arg0[%c1_13, %c1_14] : memref<2x8xi32, #tpu.memory_space<smem>>
    %25 = vector.broadcast %24 : i32 to vector<1x128xi32>
    %26 = arith.cmpi eq, %2, %25 : vector<1x128xi32>
    %27 = arith.extui %26 : vector<1x128xi1> to vector<1x128xi32>
    %28 = arith.sitofp %27 : vector<1x128xi32> to vector<1x128xf32>
    %c9 = arith.constant 9 : index
    %c0_15 = arith.constant 0 : index
    %29 = vector.load %arg12[%c9, %c0_15] : memref<64x256xf32, #tpu.memory_space<vmem>>, vector<1x128xf32>
    tpu.vector_store %arg12[%c9, %c0_15], %28 {strides = array<i32>} : memref<64x256xf32, #tpu.memory_space<vmem>>, vector<1x128xf32>,
    %c49 = arith.constant 49 : index
    %c128_16 = arith.constant 128 : index
    %30 = vector.load %arg12[%c49, %c128_16] : memref<64x256xf32, #tpu.memory_space<vmem>>, vector<1x128xf32>
    tpu.vector_store %arg12[%c49, %c128_16], %28 {strides = array<i32>} : memref<64x256xf32, #tpu.memory_space<vmem>>, vector<1x128xf32>,
    %c0_17 = arith.constant 0 : index
    %c2 = arith.constant 2 : index
    %31 = memref.load %arg0[%c0_17, %c2] : memref<2x8xi32, #tpu.memory_space<smem>>
    %32 = vector.broadcast %31 : i32 to vector<1x128xi32>
    %33 = arith.cmpi eq, %2, %32 : vector<1x128xi32>
    %34 = arith.extui %33 : vector<1x128xi1> to vector<1x128xi32>
    %35 = arith.sitofp %34 : vector<1x128xi32> to vector<1x128xf32>
    %c16 = arith.constant 16 : index
    %c0_18 = arith.constant 0 : index
    %36 = vector.load %arg12[%c16, %c0_18] : memref<64x256xf32, #tpu.memory_space<vmem>>, vector<1x128xf32>
    tpu.vector_store %arg12[%c16, %c0_18], %35 {strides = array<i32>} : memref<64x256xf32, #tpu.memory_space<vmem>>, vector<1x128xf32>,
    %c40 = arith.constant 40 : index
    %c128_19 = arith.constant 128 : index
    %37 = vector.load %arg12[%c40, %c128_19] : memref<64x256xf32, #tpu.memory_space<vmem>>, vector<1x128xf32>
    tpu.vector_store %arg12[%c40, %c128_19], %35 {strides = array<i32>} : memref<64x256xf32, #tpu.memory_space<vmem>>, vector<1x128xf32>,
    %c1_20 = arith.constant 1 : index
    %c2_21 = arith.constant 2 : index
    %38 = memref.load %arg0[%c1_20, %c2_21] : memref<2x8xi32, #tpu.memory_space<smem>>
    %39 = vector.broadcast %38 : i32 to vector<1x128xi32>
    %40 = arith.cmpi eq, %2, %39 : vector<1x128xi32>
    %41 = arith.extui %40 : vector<1x128xi1> to vector<1x128xi32>
    %42 = arith.sitofp %41 : vector<1x128xi32> to vector<1x128xf32>
    %c17 = arith.constant 17 : index
    %c0_22 = arith.constant 0 : index
    %43 = vector.load %arg12[%c17, %c0_22] : memref<64x256xf32, #tpu.memory_space<vmem>>, vector<1x128xf32>
    tpu.vector_store %arg12[%c17, %c0_22], %42 {strides = array<i32>} : memref<64x256xf32, #tpu.memory_space<vmem>>, vector<1x128xf32>,
    %c41 = arith.constant 41 : index
    %c128_23 = arith.constant 128 : index
    %44 = vector.load %arg12[%c41, %c128_23] : memref<64x256xf32, #tpu.memory_space<vmem>>, vector<1x128xf32>
    tpu.vector_store %arg12[%c41, %c128_23], %42 {strides = array<i32>} : memref<64x256xf32, #tpu.memory_space<vmem>>, vector<1x128xf32>,
    %c0_24 = arith.constant 0 : index
    %c3 = arith.constant 3 : index
    %45 = memref.load %arg0[%c0_24, %c3] : memref<2x8xi32, #tpu.memory_space<smem>>
    %46 = vector.broadcast %45 : i32 to vector<1x128xi32>
    %47 = arith.cmpi eq, %2, %46 : vector<1x128xi32>
    %48 = arith.extui %47 : vector<1x128xi1> to vector<1x128xi32>
    %49 = arith.sitofp %48 : vector<1x128xi32> to vector<1x128xf32>
    %c24 = arith.constant 24 : index
    %c0_25 = arith.constant 0 : index
    %50 = vector.load %arg12[%c24, %c0_25] : memref<64x256xf32, #tpu.memory_space<vmem>>, vector<1x128xf32>
    tpu.vector_store %arg12[%c24, %c0_25], %49 {strides = array<i32>} : memref<64x256xf32, #tpu.memory_space<vmem>>, vector<1x128xf32>,
    %c32 = arith.constant 32 : index
    %c128_26 = arith.constant 128 : index
    %51 = vector.load %arg12[%c32, %c128_26] : memref<64x256xf32, #tpu.memory_space<vmem>>, vector<1x128xf32>
    tpu.vector_store %arg12[%c32, %c128_26], %49 {strides = array<i32>} : memref<64x256xf32, #tpu.memory_space<vmem>>, vector<1x128xf32>,
    %c1_27 = arith.constant 1 : index
    %c3_28 = arith.constant 3 : index
    %52 = memref.load %arg0[%c1_27, %c3_28] : memref<2x8xi32, #tpu.memory_space<smem>>
    %53 = vector.broadcast %52 : i32 to vector<1x128xi32>
    %54 = arith.cmpi eq, %2, %53 : vector<1x128xi32>
    %55 = arith.extui %54 : vector<1x128xi1> to vector<1x128xi32>
    %56 = arith.sitofp %55 : vector<1x128xi32> to vector<1x128xf32>
    %c25 = arith.constant 25 : index
    %c0_29 = arith.constant 0 : index
    %57 = vector.load %arg12[%c25, %c0_29] : memref<64x256xf32, #tpu.memory_space<vmem>>, vector<1x128xf32>
    tpu.vector_store %arg12[%c25, %c0_29], %56 {strides = array<i32>} : memref<64x256xf32, #tpu.memory_space<vmem>>, vector<1x128xf32>,
    %c33 = arith.constant 33 : index
    %c128_30 = arith.constant 128 : index
    %58 = vector.load %arg12[%c33, %c128_30] : memref<64x256xf32, #tpu.memory_space<vmem>>, vector<1x128xf32>
    tpu.vector_store %arg12[%c33, %c128_30], %56 {strides = array<i32>} : memref<64x256xf32, #tpu.memory_space<vmem>>, vector<1x128xf32>,
    %c0_31 = arith.constant 0 : index
    %c4 = arith.constant 4 : index
    %59 = memref.load %arg0[%c0_31, %c4] : memref<2x8xi32, #tpu.memory_space<smem>>
    %60 = vector.broadcast %59 : i32 to vector<1x128xi32>
    %61 = arith.cmpi eq, %2, %60 : vector<1x128xi32>
    %62 = arith.extui %61 : vector<1x128xi1> to vector<1x128xi32>
    %63 = arith.sitofp %62 : vector<1x128xi32> to vector<1x128xf32>
    %c32_32 = arith.constant 32 : index
    %c0_33 = arith.constant 0 : index
    %64 = vector.load %arg12[%c32_32, %c0_33] : memref<64x256xf32, #tpu.memory_space<vmem>>, vector<1x128xf32>
    tpu.vector_store %arg12[%c32_32, %c0_33], %63 {strides = array<i32>} : memref<64x256xf32, #tpu.memory_space<vmem>>, vector<1x128xf32>,
    %c24_34 = arith.constant 24 : index
    %c128_35 = arith.constant 128 : index
    %65 = vector.load %arg12[%c24_34, %c128_35] : memref<64x256xf32, #tpu.memory_space<vmem>>, vector<1x128xf32>
    tpu.vector_store %arg12[%c24_34, %c128_35], %63 {strides = array<i32>} : memref<64x256xf32, #tpu.memory_space<vmem>>, vector<1x128xf32>,
    %c1_36 = arith.constant 1 : index
    %c4_37 = arith.constant 4 : index
    %66 = memref.load %arg0[%c1_36, %c4_37] : memref<2x8xi32, #tpu.memory_space<smem>>
    %67 = vector.broadcast %66 : i32 to vector<1x128xi32>
    %68 = arith.cmpi eq, %2, %67 : vector<1x128xi32>
    %69 = arith.extui %68 : vector<1x128xi1> to vector<1x128xi32>
    %70 = arith.sitofp %69 : vector<1x128xi32> to vector<1x128xf32>
    %c33_38 = arith.constant 33 : index
    %c0_39 = arith.constant 0 : index
    %71 = vector.load %arg12[%c33_38, %c0_39] : memref<64x256xf32, #tpu.memory_space<vmem>>, vector<1x128xf32>
    tpu.vector_store %arg12[%c33_38, %c0_39], %70 {strides = array<i32>} : memref<64x256xf32, #tpu.memory_space<vmem>>, vector<1x128xf32>,
    %c25_40 = arith.constant 25 : index
    %c128_41 = arith.constant 128 : index
    %72 = vector.load %arg12[%c25_40, %c128_41] : memref<64x256xf32, #tpu.memory_space<vmem>>, vector<1x128xf32>
    tpu.vector_store %arg12[%c25_40, %c128_41], %70 {strides = array<i32>} : memref<64x256xf32, #tpu.memory_space<vmem>>, vector<1x128xf32>,
    %c0_42 = arith.constant 0 : index
    %c5 = arith.constant 5 : index
    %73 = memref.load %arg0[%c0_42, %c5] : memref<2x8xi32, #tpu.memory_space<smem>>
    %74 = vector.broadcast %73 : i32 to vector<1x128xi32>
    %75 = arith.cmpi eq, %2, %74 : vector<1x128xi32>
    %76 = arith.extui %75 : vector<1x128xi1> to vector<1x128xi32>
    %77 = arith.sitofp %76 : vector<1x128xi32> to vector<1x128xf32>
    %c40_43 = arith.constant 40 : index
    %c0_44 = arith.constant 0 : index
    %78 = vector.load %arg12[%c40_43, %c0_44] : memref<64x256xf32, #tpu.memory_space<vmem>>, vector<1x128xf32>
    tpu.vector_store %arg12[%c40_43, %c0_44], %77 {strides = array<i32>} : memref<64x256xf32, #tpu.memory_space<vmem>>, vector<1x128xf32>,
    %c16_45 = arith.constant 16 : index
    %c128_46 = arith.constant 128 : index
    %79 = vector.load %arg12[%c16_45, %c128_46] : memref<64x256xf32, #tpu.memory_space<vmem>>, vector<1x128xf32>
    tpu.vector_store %arg12[%c16_45, %c128_46], %77 {strides = array<i32>} : memref<64x256xf32, #tpu.memory_space<vmem>>, vector<1x128xf32>,
    %c1_47 = arith.constant 1 : index
    %c5_48 = arith.constant 5 : index
    %80 = memref.load %arg0[%c1_47, %c5_48] : memref<2x8xi32, #tpu.memory_space<smem>>
    %81 = vector.broadcast %80 : i32 to vector<1x128xi32>
    %82 = arith.cmpi eq, %2, %81 : vector<1x128xi32>
    %83 = arith.extui %82 : vector<1x128xi1> to vector<1x128xi32>
    %84 = arith.sitofp %83 : vector<1x128xi32> to vector<1x128xf32>
    %c41_49 = arith.constant 41 : index
    %c0_50 = arith.constant 0 : index
    %85 = vector.load %arg12[%c41_49, %c0_50] : memref<64x256xf32, #tpu.memory_space<vmem>>, vector<1x128xf32>
    tpu.vector_store %arg12[%c41_49, %c0_50], %84 {strides = array<i32>} : memref<64x256xf32, #tpu.memory_space<vmem>>, vector<1x128xf32>,
    %c17_51 = arith.constant 17 : index
    %c128_52 = arith.constant 128 : index
    %86 = vector.load %arg12[%c17_51, %c128_52] : memref<64x256xf32, #tpu.memory_space<vmem>>, vector<1x128xf32>
    tpu.vector_store %arg12[%c17_51, %c128_52], %84 {strides = array<i32>} : memref<64x256xf32, #tpu.memory_space<vmem>>, vector<1x128xf32>,
    %c0_53 = arith.constant 0 : index
    %c6 = arith.constant 6 : index
    %87 = memref.load %arg0[%c0_53, %c6] : memref<2x8xi32, #tpu.memory_space<smem>>
    %88 = vector.broadcast %87 : i32 to vector<1x128xi32>
    %89 = arith.cmpi eq, %2, %88 : vector<1x128xi32>
    %90 = arith.extui %89 : vector<1x128xi1> to vector<1x128xi32>
    %91 = arith.sitofp %90 : vector<1x128xi32> to vector<1x128xf32>
    %c48_54 = arith.constant 48 : index
    %c0_55 = arith.constant 0 : index
    %92 = vector.load %arg12[%c48_54, %c0_55] : memref<64x256xf32, #tpu.memory_space<vmem>>, vector<1x128xf32>
    tpu.vector_store %arg12[%c48_54, %c0_55], %91 {strides = array<i32>} : memref<64x256xf32, #tpu.memory_space<vmem>>, vector<1x128xf32>,
    %c8_56 = arith.constant 8 : index
    %c128_57 = arith.constant 128 : index
    %93 = vector.load %arg12[%c8_56, %c128_57] : memref<64x256xf32, #tpu.memory_space<vmem>>, vector<1x128xf32>
    tpu.vector_store %arg12[%c8_56, %c128_57], %91 {strides = array<i32>} : memref<64x256xf32, #tpu.memory_space<vmem>>, vector<1x128xf32>,
    %c1_58 = arith.constant 1 : index
    %c6_59 = arith.constant 6 : index
    %94 = memref.load %arg0[%c1_58, %c6_59] : memref<2x8xi32, #tpu.memory_space<smem>>
    %95 = vector.broadcast %94 : i32 to vector<1x128xi32>
    %96 = arith.cmpi eq, %2, %95 : vector<1x128xi32>
    %97 = arith.extui %96 : vector<1x128xi1> to vector<1x128xi32>
    %98 = arith.sitofp %97 : vector<1x128xi32> to vector<1x128xf32>
    %c49_60 = arith.constant 49 : index
    %c0_61 = arith.constant 0 : index
    %99 = vector.load %arg12[%c49_60, %c0_61] : memref<64x256xf32, #tpu.memory_space<vmem>>, vector<1x128xf32>
    tpu.vector_store %arg12[%c49_60, %c0_61], %98 {strides = array<i32>} : memref<64x256xf32, #tpu.memory_space<vmem>>, vector<1x128xf32>,
    %c9_62 = arith.constant 9 : index
    %c128_63 = arith.constant 128 : index
    %100 = vector.load %arg12[%c9_62, %c128_63] : memref<64x256xf32, #tpu.memory_space<vmem>>, vector<1x128xf32>
    tpu.vector_store %arg12[%c9_62, %c128_63], %98 {strides = array<i32>} : memref<64x256xf32, #tpu.memory_space<vmem>>, vector<1x128xf32>,
    %c0_64 = arith.constant 0 : index
    %c7 = arith.constant 7 : index
    %101 = memref.load %arg0[%c0_64, %c7] : memref<2x8xi32, #tpu.memory_space<smem>>
    %102 = vector.broadcast %101 : i32 to vector<1x128xi32>
    %103 = arith.cmpi eq, %2, %102 : vector<1x128xi32>
    %104 = arith.extui %103 : vector<1x128xi1> to vector<1x128xi32>
    %105 = arith.sitofp %104 : vector<1x128xi32> to vector<1x128xf32>
    %c56_65 = arith.constant 56 : index
    %c0_66 = arith.constant 0 : index
    %106 = vector.load %arg12[%c56_65, %c0_66] : memref<64x256xf32, #tpu.memory_space<vmem>>, vector<1x128xf32>
    tpu.vector_store %arg12[%c56_65, %c0_66], %105 {strides = array<i32>} : memref<64x256xf32, #tpu.memory_space<vmem>>, vector<1x128xf32>,
    %c0_67 = arith.constant 0 : index
    %c128_68 = arith.constant 128 : index
    %107 = vector.load %arg12[%c0_67, %c128_68] : memref<64x256xf32, #tpu.memory_space<vmem>>, vector<1x128xf32>
    tpu.vector_store %arg12[%c0_67, %c128_68], %105 {strides = array<i32>} : memref<64x256xf32, #tpu.memory_space<vmem>>, vector<1x128xf32>,
    %c1_69 = arith.constant 1 : index
    %c7_70 = arith.constant 7 : index
    %108 = memref.load %arg0[%c1_69, %c7_70] : memref<2x8xi32, #tpu.memory_space<smem>>
    %109 = vector.broadcast %108 : i32 to vector<1x128xi32>
    %110 = arith.cmpi eq, %2, %109 : vector<1x128xi32>
    %111 = arith.extui %110 : vector<1x128xi1> to vector<1x128xi32>
    %112 = arith.sitofp %111 : vector<1x128xi32> to vector<1x128xf32>
    %c57_71 = arith.constant 57 : index
    %c0_72 = arith.constant 0 : index
    %113 = vector.load %arg12[%c57_71, %c0_72] : memref<64x256xf32, #tpu.memory_space<vmem>>, vector<1x128xf32>
    tpu.vector_store %arg12[%c57_71, %c0_72], %112 {strides = array<i32>} : memref<64x256xf32, #tpu.memory_space<vmem>>, vector<1x128xf32>,
    %c1_73 = arith.constant 1 : index
    %c128_74 = arith.constant 128 : index
    %114 = vector.load %arg12[%c1_73, %c128_74] : memref<64x256xf32, #tpu.memory_space<vmem>>, vector<1x128xf32>
    tpu.vector_store %arg12[%c1_73, %c128_74], %112 {strides = array<i32>} : memref<64x256xf32, #tpu.memory_space<vmem>>, vector<1x128xf32>,
    %c0_75 = arith.constant 0 : index
    %c0_76 = arith.constant 0 : index
    %115 = vector.load %arg12[%c0_75, %c0_76] : memref<64x256xf32, #tpu.memory_space<vmem>>, vector<64x256xf32>
    %116 = arith.truncf %115 : vector<64x256xf32> to vector<64x256xbf16>
    %c0_77 = arith.constant 0 : index
    %c0_78 = arith.constant 0 : index
    %117 = vector.load %arg1[%c0_77, %c0_78] : memref<256x256xbf16, #tpu.memory_space<vmem>>, vector<256x256xbf16>
    %cst_79 = arith.constant dense<0.000000e+00> : vector<64x256xf32>
    %118 = tpu.matmul %116, %117, %cst_79 {dimension_numbers = #tpu.dot_dimension_numbers<[1], [0], [0], [1], [0, 0, 1, 1], [], []>} : vector<64x256xbf16>, vector<256x256xbf16>, vector<64x256xf32> -> vector<64x256xf32>
    %c0_80 = arith.constant 0 : index
    %c0_81 = arith.constant 0 : index
    %c0_82 = arith.constant 0 : index
    %119 = vector.load %arg4[%c0_80, %c0_81, %c0_82] : memref<3x1x256xf32, #tpu.memory_space<vmem>>, vector<1x1x256xf32>
    %120 = vector.shape_cast %119 : vector<1x1x256xf32> to vector<1x256xf32>
    %121 = vector.broadcast %120 : vector<1x256xf32> to vector<64x256xf32>
    %122 = arith.addf %118, %121 : vector<64x256xf32>
    %cst_83 = arith.constant 0.000000e+00 : f32
    %123 = vector.broadcast %cst_83 : f32 to vector<6x64xf32>
    %c0_84 = arith.constant 0 : index
    %c0_85 = arith.constant 0 : index
    %c0_86 = arith.constant 0 : index
    %124 = vector.load %arg3[%c0_84, %c0_85, %c0_86] : memref<3x64x256xbf16, #tpu.memory_space<vmem>>, vector<1x64x256xbf16>
    %125 = vector.shape_cast %124 : vector<1x64x256xbf16> to vector<64x256xbf16>
    %c0_87 = arith.constant 0 : index
    %c0_88 = arith.constant 0 : index
    %c0_89 = arith.constant 0 : index
    %126 = vector.load %arg5[%c0_87, %c0_88, %c0_89] : memref<6x2x32xf32, #tpu.memory_space<vmem>>, vector<1x2x32xf32>
    %127 = vector.shape_cast %126 : vector<1x2x32xf32> to vector<2x32xf32>
    %c1_90 = arith.constant 1 : index
    %c0_91 = arith.constant 0 : index
    %c0_92 = arith.constant 0 : index
    %128 = vector.load %arg5[%c1_90, %c0_91, %c0_92] : memref<6x2x32xf32, #tpu.memory_space<vmem>>, vector<1x2x32xf32>
    %129 = vector.shape_cast %128 : vector<1x2x32xf32> to vector<2x32xf32>
    %130 = tpu.concatenate %127, %129 in 1 : vector<2x32xf32>, vector<2x32xf32> -> vector<2x64xf32>
    %131 = tpu.concatenate %130, %123 in 0 : vector<2x64xf32>, vector<6x64xf32> -> vector<8x64xf32>
    %c0_93 = arith.constant 0 : index
    %c0_94 = arith.constant 0 : index
    %c0_95 = arith.constant 0 : index
    %132 = vector.load %arg6[%c0_93, %c0_94, %c0_95] : memref<6x2x32xf32, #tpu.memory_space<vmem>>, vector<1x2x32xf32>
    %133 = vector.shape_cast %132 : vector<1x2x32xf32> to vector<2x32xf32>
    %c1_96 = arith.constant 1 : index
    %c0_97 = arith.constant 0 : index
    %c0_98 = arith.constant 0 : index
    %134 = vector.load %arg6[%c1_96, %c0_97, %c0_98] : memref<6x2x32xf32, #tpu.memory_space<vmem>>, vector<1x2x32xf32>
    %135 = vector.shape_cast %134 : vector<1x2x32xf32> to vector<2x32xf32>
    %136 = tpu.concatenate %133, %135 in 1 : vector<2x32xf32>, vector<2x32xf32> -> vector<2x64xf32>
    %137 = tpu.concatenate %136, %123 in 0 : vector<2x64xf32>, vector<6x64xf32> -> vector<8x64xf32>
    %138 = vector.extract_strided_slice %122 {offsets = [0, 0], sizes = [8, 256], strides = [1, 1]} : vector<64x256xf32> to vector<8x256xf32>
    %139 = arith.truncf %131 : vector<8x64xf32> to vector<8x64xbf16>
    %cst_99 = arith.constant dense<0.000000e+00> : vector<8x256xf32>
    %140 = tpu.matmul %139, %125, %cst_99 {dimension_numbers = #tpu.dot_dimension_numbers<[1], [0], [0], [1], [0, 0, 1, 1], [], []>} : vector<8x64xbf16>, vector<64x256xbf16>, vector<8x256xf32> -> vector<8x256xf32>
    %141 = arith.addf %138, %140 : vector<8x256xf32>
    %142 = arith.negf %141 : vector<8x256xf32>
    %143 = math.exp %142 : vector<8x256xf32>
    %cst_100 = arith.constant 1.000000e+00 : f32
    %144 = vector.broadcast %cst_100 : f32 to vector<8x256xf32>
    %145 = arith.addf %144, %143 : vector<8x256xf32>
    %146 = arith.divf %144, %145 : vector<8x256xf32>
    %147 = math.tanh %141 : vector<8x256xf32>
    %148 = vector.extract_strided_slice %146 {offsets = [0, 0], sizes = [8, 64], strides = [1, 1]} : vector<8x256xf32> to vector<8x64xf32>
    %149 = vector.extract_strided_slice %146 {offsets = [0, 64], sizes = [8, 64], strides = [1, 1]} : vector<8x256xf32> to vector<8x64xf32>
    %150 = vector.extract_strided_slice %147 {offsets = [0, 128], sizes = [8, 64], strides = [1, 1]} : vector<8x256xf32> to vector<8x64xf32>
    %151 = vector.extract_strided_slice %146 {offsets = [0, 192], sizes = [8, 64], strides = [1, 1]} : vector<8x256xf32> to vector<8x64xf32>
    %152 = arith.mulf %149, %137 : vector<8x64xf32>
    %153 = arith.mulf %148, %150 : vector<8x64xf32>
    %154 = arith.addf %152, %153 : vector<8x64xf32>
    %155 = math.tanh %154 : vector<8x64xf32>
    %156 = arith.mulf %151, %155 : vector<8x64xf32>
    %157 = vector.extract_strided_slice %122 {offsets = [8, 0], sizes = [8, 256], strides = [1, 1]} : vector<64x256xf32> to vector<8x256xf32>
    %158 = arith.truncf %156 : vector<8x64xf32> to vector<8x64xbf16>
    %cst_101 = arith.constant dense<0.000000e+00> : vector<8x256xf32>
    %159 = tpu.matmul %158, %125, %cst_101 {dimension_numbers = #tpu.dot_dimension_numbers<[1], [0], [0], [1], [0, 0, 1, 1], [], []>} : vector<8x64xbf16>, vector<64x256xbf16>, vector<8x256xf32> -> vector<8x256xf32>
    %160 = arith.addf %157, %159 : vector<8x256xf32>
    %161 = arith.negf %160 : vector<8x256xf32>
    %162 = math.exp %161 : vector<8x256xf32>
    %cst_102 = arith.constant 1.000000e+00 : f32
    %163 = vector.broadcast %cst_102 : f32 to vector<8x256xf32>
    %164 = arith.addf %163, %162 : vector<8x256xf32>
    %165 = arith.divf %163, %164 : vector<8x256xf32>
    %166 = math.tanh %160 : vector<8x256xf32>
    %167 = vector.extract_strided_slice %165 {offsets = [0, 0], sizes = [8, 64], strides = [1, 1]} : vector<8x256xf32> to vector<8x64xf32>
    %168 = vector.extract_strided_slice %165 {offsets = [0, 64], sizes = [8, 64], strides = [1, 1]} : vector<8x256xf32> to vector<8x64xf32>
    %169 = vector.extract_strided_slice %166 {offsets = [0, 128], sizes = [8, 64], strides = [1, 1]} : vector<8x256xf32> to vector<8x64xf32>
    %170 = vector.extract_strided_slice %165 {offsets = [0, 192], sizes = [8, 64], strides = [1, 1]} : vector<8x256xf32> to vector<8x64xf32>
    %171 = arith.mulf %168, %154 : vector<8x64xf32>
    %172 = arith.mulf %167, %169 : vector<8x64xf32>
    %173 = arith.addf %171, %172 : vector<8x64xf32>
    %174 = math.tanh %173 : vector<8x64xf32>
    %175 = arith.mulf %170, %174 : vector<8x64xf32>
    %176 = vector.extract_strided_slice %122 {offsets = [16, 0], sizes = [8, 256], strides = [1, 1]} : vector<64x256xf32> to vector<8x256xf32>
    %177 = arith.truncf %175 : vector<8x64xf32> to vector<8x64xbf16>
    %cst_103 = arith.constant dense<0.000000e+00> : vector<8x256xf32>
    %178 = tpu.matmul %177, %125, %cst_103 {dimension_numbers = #tpu.dot_dimension_numbers<[1], [0], [0], [1], [0, 0, 1, 1], [], []>} : vector<8x64xbf16>, vector<64x256xbf16>, vector<8x256xf32> -> vector<8x256xf32>
    %179 = arith.addf %176, %178 : vector<8x256xf32>
    %180 = arith.negf %179 : vector<8x256xf32>
    %181 = math.exp %180 : vector<8x256xf32>
    %cst_104 = arith.constant 1.000000e+00 : f32
    %182 = vector.broadcast %cst_104 : f32 to vector<8x256xf32>
    %183 = arith.addf %182, %181 : vector<8x256xf32>
    %184 = arith.divf %182, %183 : vector<8x256xf32>
    %185 = math.tanh %179 : vector<8x256xf32>
    %186 = vector.extract_strided_slice %184 {offsets = [0, 0], sizes = [8, 64], strides = [1, 1]} : vector<8x256xf32> to vector<8x64xf32>
    %187 = vector.extract_strided_slice %184 {offsets = [0, 64], sizes = [8, 64], strides = [1, 1]} : vector<8x256xf32> to vector<8x64xf32>
    %188 = vector.extract_strided_slice %185 {offsets = [0, 128], sizes = [8, 64], strides = [1, 1]} : vector<8x256xf32> to vector<8x64xf32>
    %189 = vector.extract_strided_slice %184 {offsets = [0, 192], sizes = [8, 64], strides = [1, 1]} : vector<8x256xf32> to vector<8x64xf32>
    %190 = arith.mulf %187, %173 : vector<8x64xf32>
    %191 = arith.mulf %186, %188 : vector<8x64xf32>
    %192 = arith.addf %190, %191 : vector<8x64xf32>
    %193 = math.tanh %192 : vector<8x64xf32>
    %194 = arith.mulf %189, %193 : vector<8x64xf32>
    %195 = vector.extract_strided_slice %122 {offsets = [24, 0], sizes = [8, 256], strides = [1, 1]} : vector<64x256xf32> to vector<8x256xf32>
    %196 = arith.truncf %194 : vector<8x64xf32> to vector<8x64xbf16>
    %cst_105 = arith.constant dense<0.000000e+00> : vector<8x256xf32>
    %197 = tpu.matmul %196, %125, %cst_105 {dimension_numbers = #tpu.dot_dimension_numbers<[1], [0], [0], [1], [0, 0, 1, 1], [], []>} : vector<8x64xbf16>, vector<64x256xbf16>, vector<8x256xf32> -> vector<8x256xf32>
    %198 = arith.addf %195, %197 : vector<8x256xf32>
    %199 = arith.negf %198 : vector<8x256xf32>
    %200 = math.exp %199 : vector<8x256xf32>
    %cst_106 = arith.constant 1.000000e+00 : f32
    %201 = vector.broadcast %cst_106 : f32 to vector<8x256xf32>
    %202 = arith.addf %201, %200 : vector<8x256xf32>
    %203 = arith.divf %201, %202 : vector<8x256xf32>
    %204 = math.tanh %198 : vector<8x256xf32>
    %205 = vector.extract_strided_slice %203 {offsets = [0, 0], sizes = [8, 64], strides = [1, 1]} : vector<8x256xf32> to vector<8x64xf32>
    %206 = vector.extract_strided_slice %203 {offsets = [0, 64], sizes = [8, 64], strides = [1, 1]} : vector<8x256xf32> to vector<8x64xf32>
    %207 = vector.extract_strided_slice %204 {offsets = [0, 128], sizes = [8, 64], strides = [1, 1]} : vector<8x256xf32> to vector<8x64xf32>
    %208 = vector.extract_strided_slice %203 {offsets = [0, 192], sizes = [8, 64], strides = [1, 1]} : vector<8x256xf32> to vector<8x64xf32>
    %209 = arith.mulf %206, %192 : vector<8x64xf32>
    %210 = arith.mulf %205, %207 : vector<8x64xf32>
    %211 = arith.addf %209, %210 : vector<8x64xf32>
    %212 = math.tanh %211 : vector<8x64xf32>
    %213 = arith.mulf %208, %212 : vector<8x64xf32>
    %214 = vector.extract_strided_slice %122 {offsets = [32, 0], sizes = [8, 256], strides = [1, 1]} : vector<64x256xf32> to vector<8x256xf32>
    %215 = arith.truncf %213 : vector<8x64xf32> to vector<8x64xbf16>
    %cst_107 = arith.constant dense<0.000000e+00> : vector<8x256xf32>
    %216 = tpu.matmul %215, %125, %cst_107 {dimension_numbers = #tpu.dot_dimension_numbers<[1], [0], [0], [1], [0, 0, 1, 1], [], []>} : vector<8x64xbf16>, vector<64x256xbf16>, vector<8x256xf32> -> vector<8x256xf32>
    %217 = arith.addf %214, %216 : vector<8x256xf32>
    %218 = arith.negf %217 : vector<8x256xf32>
    %219 = math.exp %218 : vector<8x256xf32>
    %cst_108 = arith.constant 1.000000e+00 : f32
    %220 = vector.broadcast %cst_108 : f32 to vector<8x256xf32>
    %221 = arith.addf %220, %219 : vector<8x256xf32>
    %222 = arith.divf %220, %221 : vector<8x256xf32>
    %223 = math.tanh %217 : vector<8x256xf32>
    %224 = vector.extract_strided_slice %222 {offsets = [0, 0], sizes = [8, 64], strides = [1, 1]} : vector<8x256xf32> to vector<8x64xf32>
    %225 = vector.extract_strided_slice %222 {offsets = [0, 64], sizes = [8, 64], strides = [1, 1]} : vector<8x256xf32> to vector<8x64xf32>
    %226 = vector.extract_strided_slice %223 {offsets = [0, 128], sizes = [8, 64], strides = [1, 1]} : vector<8x256xf32> to vector<8x64xf32>
    %227 = vector.extract_strided_slice %222 {offsets = [0, 192], sizes = [8, 64], strides = [1, 1]} : vector<8x256xf32> to vector<8x64xf32>
    %228 = arith.mulf %225, %211 : vector<8x64xf32>
    %229 = arith.mulf %224, %226 : vector<8x64xf32>
    %230 = arith.addf %228, %229 : vector<8x64xf32>
    %231 = math.tanh %230 : vector<8x64xf32>
    %232 = arith.mulf %227, %231 : vector<8x64xf32>
    %233 = vector.extract_strided_slice %122 {offsets = [40, 0], sizes = [8, 256], strides = [1, 1]} : vector<64x256xf32> to vector<8x256xf32>
    %234 = arith.truncf %232 : vector<8x64xf32> to vector<8x64xbf16>
    %cst_109 = arith.constant dense<0.000000e+00> : vector<8x256xf32>
    %235 = tpu.matmul %234, %125, %cst_109 {dimension_numbers = #tpu.dot_dimension_numbers<[1], [0], [0], [1], [0, 0, 1, 1], [], []>} : vector<8x64xbf16>, vector<64x256xbf16>, vector<8x256xf32> -> vector<8x256xf32>
    %236 = arith.addf %233, %235 : vector<8x256xf32>
    %237 = arith.negf %236 : vector<8x256xf32>
    %238 = math.exp %237 : vector<8x256xf32>
    %cst_110 = arith.constant 1.000000e+00 : f32
    %239 = vector.broadcast %cst_110 : f32 to vector<8x256xf32>
    %240 = arith.addf %239, %238 : vector<8x256xf32>
    %241 = arith.divf %239, %240 : vector<8x256xf32>
    %242 = math.tanh %236 : vector<8x256xf32>
    %243 = vector.extract_strided_slice %241 {offsets = [0, 0], sizes = [8, 64], strides = [1, 1]} : vector<8x256xf32> to vector<8x64xf32>
    %244 = vector.extract_strided_slice %241 {offsets = [0, 64], sizes = [8, 64], strides = [1, 1]} : vector<8x256xf32> to vector<8x64xf32>
    %245 = vector.extract_strided_slice %242 {offsets = [0, 128], sizes = [8, 64], strides = [1, 1]} : vector<8x256xf32> to vector<8x64xf32>
    %246 = vector.extract_strided_slice %241 {offsets = [0, 192], sizes = [8, 64], strides = [1, 1]} : vector<8x256xf32> to vector<8x64xf32>
    %247 = arith.mulf %244, %230 : vector<8x64xf32>
    %248 = arith.mulf %243, %245 : vector<8x64xf32>
    %249 = arith.addf %247, %248 : vector<8x64xf32>
    %250 = math.tanh %249 : vector<8x64xf32>
    %251 = arith.mulf %246, %250 : vector<8x64xf32>
    %252 = vector.extract_strided_slice %122 {offsets = [48, 0], sizes = [8, 256], strides = [1, 1]} : vector<64x256xf32> to vector<8x256xf32>
    %253 = arith.truncf %251 : vector<8x64xf32> to vector<8x64xbf16>
    %cst_111 = arith.constant dense<0.000000e+00> : vector<8x256xf32>
    %254 = tpu.matmul %253, %125, %cst_111 {dimension_numbers = #tpu.dot_dimension_numbers<[1], [0], [0], [1], [0, 0, 1, 1], [], []>} : vector<8x64xbf16>, vector<64x256xbf16>, vector<8x256xf32> -> vector<8x256xf32>
    %255 = arith.addf %252, %254 : vector<8x256xf32>
    %256 = arith.negf %255 : vector<8x256xf32>
    %257 = math.exp %256 : vector<8x256xf32>
    %cst_112 = arith.constant 1.000000e+00 : f32
    %258 = vector.broadcast %cst_112 : f32 to vector<8x256xf32>
    %259 = arith.addf %258, %257 : vector<8x256xf32>
    %260 = arith.divf %258, %259 : vector<8x256xf32>
    %261 = math.tanh %255 : vector<8x256xf32>
    %262 = vector.extract_strided_slice %260 {offsets = [0, 0], sizes = [8, 64], strides = [1, 1]} : vector<8x256xf32> to vector<8x64xf32>
    %263 = vector.extract_strided_slice %260 {offsets = [0, 64], sizes = [8, 64], strides = [1, 1]} : vector<8x256xf32> to vector<8x64xf32>
    %264 = vector.extract_strided_slice %261 {offsets = [0, 128], sizes = [8, 64], strides = [1, 1]} : vector<8x256xf32> to vector<8x64xf32>
    %265 = vector.extract_strided_slice %260 {offsets = [0, 192], sizes = [8, 64], strides = [1, 1]} : vector<8x256xf32> to vector<8x64xf32>
    %266 = arith.mulf %263, %249 : vector<8x64xf32>
    %267 = arith.mulf %262, %264 : vector<8x64xf32>
    %268 = arith.addf %266, %267 : vector<8x64xf32>
    %269 = math.tanh %268 : vector<8x64xf32>
    %270 = arith.mulf %265, %269 : vector<8x64xf32>
    %271 = vector.extract_strided_slice %122 {offsets = [56, 0], sizes = [8, 256], strides = [1, 1]} : vector<64x256xf32> to vector<8x256xf32>
    %272 = arith.truncf %270 : vector<8x64xf32> to vector<8x64xbf16>
    %cst_113 = arith.constant dense<0.000000e+00> : vector<8x256xf32>
    %273 = tpu.matmul %272, %125, %cst_113 {dimension_numbers = #tpu.dot_dimension_numbers<[1], [0], [0], [1], [0, 0, 1, 1], [], []>} : vector<8x64xbf16>, vector<64x256xbf16>, vector<8x256xf32> -> vector<8x256xf32>
    %274 = arith.addf %271, %273 : vector<8x256xf32>
    %275 = arith.negf %274 : vector<8x256xf32>
    %276 = math.exp %275 : vector<8x256xf32>
    %cst_114 = arith.constant 1.000000e+00 : f32
    %277 = vector.broadcast %cst_114 : f32 to vector<8x256xf32>
    %278 = arith.addf %277, %276 : vector<8x256xf32>
    %279 = arith.divf %277, %278 : vector<8x256xf32>
    %280 = math.tanh %274 : vector<8x256xf32>
    %281 = vector.extract_strided_slice %279 {offsets = [0, 0], sizes = [8, 64], strides = [1, 1]} : vector<8x256xf32> to vector<8x64xf32>
    %282 = vector.extract_strided_slice %279 {offsets = [0, 64], sizes = [8, 64], strides = [1, 1]} : vector<8x256xf32> to vector<8x64xf32>
    %283 = vector.extract_strided_slice %280 {offsets = [0, 128], sizes = [8, 64], strides = [1, 1]} : vector<8x256xf32> to vector<8x64xf32>
    %284 = vector.extract_strided_slice %279 {offsets = [0, 192], sizes = [8, 64], strides = [1, 1]} : vector<8x256xf32> to vector<8x64xf32>
    %285 = arith.mulf %282, %268 : vector<8x64xf32>
    %286 = arith.mulf %281, %283 : vector<8x64xf32>
    %287 = arith.addf %285, %286 : vector<8x64xf32>
    %288 = math.tanh %287 : vector<8x64xf32>
    %289 = arith.mulf %284, %288 : vector<8x64xf32>
    %290 = vector.extract_strided_slice %289 {offsets = [0, 0], sizes = [2, 32], strides = [1, 1]} : vector<8x64xf32> to vector<2x32xf32>
    %c0_115 = arith.constant 0 : index
    %c0_116 = arith.constant 0 : index
    %c0_117 = arith.constant 0 : index
    %291 = vector.load %arg10[%c0_115, %c0_116, %c0_117] : memref<6x2x32xf32, #tpu.memory_space<vmem>>, vector<1x2x32xf32>
    %292 = vector.shape_cast %291 : vector<1x2x32xf32> to vector<2x32xf32>
    %293 = vector.shape_cast %290 : vector<2x32xf32> to vector<1x2x32xf32>
    tpu.vector_store %arg10[%c0_115, %c0_116, %c0_117], %293 {strides = array<i32>} : memref<6x2x32xf32, #tpu.memory_space<vmem>>, vector<1x2x32xf32>,
    %294 = vector.extract_strided_slice %289 {offsets = [0, 32], sizes = [2, 32], strides = [1, 1]} : vector<8x64xf32> to vector<2x32xf32>
    %c1_118 = arith.constant 1 : index
    %c0_119 = arith.constant 0 : index
    %c0_120 = arith.constant 0 : index
    %295 = vector.load %arg10[%c1_118, %c0_119, %c0_120] : memref<6x2x32xf32, #tpu.memory_space<vmem>>, vector<1x2x32xf32>
    %296 = vector.shape_cast %295 : vector<1x2x32xf32> to vector<2x32xf32>
    %297 = vector.shape_cast %294 : vector<2x32xf32> to vector<1x2x32xf32>
    tpu.vector_store %arg10[%c1_118, %c0_119, %c0_120], %297 {strides = array<i32>} : memref<6x2x32xf32, #tpu.memory_space<vmem>>, vector<1x2x32xf32>,
    %298 = vector.extract_strided_slice %287 {offsets = [0, 0], sizes = [2, 32], strides = [1, 1]} : vector<8x64xf32> to vector<2x32xf32>
    %c0_121 = arith.constant 0 : index
    %c0_122 = arith.constant 0 : index
    %c0_123 = arith.constant 0 : index
    %299 = vector.load %arg11[%c0_121, %c0_122, %c0_123] : memref<6x2x32xf32, #tpu.memory_space<vmem>>, vector<1x2x32xf32>
    %300 = vector.shape_cast %299 : vector<1x2x32xf32> to vector<2x32xf32>
    %301 = vector.shape_cast %298 : vector<2x32xf32> to vector<1x2x32xf32>
    tpu.vector_store %arg11[%c0_121, %c0_122, %c0_123], %301 {strides = array<i32>} : memref<6x2x32xf32, #tpu.memory_space<vmem>>, vector<1x2x32xf32>,
    %302 = vector.extract_strided_slice %287 {offsets = [0, 32], sizes = [2, 32], strides = [1, 1]} : vector<8x64xf32> to vector<2x32xf32>
    %c1_124 = arith.constant 1 : index
    %c0_125 = arith.constant 0 : index
    %c0_126 = arith.constant 0 : index
    %303 = vector.load %arg11[%c1_124, %c0_125, %c0_126] : memref<6x2x32xf32, #tpu.memory_space<vmem>>, vector<1x2x32xf32>
    %304 = vector.shape_cast %303 : vector<1x2x32xf32> to vector<2x32xf32>
    %305 = vector.shape_cast %302 : vector<2x32xf32> to vector<1x2x32xf32>
    tpu.vector_store %arg11[%c1_124, %c0_125, %c0_126], %305 {strides = array<i32>} : memref<6x2x32xf32, #tpu.memory_space<vmem>>, vector<1x2x32xf32>,
    %306 = tpu.concatenate %156, %175, %194, %213, %232, %251, %270, %289 in 0 : vector<8x64xf32>, vector<8x64xf32>, vector<8x64xf32>, vector<8x64xf32>, vector<8x64xf32>, vector<8x64xf32>, vector<8x64xf32>, vector<8x64xf32> -> vector<64x64xf32>
    %307 = tpu.concatenate %289, %270, %251, %232, %213, %194, %175, %156 in 0 : vector<8x64xf32>, vector<8x64xf32>, vector<8x64xf32>, vector<8x64xf32>, vector<8x64xf32>, vector<8x64xf32>, vector<8x64xf32>, vector<8x64xf32> -> vector<64x64xf32>
    %308 = tpu.concatenate %306, %307 in 1 : vector<64x64xf32>, vector<64x64xf32> -> vector<64x128xf32>
    %309 = arith.truncf %308 : vector<64x128xf32> to vector<64x128xbf16>
    %c0_127 = arith.constant 0 : index
    %c0_128 = arith.constant 0 : index
    %c0_129 = arith.constant 0 : index
    %310 = vector.load %arg2[%c0_127, %c0_128, %c0_129] : memref<2x128x256xbf16, #tpu.memory_space<vmem>>, vector<1x128x256xbf16>
    %311 = vector.shape_cast %310 : vector<1x128x256xbf16> to vector<128x256xbf16>
    %cst_130 = arith.constant dense<0.000000e+00> : vector<64x256xf32>
    %312 = tpu.matmul %309, %311, %cst_130 {dimension_numbers = #tpu.dot_dimension_numbers<[1], [0], [0], [1], [0, 0, 1, 1], [], []>} : vector<64x128xbf16>, vector<128x256xbf16>, vector<64x256xf32> -> vector<64x256xf32>
    %c1_131 = arith.constant 1 : index
    %c0_132 = arith.constant 0 : index
    %c0_133 = arith.constant 0 : index
    %313 = vector.load %arg4[%c1_131, %c0_132, %c0_133] : memref<3x1x256xf32, #tpu.memory_space<vmem>>, vector<1x1x256xf32>
    %314 = vector.shape_cast %313 : vector<1x1x256xf32> to vector<1x256xf32>
    %315 = vector.broadcast %314 : vector<1x256xf32> to vector<64x256xf32>
    %316 = arith.addf %312, %315 : vector<64x256xf32>
    %c1_134 = arith.constant 1 : index
    %c0_135 = arith.constant 0 : index
    %c0_136 = arith.constant 0 : index
    %317 = vector.load %arg3[%c1_134, %c0_135, %c0_136] : memref<3x64x256xbf16, #tpu.memory_space<vmem>>, vector<1x64x256xbf16>
    %318 = vector.shape_cast %317 : vector<1x64x256xbf16> to vector<64x256xbf16>
    %c2_137 = arith.constant 2 : index
    %c0_138 = arith.constant 0 : index
    %c0_139 = arith.constant 0 : index
    %319 = vector.load %arg5[%c2_137, %c0_138, %c0_139] : memref<6x2x32xf32, #tpu.memory_space<vmem>>, vector<1x2x32xf32>
    %320 = vector.shape_cast %319 : vector<1x2x32xf32> to vector<2x32xf32>
    %c3_140 = arith.constant 3 : index
    %c0_141 = arith.constant 0 : index
    %c0_142 = arith.constant 0 : index
    %321 = vector.load %arg5[%c3_140, %c0_141, %c0_142] : memref<6x2x32xf32, #tpu.memory_space<vmem>>, vector<1x2x32xf32>
    %322 = vector.shape_cast %321 : vector<1x2x32xf32> to vector<2x32xf32>
    %323 = tpu.concatenate %320, %322 in 1 : vector<2x32xf32>, vector<2x32xf32> -> vector<2x64xf32>
    %324 = tpu.concatenate %323, %123 in 0 : vector<2x64xf32>, vector<6x64xf32> -> vector<8x64xf32>
    %c2_143 = arith.constant 2 : index
    %c0_144 = arith.constant 0 : index
    %c0_145 = arith.constant 0 : index
    %325 = vector.load %arg6[%c2_143, %c0_144, %c0_145] : memref<6x2x32xf32, #tpu.memory_space<vmem>>, vector<1x2x32xf32>
    %326 = vector.shape_cast %325 : vector<1x2x32xf32> to vector<2x32xf32>
    %c3_146 = arith.constant 3 : index
    %c0_147 = arith.constant 0 : index
    %c0_148 = arith.constant 0 : index
    %327 = vector.load %arg6[%c3_146, %c0_147, %c0_148] : memref<6x2x32xf32, #tpu.memory_space<vmem>>, vector<1x2x32xf32>
    %328 = vector.shape_cast %327 : vector<1x2x32xf32> to vector<2x32xf32>
    %329 = tpu.concatenate %326, %328 in 1 : vector<2x32xf32>, vector<2x32xf32> -> vector<2x64xf32>
    %330 = tpu.concatenate %329, %123 in 0 : vector<2x64xf32>, vector<6x64xf32> -> vector<8x64xf32>
    %331 = vector.extract_strided_slice %316 {offsets = [0, 0], sizes = [8, 256], strides = [1, 1]} : vector<64x256xf32> to vector<8x256xf32>
    %332 = arith.truncf %324 : vector<8x64xf32> to vector<8x64xbf16>
    %cst_149 = arith.constant dense<0.000000e+00> : vector<8x256xf32>
    %333 = tpu.matmul %332, %318, %cst_149 {dimension_numbers = #tpu.dot_dimension_numbers<[1], [0], [0], [1], [0, 0, 1, 1], [], []>} : vector<8x64xbf16>, vector<64x256xbf16>, vector<8x256xf32> -> vector<8x256xf32>
    %334 = arith.addf %331, %333 : vector<8x256xf32>
    %335 = arith.negf %334 : vector<8x256xf32>
    %336 = math.exp %335 : vector<8x256xf32>
    %cst_150 = arith.constant 1.000000e+00 : f32
    %337 = vector.broadcast %cst_150 : f32 to vector<8x256xf32>
    %338 = arith.addf %337, %336 : vector<8x256xf32>
    %339 = arith.divf %337, %338 : vector<8x256xf32>
    %340 = math.tanh %334 : vector<8x256xf32>
    %341 = vector.extract_strided_slice %339 {offsets = [0, 0], sizes = [8, 64], strides = [1, 1]} : vector<8x256xf32> to vector<8x64xf32>
    %342 = vector.extract_strided_slice %339 {offsets = [0, 64], sizes = [8, 64], strides = [1, 1]} : vector<8x256xf32> to vector<8x64xf32>
    %343 = vector.extract_strided_slice %340 {offsets = [0, 128], sizes = [8, 64], strides = [1, 1]} : vector<8x256xf32> to vector<8x64xf32>
    %344 = vector.extract_strided_slice %339 {offsets = [0, 192], sizes = [8, 64], strides = [1, 1]} : vector<8x256xf32> to vector<8x64xf32>
    %345 = arith.mulf %342, %330 : vector<8x64xf32>
    %346 = arith.mulf %341, %343 : vector<8x64xf32>
    %347 = arith.addf %345, %346 : vector<8x64xf32>
    %348 = math.tanh %347 : vector<8x64xf32>
    %349 = arith.mulf %344, %348 : vector<8x64xf32>
    %350 = vector.extract_strided_slice %316 {offsets = [8, 0], sizes = [8, 256], strides = [1, 1]} : vector<64x256xf32> to vector<8x256xf32>
    %351 = arith.truncf %349 : vector<8x64xf32> to vector<8x64xbf16>
    %cst_151 = arith.constant dense<0.000000e+00> : vector<8x256xf32>
    %352 = tpu.matmul %351, %318, %cst_151 {dimension_numbers = #tpu.dot_dimension_numbers<[1], [0], [0], [1], [0, 0, 1, 1], [], []>} : vector<8x64xbf16>, vector<64x256xbf16>, vector<8x256xf32> -> vector<8x256xf32>
    %353 = arith.addf %350, %352 : vector<8x256xf32>
    %354 = arith.negf %353 : vector<8x256xf32>
    %355 = math.exp %354 : vector<8x256xf32>
    %cst_152 = arith.constant 1.000000e+00 : f32
    %356 = vector.broadcast %cst_152 : f32 to vector<8x256xf32>
    %357 = arith.addf %356, %355 : vector<8x256xf32>
    %358 = arith.divf %356, %357 : vector<8x256xf32>
    %359 = math.tanh %353 : vector<8x256xf32>
    %360 = vector.extract_strided_slice %358 {offsets = [0, 0], sizes = [8, 64], strides = [1, 1]} : vector<8x256xf32> to vector<8x64xf32>
    %361 = vector.extract_strided_slice %358 {offsets = [0, 64], sizes = [8, 64], strides = [1, 1]} : vector<8x256xf32> to vector<8x64xf32>
    %362 = vector.extract_strided_slice %359 {offsets = [0, 128], sizes = [8, 64], strides = [1, 1]} : vector<8x256xf32> to vector<8x64xf32>
    %363 = vector.extract_strided_slice %358 {offsets = [0, 192], sizes = [8, 64], strides = [1, 1]} : vector<8x256xf32> to vector<8x64xf32>
    %364 = arith.mulf %361, %347 : vector<8x64xf32>
    %365 = arith.mulf %360, %362 : vector<8x64xf32>
    %366 = arith.addf %364, %365 : vector<8x64xf32>
    %367 = math.tanh %366 : vector<8x64xf32>
    %368 = arith.mulf %363, %367 : vector<8x64xf32>
    %369 = vector.extract_strided_slice %316 {offsets = [16, 0], sizes = [8, 256], strides = [1, 1]} : vector<64x256xf32> to vector<8x256xf32>
    %370 = arith.truncf %368 : vector<8x64xf32> to vector<8x64xbf16>
    %cst_153 = arith.constant dense<0.000000e+00> : vector<8x256xf32>
    %371 = tpu.matmul %370, %318, %cst_153 {dimension_numbers = #tpu.dot_dimension_numbers<[1], [0], [0], [1], [0, 0, 1, 1], [], []>} : vector<8x64xbf16>, vector<64x256xbf16>, vector<8x256xf32> -> vector<8x256xf32>
    %372 = arith.addf %369, %371 : vector<8x256xf32>
    %373 = arith.negf %372 : vector<8x256xf32>
    %374 = math.exp %373 : vector<8x256xf32>
    %cst_154 = arith.constant 1.000000e+00 : f32
    %375 = vector.broadcast %cst_154 : f32 to vector<8x256xf32>
    %376 = arith.addf %375, %374 : vector<8x256xf32>
    %377 = arith.divf %375, %376 : vector<8x256xf32>
    %378 = math.tanh %372 : vector<8x256xf32>
    %379 = vector.extract_strided_slice %377 {offsets = [0, 0], sizes = [8, 64], strides = [1, 1]} : vector<8x256xf32> to vector<8x64xf32>
    %380 = vector.extract_strided_slice %377 {offsets = [0, 64], sizes = [8, 64], strides = [1, 1]} : vector<8x256xf32> to vector<8x64xf32>
    %381 = vector.extract_strided_slice %378 {offsets = [0, 128], sizes = [8, 64], strides = [1, 1]} : vector<8x256xf32> to vector<8x64xf32>
    %382 = vector.extract_strided_slice %377 {offsets = [0, 192], sizes = [8, 64], strides = [1, 1]} : vector<8x256xf32> to vector<8x64xf32>
    %383 = arith.mulf %380, %366 : vector<8x64xf32>
    %384 = arith.mulf %379, %381 : vector<8x64xf32>
    %385 = arith.addf %383, %384 : vector<8x64xf32>
    %386 = math.tanh %385 : vector<8x64xf32>
    %387 = arith.mulf %382, %386 : vector<8x64xf32>
    %388 = vector.extract_strided_slice %316 {offsets = [24, 0], sizes = [8, 256], strides = [1, 1]} : vector<64x256xf32> to vector<8x256xf32>
    %389 = arith.truncf %387 : vector<8x64xf32> to vector<8x64xbf16>
    %cst_155 = arith.constant dense<0.000000e+00> : vector<8x256xf32>
    %390 = tpu.matmul %389, %318, %cst_155 {dimension_numbers = #tpu.dot_dimension_numbers<[1], [0], [0], [1], [0, 0, 1, 1], [], []>} : vector<8x64xbf16>, vector<64x256xbf16>, vector<8x256xf32> -> vector<8x256xf32>
    %391 = arith.addf %388, %390 : vector<8x256xf32>
    %392 = arith.negf %391 : vector<8x256xf32>
    %393 = math.exp %392 : vector<8x256xf32>
    %cst_156 = arith.constant 1.000000e+00 : f32
    %394 = vector.broadcast %cst_156 : f32 to vector<8x256xf32>
    %395 = arith.addf %394, %393 : vector<8x256xf32>
    %396 = arith.divf %394, %395 : vector<8x256xf32>
    %397 = math.tanh %391 : vector<8x256xf32>
    %398 = vector.extract_strided_slice %396 {offsets = [0, 0], sizes = [8, 64], strides = [1, 1]} : vector<8x256xf32> to vector<8x64xf32>
    %399 = vector.extract_strided_slice %396 {offsets = [0, 64], sizes = [8, 64], strides = [1, 1]} : vector<8x256xf32> to vector<8x64xf32>
    %400 = vector.extract_strided_slice %397 {offsets = [0, 128], sizes = [8, 64], strides = [1, 1]} : vector<8x256xf32> to vector<8x64xf32>
    %401 = vector.extract_strided_slice %396 {offsets = [0, 192], sizes = [8, 64], strides = [1, 1]} : vector<8x256xf32> to vector<8x64xf32>
    %402 = arith.mulf %399, %385 : vector<8x64xf32>
    %403 = arith.mulf %398, %400 : vector<8x64xf32>
    %404 = arith.addf %402, %403 : vector<8x64xf32>
    %405 = math.tanh %404 : vector<8x64xf32>
    %406 = arith.mulf %401, %405 : vector<8x64xf32>
    %407 = vector.extract_strided_slice %316 {offsets = [32, 0], sizes = [8, 256], strides = [1, 1]} : vector<64x256xf32> to vector<8x256xf32>
    %408 = arith.truncf %406 : vector<8x64xf32> to vector<8x64xbf16>
    %cst_157 = arith.constant dense<0.000000e+00> : vector<8x256xf32>
    %409 = tpu.matmul %408, %318, %cst_157 {dimension_numbers = #tpu.dot_dimension_numbers<[1], [0], [0], [1], [0, 0, 1, 1], [], []>} : vector<8x64xbf16>, vector<64x256xbf16>, vector<8x256xf32> -> vector<8x256xf32>
    %410 = arith.addf %407, %409 : vector<8x256xf32>
    %411 = arith.negf %410 : vector<8x256xf32>
    %412 = math.exp %411 : vector<8x256xf32>
    %cst_158 = arith.constant 1.000000e+00 : f32
    %413 = vector.broadcast %cst_158 : f32 to vector<8x256xf32>
    %414 = arith.addf %413, %412 : vector<8x256xf32>
    %415 = arith.divf %413, %414 : vector<8x256xf32>
    %416 = math.tanh %410 : vector<8x256xf32>
    %417 = vector.extract_strided_slice %415 {offsets = [0, 0], sizes = [8, 64], strides = [1, 1]} : vector<8x256xf32> to vector<8x64xf32>
    %418 = vector.extract_strided_slice %415 {offsets = [0, 64], sizes = [8, 64], strides = [1, 1]} : vector<8x256xf32> to vector<8x64xf32>
    %419 = vector.extract_strided_slice %416 {offsets = [0, 128], sizes = [8, 64], strides = [1, 1]} : vector<8x256xf32> to vector<8x64xf32>
    %420 = vector.extract_strided_slice %415 {offsets = [0, 192], sizes = [8, 64], strides = [1, 1]} : vector<8x256xf32> to vector<8x64xf32>
    %421 = arith.mulf %418, %404 : vector<8x64xf32>
    %422 = arith.mulf %417, %419 : vector<8x64xf32>
    %423 = arith.addf %421, %422 : vector<8x64xf32>
    %424 = math.tanh %423 : vector<8x64xf32>
    %425 = arith.mulf %420, %424 : vector<8x64xf32>
    %426 = vector.extract_strided_slice %316 {offsets = [40, 0], sizes = [8, 256], strides = [1, 1]} : vector<64x256xf32> to vector<8x256xf32>
    %427 = arith.truncf %425 : vector<8x64xf32> to vector<8x64xbf16>
    %cst_159 = arith.constant dense<0.000000e+00> : vector<8x256xf32>
    %428 = tpu.matmul %427, %318, %cst_159 {dimension_numbers = #tpu.dot_dimension_numbers<[1], [0], [0], [1], [0, 0, 1, 1], [], []>} : vector<8x64xbf16>, vector<64x256xbf16>, vector<8x256xf32> -> vector<8x256xf32>
    %429 = arith.addf %426, %428 : vector<8x256xf32>
    %430 = arith.negf %429 : vector<8x256xf32>
    %431 = math.exp %430 : vector<8x256xf32>
    %cst_160 = arith.constant 1.000000e+00 : f32
    %432 = vector.broadcast %cst_160 : f32 to vector<8x256xf32>
    %433 = arith.addf %432, %431 : vector<8x256xf32>
    %434 = arith.divf %432, %433 : vector<8x256xf32>
    %435 = math.tanh %429 : vector<8x256xf32>
    %436 = vector.extract_strided_slice %434 {offsets = [0, 0], sizes = [8, 64], strides = [1, 1]} : vector<8x256xf32> to vector<8x64xf32>
    %437 = vector.extract_strided_slice %434 {offsets = [0, 64], sizes = [8, 64], strides = [1, 1]} : vector<8x256xf32> to vector<8x64xf32>
    %438 = vector.extract_strided_slice %435 {offsets = [0, 128], sizes = [8, 64], strides = [1, 1]} : vector<8x256xf32> to vector<8x64xf32>
    %439 = vector.extract_strided_slice %434 {offsets = [0, 192], sizes = [8, 64], strides = [1, 1]} : vector<8x256xf32> to vector<8x64xf32>
    %440 = arith.mulf %437, %423 : vector<8x64xf32>
    %441 = arith.mulf %436, %438 : vector<8x64xf32>
    %442 = arith.addf %440, %441 : vector<8x64xf32>
    %443 = math.tanh %442 : vector<8x64xf32>
    %444 = arith.mulf %439, %443 : vector<8x64xf32>
    %445 = vector.extract_strided_slice %316 {offsets = [48, 0], sizes = [8, 256], strides = [1, 1]} : vector<64x256xf32> to vector<8x256xf32>
    %446 = arith.truncf %444 : vector<8x64xf32> to vector<8x64xbf16>
    %cst_161 = arith.constant dense<0.000000e+00> : vector<8x256xf32>
    %447 = tpu.matmul %446, %318, %cst_161 {dimension_numbers = #tpu.dot_dimension_numbers<[1], [0], [0], [1], [0, 0, 1, 1], [], []>} : vector<8x64xbf16>, vector<64x256xbf16>, vector<8x256xf32> -> vector<8x256xf32>
    %448 = arith.addf %445, %447 : vector<8x256xf32>
    %449 = arith.negf %448 : vector<8x256xf32>
    %450 = math.exp %449 : vector<8x256xf32>
    %cst_162 = arith.constant 1.000000e+00 : f32
    %451 = vector.broadcast %cst_162 : f32 to vector<8x256xf32>
    %452 = arith.addf %451, %450 : vector<8x256xf32>
    %453 = arith.divf %451, %452 : vector<8x256xf32>
    %454 = math.tanh %448 : vector<8x256xf32>
    %455 = vector.extract_strided_slice %453 {offsets = [0, 0], sizes = [8, 64], strides = [1, 1]} : vector<8x256xf32> to vector<8x64xf32>
    %456 = vector.extract_strided_slice %453 {offsets = [0, 64], sizes = [8, 64], strides = [1, 1]} : vector<8x256xf32> to vector<8x64xf32>
    %457 = vector.extract_strided_slice %454 {offsets = [0, 128], sizes = [8, 64], strides = [1, 1]} : vector<8x256xf32> to vector<8x64xf32>
    %458 = vector.extract_strided_slice %453 {offsets = [0, 192], sizes = [8, 64], strides = [1, 1]} : vector<8x256xf32> to vector<8x64xf32>
    %459 = arith.mulf %456, %442 : vector<8x64xf32>
    %460 = arith.mulf %455, %457 : vector<8x64xf32>
    %461 = arith.addf %459, %460 : vector<8x64xf32>
    %462 = math.tanh %461 : vector<8x64xf32>
    %463 = arith.mulf %458, %462 : vector<8x64xf32>
    %464 = vector.extract_strided_slice %316 {offsets = [56, 0], sizes = [8, 256], strides = [1, 1]} : vector<64x256xf32> to vector<8x256xf32>
    %465 = arith.truncf %463 : vector<8x64xf32> to vector<8x64xbf16>
    %cst_163 = arith.constant dense<0.000000e+00> : vector<8x256xf32>
    %466 = tpu.matmul %465, %318, %cst_163 {dimension_numbers = #tpu.dot_dimension_numbers<[1], [0], [0], [1], [0, 0, 1, 1], [], []>} : vector<8x64xbf16>, vector<64x256xbf16>, vector<8x256xf32> -> vector<8x256xf32>
    %467 = arith.addf %464, %466 : vector<8x256xf32>
    %468 = arith.negf %467 : vector<8x256xf32>
    %469 = math.exp %468 : vector<8x256xf32>
    %cst_164 = arith.constant 1.000000e+00 : f32
    %470 = vector.broadcast %cst_164 : f32 to vector<8x256xf32>
    %471 = arith.addf %470, %469 : vector<8x256xf32>
    %472 = arith.divf %470, %471 : vector<8x256xf32>
    %473 = math.tanh %467 : vector<8x256xf32>
    %474 = vector.extract_strided_slice %472 {offsets = [0, 0], sizes = [8, 64], strides = [1, 1]} : vector<8x256xf32> to vector<8x64xf32>
    %475 = vector.extract_strided_slice %472 {offsets = [0, 64], sizes = [8, 64], strides = [1, 1]} : vector<8x256xf32> to vector<8x64xf32>
    %476 = vector.extract_strided_slice %473 {offsets = [0, 128], sizes = [8, 64], strides = [1, 1]} : vector<8x256xf32> to vector<8x64xf32>
    %477 = vector.extract_strided_slice %472 {offsets = [0, 192], sizes = [8, 64], strides = [1, 1]} : vector<8x256xf32> to vector<8x64xf32>
    %478 = arith.mulf %475, %461 : vector<8x64xf32>
    %479 = arith.mulf %474, %476 : vector<8x64xf32>
    %480 = arith.addf %478, %479 : vector<8x64xf32>
    %481 = math.tanh %480 : vector<8x64xf32>
    %482 = arith.mulf %477, %481 : vector<8x64xf32>
    %483 = vector.extract_strided_slice %482 {offsets = [0, 0], sizes = [2, 32], strides = [1, 1]} : vector<8x64xf32> to vector<2x32xf32>
    %c2_165 = arith.constant 2 : index
    %c0_166 = arith.constant 0 : index
    %c0_167 = arith.constant 0 : index
    %484 = vector.load %arg10[%c2_165, %c0_166, %c0_167] : memref<6x2x32xf32, #tpu.memory_space<vmem>>, vector<1x2x32xf32>
    %485 = vector.shape_cast %484 : vector<1x2x32xf32> to vector<2x32xf32>
    %486 = vector.shape_cast %483 : vector<2x32xf32> to vector<1x2x32xf32>
    tpu.vector_store %arg10[%c2_165, %c0_166, %c0_167], %486 {strides = array<i32>} : memref<6x2x32xf32, #tpu.memory_space<vmem>>, vector<1x2x32xf32>,
    %487 = vector.extract_strided_slice %482 {offsets = [0, 32], sizes = [2, 32], strides = [1, 1]} : vector<8x64xf32> to vector<2x32xf32>
    %c3_168 = arith.constant 3 : index
    %c0_169 = arith.constant 0 : index
    %c0_170 = arith.constant 0 : index
    %488 = vector.load %arg10[%c3_168, %c0_169, %c0_170] : memref<6x2x32xf32, #tpu.memory_space<vmem>>, vector<1x2x32xf32>
    %489 = vector.shape_cast %488 : vector<1x2x32xf32> to vector<2x32xf32>
    %490 = vector.shape_cast %487 : vector<2x32xf32> to vector<1x2x32xf32>
    tpu.vector_store %arg10[%c3_168, %c0_169, %c0_170], %490 {strides = array<i32>} : memref<6x2x32xf32, #tpu.memory_space<vmem>>, vector<1x2x32xf32>,
    %491 = vector.extract_strided_slice %480 {offsets = [0, 0], sizes = [2, 32], strides = [1, 1]} : vector<8x64xf32> to vector<2x32xf32>
    %c2_171 = arith.constant 2 : index
    %c0_172 = arith.constant 0 : index
    %c0_173 = arith.constant 0 : index
    %492 = vector.load %arg11[%c2_171, %c0_172, %c0_173] : memref<6x2x32xf32, #tpu.memory_space<vmem>>, vector<1x2x32xf32>
    %493 = vector.shape_cast %492 : vector<1x2x32xf32> to vector<2x32xf32>
    %494 = vector.shape_cast %491 : vector<2x32xf32> to vector<1x2x32xf32>
    tpu.vector_store %arg11[%c2_171, %c0_172, %c0_173], %494 {strides = array<i32>} : memref<6x2x32xf32, #tpu.memory_space<vmem>>, vector<1x2x32xf32>,
    %495 = vector.extract_strided_slice %480 {offsets = [0, 32], sizes = [2, 32], strides = [1, 1]} : vector<8x64xf32> to vector<2x32xf32>
    %c3_174 = arith.constant 3 : index
    %c0_175 = arith.constant 0 : index
    %c0_176 = arith.constant 0 : index
    %496 = vector.load %arg11[%c3_174, %c0_175, %c0_176] : memref<6x2x32xf32, #tpu.memory_space<vmem>>, vector<1x2x32xf32>
    %497 = vector.shape_cast %496 : vector<1x2x32xf32> to vector<2x32xf32>
    %498 = vector.shape_cast %495 : vector<2x32xf32> to vector<1x2x32xf32>
    tpu.vector_store %arg11[%c3_174, %c0_175, %c0_176], %498 {strides = array<i32>} : memref<6x2x32xf32, #tpu.memory_space<vmem>>, vector<1x2x32xf32>,
    %499 = tpu.concatenate %349, %368, %387, %406, %425, %444, %463, %482 in 0 : vector<8x64xf32>, vector<8x64xf32>, vector<8x64xf32>, vector<8x64xf32>, vector<8x64xf32>, vector<8x64xf32>, vector<8x64xf32>, vector<8x64xf32> -> vector<64x64xf32>
    %500 = tpu.concatenate %482, %463, %444, %425, %406, %387, %368, %349 in 0 : vector<8x64xf32>, vector<8x64xf32>, vector<8x64xf32>, vector<8x64xf32>, vector<8x64xf32>, vector<8x64xf32>, vector<8x64xf32>, vector<8x64xf32> -> vector<64x64xf32>
    %501 = tpu.concatenate %499, %500 in 1 : vector<64x64xf32>, vector<64x64xf32> -> vector<64x128xf32>
    %502 = arith.truncf %501 : vector<64x128xf32> to vector<64x128xbf16>
    %c1_177 = arith.constant 1 : index
    %c0_178 = arith.constant 0 : index
    %c0_179 = arith.constant 0 : index
    %503 = vector.load %arg2[%c1_177, %c0_178, %c0_179] : memref<2x128x256xbf16, #tpu.memory_space<vmem>>, vector<1x128x256xbf16>
    %504 = vector.shape_cast %503 : vector<1x128x256xbf16> to vector<128x256xbf16>
    %cst_180 = arith.constant dense<0.000000e+00> : vector<64x256xf32>
    %505 = tpu.matmul %502, %504, %cst_180 {dimension_numbers = #tpu.dot_dimension_numbers<[1], [0], [0], [1], [0, 0, 1, 1], [], []>} : vector<64x128xbf16>, vector<128x256xbf16>, vector<64x256xf32> -> vector<64x256xf32>
    %c2_181 = arith.constant 2 : index
    %c0_182 = arith.constant 0 : index
    %c0_183 = arith.constant 0 : index
    %506 = vector.load %arg4[%c2_181, %c0_182, %c0_183] : memref<3x1x256xf32, #tpu.memory_space<vmem>>, vector<1x1x256xf32>
    %507 = vector.shape_cast %506 : vector<1x1x256xf32> to vector<1x256xf32>
    %508 = vector.broadcast %507 : vector<1x256xf32> to vector<64x256xf32>
    %509 = arith.addf %505, %508 : vector<64x256xf32>
    %c2_184 = arith.constant 2 : index
    %c0_185 = arith.constant 0 : index
    %c0_186 = arith.constant 0 : index
    %510 = vector.load %arg3[%c2_184, %c0_185, %c0_186] : memref<3x64x256xbf16, #tpu.memory_space<vmem>>, vector<1x64x256xbf16>
    %511 = vector.shape_cast %510 : vector<1x64x256xbf16> to vector<64x256xbf16>
    %c4_187 = arith.constant 4 : index
    %c0_188 = arith.constant 0 : index
    %c0_189 = arith.constant 0 : index
    %512 = vector.load %arg5[%c4_187, %c0_188, %c0_189] : memref<6x2x32xf32, #tpu.memory_space<vmem>>, vector<1x2x32xf32>
    %513 = vector.shape_cast %512 : vector<1x2x32xf32> to vector<2x32xf32>
    %c5_190 = arith.constant 5 : index
    %c0_191 = arith.constant 0 : index
    %c0_192 = arith.constant 0 : index
    %514 = vector.load %arg5[%c5_190, %c0_191, %c0_192] : memref<6x2x32xf32, #tpu.memory_space<vmem>>, vector<1x2x32xf32>
    %515 = vector.shape_cast %514 : vector<1x2x32xf32> to vector<2x32xf32>
    %516 = tpu.concatenate %513, %515 in 1 : vector<2x32xf32>, vector<2x32xf32> -> vector<2x64xf32>
    %517 = tpu.concatenate %516, %123 in 0 : vector<2x64xf32>, vector<6x64xf32> -> vector<8x64xf32>
    %c4_193 = arith.constant 4 : index
    %c0_194 = arith.constant 0 : index
    %c0_195 = arith.constant 0 : index
    %518 = vector.load %arg6[%c4_193, %c0_194, %c0_195] : memref<6x2x32xf32, #tpu.memory_space<vmem>>, vector<1x2x32xf32>
    %519 = vector.shape_cast %518 : vector<1x2x32xf32> to vector<2x32xf32>
    %c5_196 = arith.constant 5 : index
    %c0_197 = arith.constant 0 : index
    %c0_198 = arith.constant 0 : index
    %520 = vector.load %arg6[%c5_196, %c0_197, %c0_198] : memref<6x2x32xf32, #tpu.memory_space<vmem>>, vector<1x2x32xf32>
    %521 = vector.shape_cast %520 : vector<1x2x32xf32> to vector<2x32xf32>
    %522 = tpu.concatenate %519, %521 in 1 : vector<2x32xf32>, vector<2x32xf32> -> vector<2x64xf32>
    %523 = tpu.concatenate %522, %123 in 0 : vector<2x64xf32>, vector<6x64xf32> -> vector<8x64xf32>
    %524 = vector.extract_strided_slice %509 {offsets = [0, 0], sizes = [8, 256], strides = [1, 1]} : vector<64x256xf32> to vector<8x256xf32>
    %525 = arith.truncf %517 : vector<8x64xf32> to vector<8x64xbf16>
    %cst_199 = arith.constant dense<0.000000e+00> : vector<8x256xf32>
    %526 = tpu.matmul %525, %511, %cst_199 {dimension_numbers = #tpu.dot_dimension_numbers<[1], [0], [0], [1], [0, 0, 1, 1], [], []>} : vector<8x64xbf16>, vector<64x256xbf16>, vector<8x256xf32> -> vector<8x256xf32>
    %527 = arith.addf %524, %526 : vector<8x256xf32>
    %528 = arith.negf %527 : vector<8x256xf32>
    %529 = math.exp %528 : vector<8x256xf32>
    %cst_200 = arith.constant 1.000000e+00 : f32
    %530 = vector.broadcast %cst_200 : f32 to vector<8x256xf32>
    %531 = arith.addf %530, %529 : vector<8x256xf32>
    %532 = arith.divf %530, %531 : vector<8x256xf32>
    %533 = math.tanh %527 : vector<8x256xf32>
    %534 = vector.extract_strided_slice %532 {offsets = [0, 0], sizes = [8, 64], strides = [1, 1]} : vector<8x256xf32> to vector<8x64xf32>
    %535 = vector.extract_strided_slice %532 {offsets = [0, 64], sizes = [8, 64], strides = [1, 1]} : vector<8x256xf32> to vector<8x64xf32>
    %536 = vector.extract_strided_slice %533 {offsets = [0, 128], sizes = [8, 64], strides = [1, 1]} : vector<8x256xf32> to vector<8x64xf32>
    %537 = vector.extract_strided_slice %532 {offsets = [0, 192], sizes = [8, 64], strides = [1, 1]} : vector<8x256xf32> to vector<8x64xf32>
    %538 = arith.mulf %535, %523 : vector<8x64xf32>
    %539 = arith.mulf %534, %536 : vector<8x64xf32>
    %540 = arith.addf %538, %539 : vector<8x64xf32>
    %541 = math.tanh %540 : vector<8x64xf32>
    %542 = arith.mulf %537, %541 : vector<8x64xf32>
    %543 = vector.extract_strided_slice %542 {offsets = [0, 32], sizes = [8, 32], strides = [1, 1]} : vector<8x64xf32> to vector<8x32xf32>
    %544 = vector.extract_strided_slice %509 {offsets = [8, 0], sizes = [8, 256], strides = [1, 1]} : vector<64x256xf32> to vector<8x256xf32>
    %545 = arith.truncf %542 : vector<8x64xf32> to vector<8x64xbf16>
    %cst_201 = arith.constant dense<0.000000e+00> : vector<8x256xf32>
    %546 = tpu.matmul %545, %511, %cst_201 {dimension_numbers = #tpu.dot_dimension_numbers<[1], [0], [0], [1], [0, 0, 1, 1], [], []>} : vector<8x64xbf16>, vector<64x256xbf16>, vector<8x256xf32> -> vector<8x256xf32>
    %547 = arith.addf %544, %546 : vector<8x256xf32>
    %548 = arith.negf %547 : vector<8x256xf32>
    %549 = math.exp %548 : vector<8x256xf32>
    %cst_202 = arith.constant 1.000000e+00 : f32
    %550 = vector.broadcast %cst_202 : f32 to vector<8x256xf32>
    %551 = arith.addf %550, %549 : vector<8x256xf32>
    %552 = arith.divf %550, %551 : vector<8x256xf32>
    %553 = math.tanh %547 : vector<8x256xf32>
    %554 = vector.extract_strided_slice %552 {offsets = [0, 0], sizes = [8, 64], strides = [1, 1]} : vector<8x256xf32> to vector<8x64xf32>
    %555 = vector.extract_strided_slice %552 {offsets = [0, 64], sizes = [8, 64], strides = [1, 1]} : vector<8x256xf32> to vector<8x64xf32>
    %556 = vector.extract_strided_slice %553 {offsets = [0, 128], sizes = [8, 64], strides = [1, 1]} : vector<8x256xf32> to vector<8x64xf32>
    %557 = vector.extract_strided_slice %552 {offsets = [0, 192], sizes = [8, 64], strides = [1, 1]} : vector<8x256xf32> to vector<8x64xf32>
    %558 = arith.mulf %555, %540 : vector<8x64xf32>
    %559 = arith.mulf %554, %556 : vector<8x64xf32>
    %560 = arith.addf %558, %559 : vector<8x64xf32>
    %561 = math.tanh %560 : vector<8x64xf32>
    %562 = arith.mulf %557, %561 : vector<8x64xf32>
    %563 = vector.extract_strided_slice %509 {offsets = [16, 0], sizes = [8, 256], strides = [1, 1]} : vector<64x256xf32> to vector<8x256xf32>
    %564 = arith.truncf %562 : vector<8x64xf32> to vector<8x64xbf16>
    %cst_203 = arith.constant dense<0.000000e+00> : vector<8x256xf32>
    %565 = tpu.matmul %564, %511, %cst_203 {dimension_numbers = #tpu.dot_dimension_numbers<[1], [0], [0], [1], [0, 0, 1, 1], [], []>} : vector<8x64xbf16>, vector<64x256xbf16>, vector<8x256xf32> -> vector<8x256xf32>
    %566 = arith.addf %563, %565 : vector<8x256xf32>
    %567 = arith.negf %566 : vector<8x256xf32>
    %568 = math.exp %567 : vector<8x256xf32>
    %cst_204 = arith.constant 1.000000e+00 : f32
    %569 = vector.broadcast %cst_204 : f32 to vector<8x256xf32>
    %570 = arith.addf %569, %568 : vector<8x256xf32>
    %571 = arith.divf %569, %570 : vector<8x256xf32>
    %572 = math.tanh %566 : vector<8x256xf32>
    %573 = vector.extract_strided_slice %571 {offsets = [0, 0], sizes = [8, 64], strides = [1, 1]} : vector<8x256xf32> to vector<8x64xf32>
    %574 = vector.extract_strided_slice %571 {offsets = [0, 64], sizes = [8, 64], strides = [1, 1]} : vector<8x256xf32> to vector<8x64xf32>
    %575 = vector.extract_strided_slice %572 {offsets = [0, 128], sizes = [8, 64], strides = [1, 1]} : vector<8x256xf32> to vector<8x64xf32>
    %576 = vector.extract_strided_slice %571 {offsets = [0, 192], sizes = [8, 64], strides = [1, 1]} : vector<8x256xf32> to vector<8x64xf32>
    %577 = arith.mulf %574, %560 : vector<8x64xf32>
    %578 = arith.mulf %573, %575 : vector<8x64xf32>
    %579 = arith.addf %577, %578 : vector<8x64xf32>
    %580 = math.tanh %579 : vector<8x64xf32>
    %581 = arith.mulf %576, %580 : vector<8x64xf32>
    %582 = vector.extract_strided_slice %509 {offsets = [24, 0], sizes = [8, 256], strides = [1, 1]} : vector<64x256xf32> to vector<8x256xf32>
    %583 = arith.truncf %581 : vector<8x64xf32> to vector<8x64xbf16>
    %cst_205 = arith.constant dense<0.000000e+00> : vector<8x256xf32>
    %584 = tpu.matmul %583, %511, %cst_205 {dimension_numbers = #tpu.dot_dimension_numbers<[1], [0], [0], [1], [0, 0, 1, 1], [], []>} : vector<8x64xbf16>, vector<64x256xbf16>, vector<8x256xf32> -> vector<8x256xf32>
    %585 = arith.addf %582, %584 : vector<8x256xf32>
    %586 = arith.negf %585 : vector<8x256xf32>
    %587 = math.exp %586 : vector<8x256xf32>
    %cst_206 = arith.constant 1.000000e+00 : f32
    %588 = vector.broadcast %cst_206 : f32 to vector<8x256xf32>
    %589 = arith.addf %588, %587 : vector<8x256xf32>
    %590 = arith.divf %588, %589 : vector<8x256xf32>
    %591 = math.tanh %585 : vector<8x256xf32>
    %592 = vector.extract_strided_slice %590 {offsets = [0, 0], sizes = [8, 64], strides = [1, 1]} : vector<8x256xf32> to vector<8x64xf32>
    %593 = vector.extract_strided_slice %590 {offsets = [0, 64], sizes = [8, 64], strides = [1, 1]} : vector<8x256xf32> to vector<8x64xf32>
    %594 = vector.extract_strided_slice %591 {offsets = [0, 128], sizes = [8, 64], strides = [1, 1]} : vector<8x256xf32> to vector<8x64xf32>
    %595 = vector.extract_strided_slice %590 {offsets = [0, 192], sizes = [8, 64], strides = [1, 1]} : vector<8x256xf32> to vector<8x64xf32>
    %596 = arith.mulf %593, %579 : vector<8x64xf32>
    %597 = arith.mulf %592, %594 : vector<8x64xf32>
    %598 = arith.addf %596, %597 : vector<8x64xf32>
    %599 = math.tanh %598 : vector<8x64xf32>
    %600 = arith.mulf %595, %599 : vector<8x64xf32>
    %601 = vector.extract_strided_slice %509 {offsets = [32, 0], sizes = [8, 256], strides = [1, 1]} : vector<64x256xf32> to vector<8x256xf32>
    %602 = arith.truncf %600 : vector<8x64xf32> to vector<8x64xbf16>
    %cst_207 = arith.constant dense<0.000000e+00> : vector<8x256xf32>
    %603 = tpu.matmul %602, %511, %cst_207 {dimension_numbers = #tpu.dot_dimension_numbers<[1], [0], [0], [1], [0, 0, 1, 1], [], []>} : vector<8x64xbf16>, vector<64x256xbf16>, vector<8x256xf32> -> vector<8x256xf32>
    %604 = arith.addf %601, %603 : vector<8x256xf32>
    %605 = arith.negf %604 : vector<8x256xf32>
    %606 = math.exp %605 : vector<8x256xf32>
    %cst_208 = arith.constant 1.000000e+00 : f32
    %607 = vector.broadcast %cst_208 : f32 to vector<8x256xf32>
    %608 = arith.addf %607, %606 : vector<8x256xf32>
    %609 = arith.divf %607, %608 : vector<8x256xf32>
    %610 = math.tanh %604 : vector<8x256xf32>
    %611 = vector.extract_strided_slice %609 {offsets = [0, 0], sizes = [8, 64], strides = [1, 1]} : vector<8x256xf32> to vector<8x64xf32>
    %612 = vector.extract_strided_slice %609 {offsets = [0, 64], sizes = [8, 64], strides = [1, 1]} : vector<8x256xf32> to vector<8x64xf32>
    %613 = vector.extract_strided_slice %610 {offsets = [0, 128], sizes = [8, 64], strides = [1, 1]} : vector<8x256xf32> to vector<8x64xf32>
    %614 = vector.extract_strided_slice %609 {offsets = [0, 192], sizes = [8, 64], strides = [1, 1]} : vector<8x256xf32> to vector<8x64xf32>
    %615 = arith.mulf %612, %598 : vector<8x64xf32>
    %616 = arith.mulf %611, %613 : vector<8x64xf32>
    %617 = arith.addf %615, %616 : vector<8x64xf32>
    %618 = math.tanh %617 : vector<8x64xf32>
    %619 = arith.mulf %614, %618 : vector<8x64xf32>
    %620 = vector.extract_strided_slice %509 {offsets = [40, 0], sizes = [8, 256], strides = [1, 1]} : vector<64x256xf32> to vector<8x256xf32>
    %621 = arith.truncf %619 : vector<8x64xf32> to vector<8x64xbf16>
    %cst_209 = arith.constant dense<0.000000e+00> : vector<8x256xf32>
    %622 = tpu.matmul %621, %511, %cst_209 {dimension_numbers = #tpu.dot_dimension_numbers<[1], [0], [0], [1], [0, 0, 1, 1], [], []>} : vector<8x64xbf16>, vector<64x256xbf16>, vector<8x256xf32> -> vector<8x256xf32>
    %623 = arith.addf %620, %622 : vector<8x256xf32>
    %624 = arith.negf %623 : vector<8x256xf32>
    %625 = math.exp %624 : vector<8x256xf32>
    %cst_210 = arith.constant 1.000000e+00 : f32
    %626 = vector.broadcast %cst_210 : f32 to vector<8x256xf32>
    %627 = arith.addf %626, %625 : vector<8x256xf32>
    %628 = arith.divf %626, %627 : vector<8x256xf32>
    %629 = math.tanh %623 : vector<8x256xf32>
    %630 = vector.extract_strided_slice %628 {offsets = [0, 0], sizes = [8, 64], strides = [1, 1]} : vector<8x256xf32> to vector<8x64xf32>
    %631 = vector.extract_strided_slice %628 {offsets = [0, 64], sizes = [8, 64], strides = [1, 1]} : vector<8x256xf32> to vector<8x64xf32>
    %632 = vector.extract_strided_slice %629 {offsets = [0, 128], sizes = [8, 64], strides = [1, 1]} : vector<8x256xf32> to vector<8x64xf32>
    %633 = vector.extract_strided_slice %628 {offsets = [0, 192], sizes = [8, 64], strides = [1, 1]} : vector<8x256xf32> to vector<8x64xf32>
    %634 = arith.mulf %631, %617 : vector<8x64xf32>
    %635 = arith.mulf %630, %632 : vector<8x64xf32>
    %636 = arith.addf %634, %635 : vector<8x64xf32>
    %637 = math.tanh %636 : vector<8x64xf32>
    %638 = arith.mulf %633, %637 : vector<8x64xf32>
    %639 = vector.extract_strided_slice %509 {offsets = [48, 0], sizes = [8, 256], strides = [1, 1]} : vector<64x256xf32> to vector<8x256xf32>
    %640 = arith.truncf %638 : vector<8x64xf32> to vector<8x64xbf16>
    %cst_211 = arith.constant dense<0.000000e+00> : vector<8x256xf32>
    %641 = tpu.matmul %640, %511, %cst_211 {dimension_numbers = #tpu.dot_dimension_numbers<[1], [0], [0], [1], [0, 0, 1, 1], [], []>} : vector<8x64xbf16>, vector<64x256xbf16>, vector<8x256xf32> -> vector<8x256xf32>
    %642 = arith.addf %639, %641 : vector<8x256xf32>
    %643 = arith.negf %642 : vector<8x256xf32>
    %644 = math.exp %643 : vector<8x256xf32>
    %cst_212 = arith.constant 1.000000e+00 : f32
    %645 = vector.broadcast %cst_212 : f32 to vector<8x256xf32>
    %646 = arith.addf %645, %644 : vector<8x256xf32>
    %647 = arith.divf %645, %646 : vector<8x256xf32>
    %648 = math.tanh %642 : vector<8x256xf32>
    %649 = vector.extract_strided_slice %647 {offsets = [0, 0], sizes = [8, 64], strides = [1, 1]} : vector<8x256xf32> to vector<8x64xf32>
    %650 = vector.extract_strided_slice %647 {offsets = [0, 64], sizes = [8, 64], strides = [1, 1]} : vector<8x256xf32> to vector<8x64xf32>
    %651 = vector.extract_strided_slice %648 {offsets = [0, 128], sizes = [8, 64], strides = [1, 1]} : vector<8x256xf32> to vector<8x64xf32>
    %652 = vector.extract_strided_slice %647 {offsets = [0, 192], sizes = [8, 64], strides = [1, 1]} : vector<8x256xf32> to vector<8x64xf32>
    %653 = arith.mulf %650, %636 : vector<8x64xf32>
    %654 = arith.mulf %649, %651 : vector<8x64xf32>
    %655 = arith.addf %653, %654 : vector<8x64xf32>
    %656 = math.tanh %655 : vector<8x64xf32>
    %657 = arith.mulf %652, %656 : vector<8x64xf32>
    %658 = vector.extract_strided_slice %509 {offsets = [56, 0], sizes = [8, 256], strides = [1, 1]} : vector<64x256xf32> to vector<8x256xf32>
    %659 = arith.truncf %657 : vector<8x64xf32> to vector<8x64xbf16>
    %cst_213 = arith.constant dense<0.000000e+00> : vector<8x256xf32>
    %660 = tpu.matmul %659, %511, %cst_213 {dimension_numbers = #tpu.dot_dimension_numbers<[1], [0], [0], [1], [0, 0, 1, 1], [], []>} : vector<8x64xbf16>, vector<64x256xbf16>, vector<8x256xf32> -> vector<8x256xf32>
    %661 = arith.addf %658, %660 : vector<8x256xf32>
    %662 = arith.negf %661 : vector<8x256xf32>
    %663 = math.exp %662 : vector<8x256xf32>
    %cst_214 = arith.constant 1.000000e+00 : f32
    %664 = vector.broadcast %cst_214 : f32 to vector<8x256xf32>
    %665 = arith.addf %664, %663 : vector<8x256xf32>
    %666 = arith.divf %664, %665 : vector<8x256xf32>
    %667 = math.tanh %661 : vector<8x256xf32>
    %668 = vector.extract_strided_slice %666 {offsets = [0, 0], sizes = [8, 64], strides = [1, 1]} : vector<8x256xf32> to vector<8x64xf32>
    %669 = vector.extract_strided_slice %666 {offsets = [0, 64], sizes = [8, 64], strides = [1, 1]} : vector<8x256xf32> to vector<8x64xf32>
    %670 = vector.extract_strided_slice %667 {offsets = [0, 128], sizes = [8, 64], strides = [1, 1]} : vector<8x256xf32> to vector<8x64xf32>
    %671 = vector.extract_strided_slice %666 {offsets = [0, 192], sizes = [8, 64], strides = [1, 1]} : vector<8x256xf32> to vector<8x64xf32>
    %672 = arith.mulf %669, %655 : vector<8x64xf32>
    %673 = arith.mulf %668, %670 : vector<8x64xf32>
    %674 = arith.addf %672, %673 : vector<8x64xf32>
    %675 = math.tanh %674 : vector<8x64xf32>
    %676 = arith.mulf %671, %675 : vector<8x64xf32>
    %677 = vector.extract_strided_slice %676 {offsets = [0, 0], sizes = [2, 32], strides = [1, 1]} : vector<8x64xf32> to vector<2x32xf32>
    %c4_215 = arith.constant 4 : index
    %c0_216 = arith.constant 0 : index
    %c0_217 = arith.constant 0 : index
    %678 = vector.load %arg10[%c4_215, %c0_216, %c0_217] : memref<6x2x32xf32, #tpu.memory_space<vmem>>, vector<1x2x32xf32>
    %679 = vector.shape_cast %678 : vector<1x2x32xf32> to vector<2x32xf32>
    %680 = vector.shape_cast %677 : vector<2x32xf32> to vector<1x2x32xf32>
    tpu.vector_store %arg10[%c4_215, %c0_216, %c0_217], %680 {strides = array<i32>} : memref<6x2x32xf32, #tpu.memory_space<vmem>>, vector<1x2x32xf32>,
    %681 = vector.extract_strided_slice %676 {offsets = [0, 32], sizes = [2, 32], strides = [1, 1]} : vector<8x64xf32> to vector<2x32xf32>
    %c5_218 = arith.constant 5 : index
    %c0_219 = arith.constant 0 : index
    %c0_220 = arith.constant 0 : index
    %682 = vector.load %arg10[%c5_218, %c0_219, %c0_220] : memref<6x2x32xf32, #tpu.memory_space<vmem>>, vector<1x2x32xf32>
    %683 = vector.shape_cast %682 : vector<1x2x32xf32> to vector<2x32xf32>
    %684 = vector.shape_cast %681 : vector<2x32xf32> to vector<1x2x32xf32>
    tpu.vector_store %arg10[%c5_218, %c0_219, %c0_220], %684 {strides = array<i32>} : memref<6x2x32xf32, #tpu.memory_space<vmem>>, vector<1x2x32xf32>,
    %685 = vector.extract_strided_slice %674 {offsets = [0, 0], sizes = [2, 32], strides = [1, 1]} : vector<8x64xf32> to vector<2x32xf32>
    %c4_221 = arith.constant 4 : index
    %c0_222 = arith.constant 0 : index
    %c0_223 = arith.constant 0 : index
    %686 = vector.load %arg11[%c4_221, %c0_222, %c0_223] : memref<6x2x32xf32, #tpu.memory_space<vmem>>, vector<1x2x32xf32>
    %687 = vector.shape_cast %686 : vector<1x2x32xf32> to vector<2x32xf32>
    %688 = vector.shape_cast %685 : vector<2x32xf32> to vector<1x2x32xf32>
    tpu.vector_store %arg11[%c4_221, %c0_222, %c0_223], %688 {strides = array<i32>} : memref<6x2x32xf32, #tpu.memory_space<vmem>>, vector<1x2x32xf32>,
    %689 = vector.extract_strided_slice %674 {offsets = [0, 32], sizes = [2, 32], strides = [1, 1]} : vector<8x64xf32> to vector<2x32xf32>
    %c5_224 = arith.constant 5 : index
    %c0_225 = arith.constant 0 : index
    %c0_226 = arith.constant 0 : index
    %690 = vector.load %arg11[%c5_224, %c0_225, %c0_226] : memref<6x2x32xf32, #tpu.memory_space<vmem>>, vector<1x2x32xf32>
    %691 = vector.shape_cast %690 : vector<1x2x32xf32> to vector<2x32xf32>
    %692 = vector.shape_cast %689 : vector<2x32xf32> to vector<1x2x32xf32>
    tpu.vector_store %arg11[%c5_224, %c0_225, %c0_226], %692 {strides = array<i32>} : memref<6x2x32xf32, #tpu.memory_space<vmem>>, vector<1x2x32xf32>,
    %693 = vector.extract_strided_slice %676 {offsets = [0, 0], sizes = [8, 32], strides = [1, 1]} : vector<8x64xf32> to vector<8x32xf32>
    %694 = tpu.concatenate %693, %543 in 1 : vector<8x32xf32>, vector<8x32xf32> -> vector<8x64xf32>
    %695 = arith.truncf %694 : vector<8x64xf32> to vector<8x64xbf16>
    %c0_227 = arith.constant 0 : index
    %c0_228 = arith.constant 0 : index
    %696 = vector.load %arg7[%c0_227, %c0_228] : memref<64x5xbf16, #tpu.memory_space<vmem>>, vector<64x5xbf16>
    %cst_229 = arith.constant dense<0.000000e+00> : vector<8x5xf32>
    %697 = tpu.matmul %695, %696, %cst_229 {dimension_numbers = #tpu.dot_dimension_numbers<[1], [0], [0], [1], [0, 0, 1, 1], [], []>} : vector<8x64xbf16>, vector<64x5xbf16>, vector<8x5xf32> -> vector<8x5xf32>
    %c0_230 = arith.constant 0 : index
    %c0_231 = arith.constant 0 : index
    %698 = vector.load %arg8[%c0_230, %c0_231] : memref<1x5xf32, #tpu.memory_space<vmem>>, vector<1x5xf32>
    %699 = vector.broadcast %698 : vector<1x5xf32> to vector<8x5xf32>
    %700 = arith.addf %697, %699 : vector<8x5xf32>
    %701 = math.tanh %700 : vector<8x5xf32>
    %702 = vector.extract_strided_slice %701 {offsets = [0, 0], sizes = [2, 5], strides = [1, 1]} : vector<8x5xf32> to vector<2x5xf32>
    %c0_232 = arith.constant 0 : index
    %c0_233 = arith.constant 0 : index
    %703 = vector.load %arg9[%c0_232, %c0_233] : memref<2x5xf32, #tpu.memory_space<vmem>>, vector<2x5xf32>
    tpu.vector_store %arg9[%c0_232, %c0_233], %702 {strides = array<i32>} : memref<2x5xf32, #tpu.memory_space<vmem>>, vector<2x5xf32>,
    return
  }
}

</mosaic_0001>

<llo_original>
// kernel: rnn_model_forward.1
$region0: #{rnn_model_forward.1}
  #allocation0 [shape = 'u32[]', space=smem, size = 0x4, offset = 0x4, fixed_abs, tag = 'smem constant byte address 0x4 - core index']
  #allocation1 [shape = 'u32[72,128]{1,0:T(1,128)}', space=vmem, size = 0x9000, scoped, tag = 'internal scratch']
  #allocation2 [shape = 'f32[64,256]{1,0:T(8,128)}', space=vmem, size = 0x10000, scoped, tag = 'scratch operand']
  %s0 = inlined_call_operand.vmem [shape: s32[2,8], index: 0, kind: input, shape index: {}]
  %s1 = inlined_call_operand.hbm [shape: bf16[256,256], index: 1, kind: input, shape index: {}]
  %s2 = inlined_call_operand.hbm [shape: bf16[2,128,256], index: 2, kind: input, shape index: {}]
  %s3 = inlined_call_operand.hbm [shape: bf16[3,64,256], index: 3, kind: input, shape index: {}]
  %s4 = inlined_call_operand.vmem [shape: f32[3,1,256], index: 4, kind: input, shape index: {}]
  %s5 = inlined_call_operand.vmem [shape: f32[6,2,32], index: 5, kind: input, shape index: {}]
  %s6 = inlined_call_operand.vmem [shape: f32[6,2,32], index: 6, kind: input, shape index: {}]
  %s7 = inlined_call_operand.vmem [shape: bf16[64,5], index: 7, kind: input, shape index: {}]
  %s8 = inlined_call_operand.vmem [shape: f32[1,5], index: 8, kind: input, shape index: {}]
  %s9 = inlined_call_operand.hbm [shape: f32[2,5], index: 9, kind: output, shape index: {0}]
  %s10 = inlined_call_operand.hbm [shape: f32[6,2,32], index: 10, kind: output, shape index: {1}]
  %s11 = inlined_call_operand.hbm [shape: f32[6,2,32], index: 11, kind: output, shape index: {2}]
  %12 = xla_tuple %s9, %s10, %s11
  %s13 = sld [smem:[#allocation0]]
  $region78: #{rnn_model_forward.1} parent=0
    _
  %s15 = ssub.s32 1, %s13
  %s16 = scalar_select 0, %s15, %s13
  $region1: #{rnn_model_forward.1} parent=0
    #allocation3 [shape = 'u8[1024]{0}', space=smem, size = 0x400, scoped, tag = 'input window, operand 0, single buffered']
    #allocation4 [shape = 's32[1]{0}', space=sflag, size = 0x4, scoped, tag = 'scoped memory for rnn_model_forward.1']
    #allocation5 [shape = 's32[1]{0}', space=sflag, size = 0x4, scoped, tag = 'scoped memory for rnn_model_forward.1']
    #allocation6 [shape = 's32[1]{0}', space=sflag, size = 0x4, scoped, tag = 'scoped memory for rnn_model_forward.1']
    #allocation7 [shape = 'u8[131072]{0}', space=vmem, size = 0x20000, scoped, tag = 'input window, operand 1, single buffered']
    #allocation8 [shape = 'u8[131072]{0}', space=vmem, size = 0x20000, scoped, tag = 'input window, operand 2, single buffered']
    #allocation9 [shape = 's32[1]{0}', space=sflag, size = 0x4, scoped, tag = 'scoped memory for rnn_model_forward.1']
    #allocation10 [shape = 'u8[98304]{0}', space=vmem, size = 0x18000, scoped, tag = 'input window, operand 3, single buffered']
    #allocation11 [shape = 'u8[1024]{0}', space=vmem, size = 0x400, scoped, tag = 'output window, operand 0, single buffered']
    #allocation12 [shape = 'u8[6144]{0}', space=vmem, size = 0x1800, scoped, tag = 'output window, operand 1, single buffered']
    #allocation13 [shape = 's32[1]{0}', space=sflag, size = 0x4, scoped, tag = 'scoped memory for rnn_model_forward.1']
    #allocation14 [shape = 'u8[6144]{0}', space=vmem, size = 0x1800, scoped, tag = 'output window, operand 2, single buffered']
    %17 = vsyncpa [#allocation6], 0
    %18 = vsyncpa [#allocation4], 0
    %19 = vsyncpa [#allocation9], 0
    %20 = vsyncpa [#allocation5], 0
    %21 = vsyncpa [#allocation13], 0
    // Predicated region
    $region2: #{rnn_model_forward.1} parent=1 // pred_check
      _
    $region3: #{rnn_model_forward.1} parent=1 // pred_check_branch
      %23 = sbr.rel (0) target = $region5
    $region4: #{rnn_model_forward.1} parent=1 // pred_region
      %25 = vsyncadd [#allocation6], 0
      %s27 = sshll.u32 %s0, 4
      %s28 = int_to_ptr.vmem [resolvable:$true] %s27
      %30 = dma.vmem_to_smem %s28, 32, [#allocation3], [#allocation6]
    $region5: #{rnn_model_forward.1} parent=1 // pred_fallthru
      _
    // Predicated region
    $region6: #{rnn_model_forward.1} parent=1 // pred_check
      _
    $region7: #{rnn_model_forward.1} parent=1 // pred_check_branch
      %32 = sbr.rel (0) target = $region9
    $region8: #{rnn_model_forward.1} parent=1 // pred_region
      %34 = vsyncadd [#allocation4], 0
      %s35 = sshll.u32 %s1, 4
      %s36 = int_to_ptr.hbm [resolvable:$true] %s35
      %s37 = sshll.u32 [#allocation7], 4
      %s38 = int_to_ptr.vmem [resolvable:$true] %s37
      %43 = dma.hbm_to_vmem [thread:$0]  %s36, 4096, %s38, [#allocation4], 128, 128, 8
    $region9: #{rnn_model_forward.1} parent=1 // pred_fallthru
      _
    // Predicated region
    $region10: #{rnn_model_forward.1} parent=1 // pred_check
      _
    $region11: #{rnn_model_forward.1} parent=1 // pred_check_branch
      %45 = sbr.rel (0) target = $region13
    $region12: #{rnn_model_forward.1} parent=1 // pred_region
      %47 = vsyncadd [#allocation9], 0
      %s48 = sshll.u32 %s2, 4
      %s49 = int_to_ptr.hbm [resolvable:$true] %s48
      %s50 = sshll.u32 [#allocation8], 4
      %s51 = int_to_ptr.vmem [resolvable:$true] %s50
      %56 = dma.hbm_to_vmem [thread:$0]  %s49, 4096, %s51, [#allocation9], 128, 128, 8
    $region13: #{rnn_model_forward.1} parent=1 // pred_fallthru
      _
    // Predicated region
    $region14: #{rnn_model_forward.1} parent=1 // pred_check
      _
    $region15: #{rnn_model_forward.1} parent=1 // pred_check_branch
      %58 = sbr.rel (0) target = $region17
    $region16: #{rnn_model_forward.1} parent=1 // pred_region
      %60 = vsyncadd [#allocation9], 0
      %s61 = sshll.u32 %s3, 4
      %s62 = int_to_ptr.hbm [resolvable:$true] %s61
      %s63 = sshll.u32 [#allocation10], 4
      %s64 = int_to_ptr.vmem [resolvable:$true] %s63
      %69 = dma.hbm_to_vmem [thread:$0]  %s62, 3072, %s64, [#allocation9], 128, 128, 8
    $region17: #{rnn_model_forward.1} parent=1 // pred_fallthru
      _
    // Predicated region
    $region18: #{rnn_model_forward.1} parent=1 // pred_check
      _
    $region19: #{rnn_model_forward.1} parent=1 // pred_check_branch
      %71 = sbr.rel (0) target = $region21
    $region20: #{rnn_model_forward.1} parent=1 // pred_region
      _
    $region21: #{rnn_model_forward.1} parent=1 // pred_fallthru
      _
    // Predicated region
    $region22: #{rnn_model_forward.1} parent=1 // pred_check
      _
    $region23: #{rnn_model_forward.1} parent=1 // pred_check_branch
      %73 = sbr.rel (0) target = $region25
    $region24: #{rnn_model_forward.1} parent=1 // pred_region
      _
    $region25: #{rnn_model_forward.1} parent=1 // pred_fallthru
      _
    // Predicated region
    $region26: #{rnn_model_forward.1} parent=1 // pred_check
      _
    $region27: #{rnn_model_forward.1} parent=1 // pred_check_branch
      %75 = sbr.rel (0) target = $region29
    $region28: #{rnn_model_forward.1} parent=1 // pred_region
      _
    $region29: #{rnn_model_forward.1} parent=1 // pred_fallthru
      _
    // Predicated region
    $region30: #{rnn_model_forward.1} parent=1 // pred_check
      _
    $region31: #{rnn_model_forward.1} parent=1 // pred_check_branch
      %77 = sbr.rel (0) target = $region33
    $region32: #{rnn_model_forward.1} parent=1 // pred_region
      _
    $region33: #{rnn_model_forward.1} parent=1 // pred_fallthru
      _
    // Predicated region
    $region34: #{rnn_model_forward.1} parent=1 // pred_check
      _
    $region35: #{rnn_model_forward.1} parent=1 // pred_check_branch
      %79 = sbr.rel (0) target = $region37
    $region36: #{rnn_model_forward.1} parent=1 // pred_region
      _
    $region37: #{rnn_model_forward.1} parent=1 // pred_fallthru
      _
    // Predicated region
    $region38: #{rnn_model_forward.1} parent=1 // pred_check
      _
    $region39: #{rnn_model_forward.1} parent=1 // pred_check_branch
      %81 = sbr.rel (0) target = $region41
    $region40: #{rnn_model_forward.1} parent=1 // pred_region
      %83 = dma.done [#allocation6], 32
    $region41: #{rnn_model_forward.1} parent=1 // pred_fallthru
      _
    // Predicated region
    $region42: #{rnn_model_forward.1} parent=1 // pred_check
      _
    $region43: #{rnn_model_forward.1} parent=1 // pred_check_branch
      %85 = sbr.rel (0) target = $region45
    $region44: #{rnn_model_forward.1} parent=1 // pred_region
      %87 = dma.done [#allocation4], 4096
    $region45: #{rnn_model_forward.1} parent=1 // pred_fallthru
      _
    // Predicated region
    $region46: #{rnn_model_forward.1} parent=1 // pred_check
      _
    $region47: #{rnn_model_forward.1} parent=1 // pred_check_branch
      %89 = sbr.rel (0) target = $region49
    $region48: #{rnn_model_forward.1} parent=1 // pred_region
      %91 = dma.done [#allocation9], 4096
    $region49: #{rnn_model_forward.1} parent=1 // pred_fallthru
      _
    // Predicated region
    $region50: #{rnn_model_forward.1} parent=1 // pred_check
      _
    $region51: #{rnn_model_forward.1} parent=1 // pred_check_branch
      %93 = sbr.rel (0) target = $region53
    $region52: #{rnn_model_forward.1} parent=1 // pred_region
      %95 = dma.done [#allocation9], 3072
    $region53: #{rnn_model_forward.1} parent=1 // pred_fallthru
      _
    %96 = sfence
    %98 = vst [vmem:[#allocation2] sm:$0xff] 0.0
    %99 = vst [vmem:[#allocation2 + $0x8] sm:$0xff] 0.0
    %100 = vst [vmem:[#allocation2 + $0x10] sm:$0xff] 0.0
    %101 = vst [vmem:[#allocation2 + $0x18] sm:$0xff] 0.0
    %102 = vst [vmem:[#allocation2 + $0x20] sm:$0xff] 0.0
    %103 = vst [vmem:[#allocation2 + $0x28] sm:$0xff] 0.0
    %104 = vst [vmem:[#allocation2 + $0x30] sm:$0xff] 0.0
    %105 = vst [vmem:[#allocation2 + $0x38] sm:$0xff] 0.0
    %106 = vst [vmem:[#allocation2 + $0x40] sm:$0xff] 0.0
    %107 = vst [vmem:[#allocation2 + $0x48] sm:$0xff] 0.0
    %108 = vst [vmem:[#allocation2 + $0x50] sm:$0xff] 0.0
    %109 = vst [vmem:[#allocation2 + $0x58] sm:$0xff] 0.0
    %110 = vst [vmem:[#allocation2 + $0x60] sm:$0xff] 0.0
    %111 = vst [vmem:[#allocation2 + $0x68] sm:$0xff] 0.0
    %112 = vst [vmem:[#allocation2 + $0x70] sm:$0xff] 0.0
    %113 = vst [vmem:[#allocation2 + $0x78] sm:$0xff] 0.0
    %v114 = vlaneseq
    %v115 = vand.u32 %v114, 127
    %s116 = sld [smem:[#allocation3]]
    %v117 = vstv %s116
    %vm118 = vcmp.eq.s32.totalorder %v115, %v117
    %v119 = vsel %vm118, 1, 0
    %v120 = vcvt.s32.f32 %v119
    %121 = vst [vmem:[#allocation2] sm:$0x1] %v120
    %122 = vst [vmem:[#allocation2 + $0x78] sm:$0x1] %v120
    %s123 = sld [smem:[#allocation3 + $0x80]]
    %v124 = vstv %s123
    %vm125 = vcmp.eq.s32.totalorder %v115, %v124
    %v126 = vsel %vm125, 1, 0
    %v127 = vcvt.s32.f32 %v126
    %128 = vst [vmem:[#allocation2 + $0x1] sm:$0x1] %v127
    %129 = vst [vmem:[#allocation2 + $0x79] sm:$0x1] %v127
    %s130 = sld [smem:[#allocation3 + $0x1]]
    %v131 = vstv %s130
    %vm132 = vcmp.eq.s32.totalorder %v115, %v131
    %v133 = vsel %vm132, 1, 0
    %v134 = vcvt.s32.f32 %v133
    %135 = vst [vmem:[#allocation2 + $0x10] sm:$0x1] %v134
    %136 = vst [vmem:[#allocation2 + $0x68] sm:$0x1] %v134
    %s137 = sld [smem:[#allocation3 + $0x81]]
    %v138 = vstv %s137
    %vm139 = vcmp.eq.s32.totalorder %v115, %v138
    %v140 = vsel %vm139, 1, 0
    %v141 = vcvt.s32.f32 %v140
    %142 = vst [vmem:[#allocation2 + $0x11] sm:$0x1] %v141
    %143 = vst [vmem:[#allocation2 + $0x69] sm:$0x1] %v141
    %s144 = sld [smem:[#allocation3 + $0x2]]
    %v145 = vstv %s144
    %vm146 = vcmp.eq.s32.totalorder %v115, %v145
    %v147 = vsel %vm146, 1, 0
    %v148 = vcvt.s32.f32 %v147
    %149 = vst [vmem:[#allocation2 + $0x20] sm:$0x1] %v148
    %150 = vst [vmem:[#allocation2 + $0x58] sm:$0x1] %v148
    %s151 = sld [smem:[#allocation3 + $0x82]]
    %v152 = vstv %s151
    %vm153 = vcmp.eq.s32.totalorder %v115, %v152
    %v154 = vsel %vm153, 1, 0
    %v155 = vcvt.s32.f32 %v154
    %156 = vst [vmem:[#allocation2 + $0x21] sm:$0x1] %v155
    %157 = vst [vmem:[#allocation2 + $0x59] sm:$0x1] %v155
    %s158 = sld [smem:[#allocation3 + $0x3]]
    %v159 = vstv %s158
    %vm160 = vcmp.eq.s32.totalorder %v115, %v159
    %v161 = vsel %vm160, 1, 0
    %v162 = vcvt.s32.f32 %v161
    %163 = vst [vmem:[#allocation2 + $0x30] sm:$0x1] %v162
    %164 = vst [vmem:[#allocation2 + $0x48] sm:$0x1] %v162
    %s165 = sld [smem:[#allocation3 + $0x83]]
    %v166 = vstv %s165
    %vm167 = vcmp.eq.s32.totalorder %v115, %v166
    %v168 = vsel %vm167, 1, 0
    %v169 = vcvt.s32.f32 %v168
    %170 = vst [vmem:[#allocation2 + $0x31] sm:$0x1] %v169
    %171 = vst [vmem:[#allocation2 + $0x49] sm:$0x1] %v169
    %s172 = sld [smem:[#allocation3 + $0x4]]
    %v173 = vstv %s172
    %vm174 = vcmp.eq.s32.totalorder %v115, %v173
    %v175 = vsel %vm174, 1, 0
    %v176 = vcvt.s32.f32 %v175
    %177 = vst [vmem:[#allocation2 + $0x40] sm:$0x1] %v176
    %178 = vst [vmem:[#allocation2 + $0x38] sm:$0x1] %v176
    %s179 = sld [smem:[#allocation3 + $0x84]]
    %v180 = vstv %s179
    %vm181 = vcmp.eq.s32.totalorder %v115, %v180
    %v182 = vsel %vm181, 1, 0
    %v183 = vcvt.s32.f32 %v182
    %184 = vst [vmem:[#allocation2 + $0x41] sm:$0x1] %v183
    %185 = vst [vmem:[#allocation2 + $0x39] sm:$0x1] %v183
    %s186 = sld [smem:[#allocation3 + $0x5]]
    %v187 = vstv %s186
    %vm188 = vcmp.eq.s32.totalorder %v115, %v187
    %v189 = vsel %vm188, 1, 0
    %v190 = vcvt.s32.f32 %v189
    %191 = vst [vmem:[#allocation2 + $0x50] sm:$0x1] %v190
    %192 = vst [vmem:[#allocation2 + $0x28] sm:$0x1] %v190
    %s193 = sld [smem:[#allocation3 + $0x85]]
    %v194 = vstv %s193
    %vm195 = vcmp.eq.s32.totalorder %v115, %v194
    %v196 = vsel %vm195, 1, 0
    %v197 = vcvt.s32.f32 %v196
    %198 = vst [vmem:[#allocation2 + $0x51] sm:$0x1] %v197
    %199 = vst [vmem:[#allocation2 + $0x29] sm:$0x1] %v197
    %s200 = sld [smem:[#allocation3 + $0x6]]
    %v201 = vstv %s200
    %vm202 = vcmp.eq.s32.totalorder %v115, %v201
    %v203 = vsel %vm202, 1, 0
    %v204 = vcvt.s32.f32 %v203
    %205 = vst [vmem:[#allocation2 + $0x60] sm:$0x1] %v204
    %206 = vst [vmem:[#allocation2 + $0x18] sm:$0x1] %v204
    %s207 = sld [smem:[#allocation3 + $0x86]]
    %v208 = vstv %s207
    %vm209 = vcmp.eq.s32.totalorder %v115, %v208
    %v210 = vsel %vm209, 1, 0
    %v211 = vcvt.s32.f32 %v210
    %212 = vst [vmem:[#allocation2 + $0x61] sm:$0x1] %v211
    %213 = vst [vmem:[#allocation2 + $0x19] sm:$0x1] %v211
    %s214 = sld [smem:[#allocation3 + $0x7]]
    %v215 = vstv %s214
    %vm216 = vcmp.eq.s32.totalorder %v115, %v215
    %v217 = vsel %vm216, 1, 0
    %v218 = vcvt.s32.f32 %v217
    %219 = vst [vmem:[#allocation2 + $0x70] sm:$0x1] %v218
    %220 = vst [vmem:[#allocation2 + $0x8] sm:$0x1] %v218
    %s221 = sld [smem:[#allocation3 + $0x87]]
    %v222 = vstv %s221
    %vm223 = vcmp.eq.s32.totalorder %v115, %v222
    %v224 = vsel %vm223, 1, 0
    %v225 = vcvt.s32.f32 %v224
    %226 = vst [vmem:[#allocation2 + $0x71] sm:$0x1] %v225
    %227 = vst [vmem:[#allocation2 + $0x9] sm:$0x1] %v225
    %v228 = vld [vmem:[#allocation2] sm:$0xff]
    %v229 = vld [vmem:[#allocation2 + $0x8] sm:$0xff]
    %v230 = vld [vmem:[#allocation2 + $0x10] sm:$0xff]
    %v231 = vld [vmem:[#allocation2 + $0x18] sm:$0xff]
    %v232 = vld [vmem:[#allocation2 + $0x20] sm:$0xff]
    %v233 = vld [vmem:[#allocation2 + $0x28] sm:$0xff]
    %v234 = vld [vmem:[#allocation2 + $0x30] sm:$0xff]
    %v235 = vld [vmem:[#allocation2 + $0x38] sm:$0xff]
    %v236 = vld [vmem:[#allocation2 + $0x40] sm:$0xff]
    %v237 = vld [vmem:[#allocation2 + $0x48] sm:$0xff]
    %v238 = vld [vmem:[#allocation2 + $0x50] sm:$0xff]
    %v239 = vld [vmem:[#allocation2 + $0x58] sm:$0xff]
    %v240 = vld [vmem:[#allocation2 + $0x60] sm:$0xff]
    %v241 = vld [vmem:[#allocation2 + $0x68] sm:$0xff]
    %v242 = vld [vmem:[#allocation2 + $0x70] sm:$0xff]
    %v243 = vld [vmem:[#allocation2 + $0x78] sm:$0xff]
    %v244 = vpack.c.bf16 %v230, %v228
    %v245 = vpack.c.bf16 %v231, %v229
    %v246 = vpack.c.bf16 %v234, %v232
    %v247 = vpack.c.bf16 %v235, %v233
    %v248 = vpack.c.bf16 %v238, %v236
    %v249 = vpack.c.bf16 %v239, %v237
    %v250 = vpack.c.bf16 %v242, %v240
    %v251 = vpack.c.bf16 %v243, %v241
    %v252 = vld [vmem:[#allocation7] sm:$0xff]
    %v253 = vld [vmem:[#allocation7 + $0x8] sm:$0xff]
    %v254 = vld [vmem:[#allocation7 + $0x10] sm:$0xff]
    %v255 = vld [vmem:[#allocation7 + $0x18] sm:$0xff]
    %v256 = vld [vmem:[#allocation7 + $0x20] sm:$0xff]
    %v257 = vld [vmem:[#allocation7 + $0x28] sm:$0xff]
    %v258 = vld [vmem:[#allocation7 + $0x30] sm:$0xff]
    %v259 = vld [vmem:[#allocation7 + $0x38] sm:$0xff]
    %v260 = vld [vmem:[#allocation7 + $0x40] sm:$0xff]
    %v261 = vld [vmem:[#allocation7 + $0x48] sm:$0xff]
    %v262 = vld [vmem:[#allocation7 + $0x50] sm:$0xff]
    %v263 = vld [vmem:[#allocation7 + $0x58] sm:$0xff]
    %v264 = vld [vmem:[#allocation7 + $0x60] sm:$0xff]
    %v265 = vld [vmem:[#allocation7 + $0x68] sm:$0xff]
    %v266 = vld [vmem:[#allocation7 + $0x70] sm:$0xff]
    %v267 = vld [vmem:[#allocation7 + $0x78] sm:$0xff]
    %v268 = vld [vmem:[#allocation7 + $0x80] sm:$0xff]
    %v269 = vld [vmem:[#allocation7 + $0x88] sm:$0xff]
    %v270 = vld [vmem:[#allocation7 + $0x90] sm:$0xff]
    %v271 = vld [vmem:[#allocation7 + $0x98] sm:$0xff]
    %v272 = vld [vmem:[#allocation7 + $0xa0] sm:$0xff]
    %v273 = vld [vmem:[#allocation7 + $0xa8] sm:$0xff]
    %v274 = vld [vmem:[#allocation7 + $0xb0] sm:$0xff]
    %v275 = vld [vmem:[#allocation7 + $0xb8] sm:$0xff]
    %v276 = vld [vmem:[#allocation7 + $0xc0] sm:$0xff]
    %v277 = vld [vmem:[#allocation7 + $0xc8] sm:$0xff]
    %v278 = vld [vmem:[#allocation7 + $0xd0] sm:$0xff]
    %v279 = vld [vmem:[#allocation7 + $0xd8] sm:$0xff]
    %v280 = vld [vmem:[#allocation7 + $0xe0] sm:$0xff]
    %v281 = vld [vmem:[#allocation7 + $0xe8] sm:$0xff]
    %v282 = vld [vmem:[#allocation7 + $0xf0] sm:$0xff]
    %v283 = vld [vmem:[#allocation7 + $0xf8] sm:$0xff]
    %v284 = vld [vmem:[%s4] sm:$0x3]
    %v286 = vperm.slane %v284, 0
    %v287 = vperm.slane %v284, 1
    %v322 = vunpack.c.l.b16 %v252
    %v323 = vunpack.c.h.b16 %v252
    %v324 = vunpack.c.l.b16 %v253
    %v325 = vunpack.c.h.b16 %v253
    %v326 = vunpack.c.l.b16 %v254
    %v327 = vunpack.c.h.b16 %v254
    %v328 = vunpack.c.l.b16 %v255
    %v329 = vunpack.c.h.b16 %v255
    %v330 = vunpack.c.l.b16 %v256
    %v331 = vunpack.c.h.b16 %v256
    %v332 = vunpack.c.l.b16 %v257
    %v333 = vunpack.c.h.b16 %v257
    %v334 = vunpack.c.l.b16 %v258
    %v335 = vunpack.c.h.b16 %v258
    %v336 = vunpack.c.l.b16 %v259
    %v337 = vunpack.c.h.b16 %v259
    %v338 = vunpack.c.l.b16 %v260
    %v339 = vunpack.c.h.b16 %v260
    %v340 = vunpack.c.l.b16 %v261
    %v341 = vunpack.c.h.b16 %v261
    %v342 = vunpack.c.l.b16 %v262
    %v343 = vunpack.c.h.b16 %v262
    %v344 = vunpack.c.l.b16 %v263
    %v345 = vunpack.c.h.b16 %v263
    %v346 = vunpack.c.l.b16 %v264
    %v347 = vunpack.c.h.b16 %v264
    %v348 = vunpack.c.l.b16 %v265
    %v349 = vunpack.c.h.b16 %v265
    %v350 = vunpack.c.l.b16 %v266
    %v351 = vunpack.c.h.b16 %v266
    %v352 = vunpack.c.l.b16 %v267
    %v353 = vunpack.c.h.b16 %v267
    %v354 = vunpack.c.l.b16 %v268
    %v355 = vunpack.c.h.b16 %v268
    %v356 = vunpack.c.l.b16 %v269
    %v357 = vunpack.c.h.b16 %v269
    %v358 = vunpack.c.l.b16 %v270
    %v359 = vunpack.c.h.b16 %v270
    %v360 = vunpack.c.l.b16 %v271
    %v361 = vunpack.c.h.b16 %v271
    %v362 = vunpack.c.l.b16 %v272
    %v363 = vunpack.c.h.b16 %v272
    %v364 = vunpack.c.l.b16 %v273
    %v365 = vunpack.c.h.b16 %v273
    %v366 = vunpack.c.l.b16 %v274
    %v367 = vunpack.c.h.b16 %v274
    %v368 = vunpack.c.l.b16 %v275
    %v369 = vunpack.c.h.b16 %v275
    %v370 = vunpack.c.l.b16 %v276
    %v371 = vunpack.c.h.b16 %v276
    %v372 = vunpack.c.l.b16 %v277
    %v373 = vunpack.c.h.b16 %v277
    %v374 = vunpack.c.l.b16 %v278
    %v375 = vunpack.c.h.b16 %v278
    %v376 = vunpack.c.l.b16 %v279
    %v377 = vunpack.c.h.b16 %v279
    %v378 = vunpack.c.l.b16 %v280
    %v379 = vunpack.c.h.b16 %v280
    %v380 = vunpack.c.l.b16 %v281
    %v381 = vunpack.c.h.b16 %v281
    %v382 = vunpack.c.l.b16 %v282
    %v383 = vunpack.c.h.b16 %v282
    %v384 = vunpack.c.l.b16 %v283
    %v385 = vunpack.c.h.b16 %v283
    %v386 = vpack.c.b16 %v324, %v322
    %v387 = vpack.c.b16 %v325, %v323
    %v388 = vpack.c.b16 %v328, %v326
    %v389 = vpack.c.b16 %v329, %v327
    %v390 = vpack.c.b16 %v332, %v330
    %v391 = vpack.c.b16 %v333, %v331
    %v392 = vpack.c.b16 %v336, %v334
    %v393 = vpack.c.b16 %v337, %v335
    %v394 = vpack.c.b16 %v340, %v338
    %v395 = vpack.c.b16 %v341, %v339
    %v396 = vpack.c.b16 %v344, %v342
    %v397 = vpack.c.b16 %v345, %v343
    %v398 = vpack.c.b16 %v348, %v346
    %v399 = vpack.c.b16 %v349, %v347
    %v400 = vpack.c.b16 %v352, %v350
    %v401 = vpack.c.b16 %v353, %v351
    %v402 = vpack.c.b16 %v356, %v354
    %v403 = vpack.c.b16 %v357, %v355
    %v404 = vpack.c.b16 %v360, %v358
    %v405 = vpack.c.b16 %v361, %v359
    %v406 = vpack.c.b16 %v364, %v362
    %v407 = vpack.c.b16 %v365, %v363
    %v408 = vpack.c.b16 %v368, %v366
    %v409 = vpack.c.b16 %v369, %v367
    %v410 = vpack.c.b16 %v372, %v370
    %v411 = vpack.c.b16 %v373, %v371
    %v412 = vpack.c.b16 %v376, %v374
    %v413 = vpack.c.b16 %v377, %v375
    %v414 = vpack.c.b16 %v380, %v378
    %v415 = vpack.c.b16 %v381, %v379
    %v416 = vpack.c.b16 %v384, %v382
    %v417 = vpack.c.b16 %v385, %v383
    %450 = vmatpush.bf16.msra.mxu0 %v400
    %451 = vmatpush.bf16.msra.mxu0 %v398
    %452 = vmatpush.bf16.msra.mxu0 %v396
    %453 = vmatpush.bf16.msra.mxu0 %v394
    %454 = vmatpush.bf16.msra.mxu0 %v392
    %455 = vmatpush.bf16.msra.mxu0 %v390
    %456 = vmatpush.bf16.msra.mxu0 %v388
    %457 = vmatpush.bf16.msra.mxu0 %v386
    %458 = vmatmul.bf16.gmra.mxu0 %v244
    %v459 = vpop.f32.mrf.mxu0
    %v460 = vadd.f32 %v286, %v459
    %v461 = vpop.f32.mrf.mxu0
    %v462 = vadd.f32 %v286, %v461
    %463 = vmatmul.bf16.gmra.mxu0 %v246
    %v464 = vpop.f32.mrf.mxu0
    %v465 = vadd.f32 %v286, %v464
    %v466 = vpop.f32.mrf.mxu0
    %v467 = vadd.f32 %v286, %v466
    %468 = vmatmul.bf16.gmra.mxu0 %v248
    %v469 = vpop.f32.mrf.mxu0
    %v470 = vadd.f32 %v286, %v469
    %v471 = vpop.f32.mrf.mxu0
    %v472 = vadd.f32 %v286, %v471
    %473 = vmatmul.bf16.gmra.mxu0 %v250
    %v474 = vpop.f32.mrf.mxu0
    %v475 = vadd.f32 %v286, %v474
    %v476 = vpop.f32.mrf.mxu0
    %v477 = vadd.f32 %v286, %v476
    %478 = vdwg.mxu0
    %479 = vmatpush.bf16.msra.mxu0 %v416
    %480 = vmatpush.bf16.msra.mxu0 %v414
    %481 = vmatpush.bf16.msra.mxu0 %v412
    %482 = vmatpush.bf16.msra.mxu0 %v410
    %483 = vmatpush.bf16.msra.mxu0 %v408
    %484 = vmatpush.bf16.msra.mxu0 %v406
    %485 = vmatpush.bf16.msra.mxu0 %v404
    %486 = vmatpush.bf16.msra.mxu0 %v402
    %487 = vmatmul.bf16.gmra.mxu0 %v245
    %v488 = vpop.f32.mrf.mxu0
    %v489 = vadd.f32 %v460, %v488
    %v490 = vpop.f32.mrf.mxu0
    %v491 = vadd.f32 %v462, %v490
    %492 = vmatmul.bf16.gmra.mxu0 %v247
    %v493 = vpop.f32.mrf.mxu0
    %v494 = vadd.f32 %v465, %v493
    %v495 = vpop.f32.mrf.mxu0
    %v496 = vadd.f32 %v467, %v495
    %497 = vmatmul.bf16.gmra.mxu0 %v249
    %v498 = vpop.f32.mrf.mxu0
    %v499 = vadd.f32 %v470, %v498
    %v500 = vpop.f32.mrf.mxu0
    %v501 = vadd.f32 %v472, %v500
    %502 = vmatmul.bf16.gmra.mxu0 %v251
    %v503 = vpop.f32.mrf.mxu0
    %v504 = vadd.f32 %v475, %v503
    %v505 = vpop.f32.mrf.mxu0
    %v506 = vadd.f32 %v477, %v505
    %507 = vdwg.mxu0
    %508 = vmatpush.bf16.msra.mxu0 %v401
    %509 = vmatpush.bf16.msra.mxu0 %v399
    %510 = vmatpush.bf16.msra.mxu0 %v397
    %511 = vmatpush.bf16.msra.mxu0 %v395
    %512 = vmatpush.bf16.msra.mxu0 %v393
    %513 = vmatpush.bf16.msra.mxu0 %v391
    %514 = vmatpush.bf16.msra.mxu0 %v389
    %515 = vmatpush.bf16.msra.mxu0 %v387
    %516 = vmatmul.bf16.gmra.mxu0 %v244
    %v517 = vpop.f32.mrf.mxu0
    %v518 = vadd.f32 %v287, %v517
    %v519 = vpop.f32.mrf.mxu0
    %v520 = vadd.f32 %v287, %v519
    %521 = vmatmul.bf16.gmra.mxu0 %v246
    %v522 = vpop.f32.mrf.mxu0
    %v523 = vadd.f32 %v287, %v522
    %v524 = vpop.f32.mrf.mxu0
    %v525 = vadd.f32 %v287, %v524
    %526 = vmatmul.bf16.gmra.mxu0 %v248
    %v527 = vpop.f32.mrf.mxu0
    %v528 = vadd.f32 %v287, %v527
    %v529 = vpop.f32.mrf.mxu0
    %v530 = vadd.f32 %v287, %v529
    %531 = vmatmul.bf16.gmra.mxu0 %v250
    %v532 = vpop.f32.mrf.mxu0
    %v533 = vadd.f32 %v287, %v532
    %v534 = vpop.f32.mrf.mxu0
    %v535 = vadd.f32 %v287, %v534
    %536 = vdwg.mxu0
    %537 = vmatpush.bf16.msra.mxu0 %v417
    %538 = vmatpush.bf16.msra.mxu0 %v415
    %539 = vmatpush.bf16.msra.mxu0 %v413
    %540 = vmatpush.bf16.msra.mxu0 %v411
    %541 = vmatpush.bf16.msra.mxu0 %v409
    %542 = vmatpush.bf16.msra.mxu0 %v407
    %543 = vmatpush.bf16.msra.mxu0 %v405
    %544 = vmatpush.bf16.msra.mxu0 %v403
    %545 = vmatmul.bf16.gmra.mxu0 %v245
    %v546 = vpop.f32.mrf.mxu0
    %v547 = vadd.f32 %v518, %v546
    %v548 = vpop.f32.mrf.mxu0
    %v549 = vadd.f32 %v520, %v548
    %550 = vmatmul.bf16.gmra.mxu0 %v247
    %v551 = vpop.f32.mrf.mxu0
    %v552 = vadd.f32 %v523, %v551
    %v553 = vpop.f32.mrf.mxu0
    %v554 = vadd.f32 %v525, %v553
    %555 = vmatmul.bf16.gmra.mxu0 %v249
    %v556 = vpop.f32.mrf.mxu0
    %v557 = vadd.f32 %v528, %v556
    %v558 = vpop.f32.mrf.mxu0
    %v559 = vadd.f32 %v530, %v558
    %560 = vmatmul.bf16.gmra.mxu0 %v251
    %v561 = vpop.f32.mrf.mxu0
    %v562 = vadd.f32 %v533, %v561
    %v563 = vpop.f32.mrf.mxu0
    %v564 = vadd.f32 %v535, %v563
    %565 = vdwg.mxu0
    %v566 = vld [vmem:[#allocation10] sm:$0xff]
    %v567 = vld [vmem:[#allocation10 + $0x8] sm:$0xff]
    %v568 = vld [vmem:[#allocation10 + $0x10] sm:$0xff]
    %v569 = vld [vmem:[#allocation10 + $0x18] sm:$0xff]
    %v570 = vld [vmem:[#allocation10 + $0x20] sm:$0xff]
    %v571 = vld [vmem:[#allocation10 + $0x28] sm:$0xff]
    %v572 = vld [vmem:[#allocation10 + $0x30] sm:$0xff]
    %v573 = vld [vmem:[#allocation10 + $0x38] sm:$0xff]
    %v574 = vld [vmem:[%s5] sm:$0x3]
    %s575 = scalar_lea.vmem %s5, 2
    %v576 = vld [vmem:[%s575] sm:$0x3]
    %578 = vrot.lane.b32.xlu0 %v576, 32
    %v579 = vpop.permute.xlu0 %578
    %vm581 = vcmask 261120
    %v582 = vsel %vm581, %v574, %v579
    %vm583 = vcmask 1041408
    %v584 = vsel %vm583, %v582, 0.0
    %v585 = vld [vmem:[%s6] sm:$0x3]
    %s586 = scalar_lea.vmem %s6, 2
    %v587 = vld [vmem:[%s586] sm:$0x3]
    %589 = vrot.lane.b32.xlu0 %v587, 32
    %v590 = vpop.permute.xlu0 %589
    %v592 = vsel %vm581, %v585, %v590
    %v593 = vsel %vm583, %v592, 0.0
    %v594 = vpack.c.bf16 %v584, %v584
    %v603 = vunpack.c.l.b16 %v566
    %v604 = vunpack.c.h.b16 %v566
    %v605 = vunpack.c.l.b16 %v567
    %v606 = vunpack.c.h.b16 %v567
    %v607 = vunpack.c.l.b16 %v568
    %v608 = vunpack.c.h.b16 %v568
    %v609 = vunpack.c.l.b16 %v569
    %v610 = vunpack.c.h.b16 %v569
    %v611 = vunpack.c.l.b16 %v570
    %v612 = vunpack.c.h.b16 %v570
    %v613 = vunpack.c.l.b16 %v571
    %v614 = vunpack.c.h.b16 %v571
    %v615 = vunpack.c.l.b16 %v572
    %v616 = vunpack.c.h.b16 %v572
    %v617 = vunpack.c.l.b16 %v573
    %v618 = vunpack.c.h.b16 %v573
    %v619 = vpack.c.b16 %v605, %v603
    %v620 = vpack.c.b16 %v606, %v604
    %v621 = vpack.c.b16 %v609, %v607
    %v622 = vpack.c.b16 %v610, %v608
    %v623 = vpack.c.b16 %v613, %v611
    %v624 = vpack.c.b16 %v614, %v612
    %v625 = vpack.c.b16 %v617, %v615
    %v626 = vpack.c.b16 %v618, %v616
    %vm635 = vcmask 523264
    %v637 = vsel %vm635, %v594, 0
    %639 = vmatpush.bf16.msra.mxu0 0
    %640 = vmatpush.bf16.msra.mxu0 0
    %641 = vmatpush.bf16.msra.mxu0 0
    %642 = vmatpush.bf16.msra.mxu0 0
    %643 = vmatpush.bf16.msra.mxu0 %v625
    %644 = vmatpush.bf16.msra.mxu0 %v623
    %645 = vmatpush.bf16.msra.mxu0 %v621
    %646 = vmatpush.bf16.msra.mxu0 %v619
    %647 = vmatmul.bf16.gmra.mxu0 %v637
    %v648 = vpop.f32.mrf.mxu0
    %v649 = vadd.f32 0.0, %v648
    %v650 = vpop.f32.mrf.mxu0
    %651 = vdwg.mxu0
    %652 = vmatpush.bf16.msra.mxu0 0
    %653 = vmatpush.bf16.msra.mxu0 0
    %654 = vmatpush.bf16.msra.mxu0 0
    %655 = vmatpush.bf16.msra.mxu0 0
    %656 = vmatpush.bf16.msra.mxu0 %v626
    %657 = vmatpush.bf16.msra.mxu0 %v624
    %658 = vmatpush.bf16.msra.mxu0 %v622
    %659 = vmatpush.bf16.msra.mxu0 %v620
    %660 = vmatmul.bf16.gmra.mxu0 %v637
    %v661 = vpop.f32.mrf.mxu0
    %v662 = vadd.f32 0.0, %v661
    %v663 = vpop.f32.mrf.mxu0
    %664 = vdwg.mxu0
    %v665 = vadd.f32 %v489, %v649
    %v666 = vadd.f32 %v547, %v662
    %v667 = vxor.u32 %v665, 2147483648
    %v668 = vxor.u32 %v666, 2147483648
    %v669 = vmul.f32 %v667, 1.442695
    %v670 = vpow.pop %v669
    %v671 = vmul.f32 %v668, 1.442695
    %v672 = vpow.pop %v671
    %v673 = vadd.f32 %v670, 1.0
    %v674 = vadd.f32 %v672, 1.0
    %v675 = vrcp.pop %v673
    %v676 = vmul.f32 %v673, %v675
    %v677 = vsub.f32 1.0, %v676
    %v678 = vmul.f32 %v675, %v677
    %v679 = vadd.f32 %v675, %v678
    %vm680 = vweird.f32 %v673
    %vm681 = vweird.f32 %v675
    %vm682 = vmor %vm680, %vm681
    %v683 = vsel %vm682, %v675, %v679
    %v684 = vand.u32 2147483647, %v673
    %vm685 = vcmp.eq.f32.partialorder %v684, 8.507059e+37
    %v686 = vand.u32 %v673, 2147483648
    %v687 = vor.u32 1.1754944e-38, %v686
    %v688 = vsel %vm685, %v687, %v683
    %v689 = vmul.f32 1.0, %v688
    %v690 = vrcp.pop %v674
    %v691 = vmul.f32 %v674, %v690
    %v692 = vsub.f32 1.0, %v691
    %v693 = vmul.f32 %v690, %v692
    %v694 = vadd.f32 %v690, %v693
    %vm695 = vweird.f32 %v674
    %vm696 = vweird.f32 %v690
    %vm697 = vmor %vm695, %vm696
    %v698 = vsel %vm697, %v690, %v694
    %v699 = vand.u32 2147483647, %v674
    %vm700 = vcmp.eq.f32.partialorder %v699, 8.507059e+37
    %v701 = vand.u32 %v674, 2147483648
    %v702 = vor.u32 1.1754944e-38, %v701
    %v703 = vsel %vm700, %v702, %v698
    %v704 = vmul.f32 1.0, %v703
    %v705 = vtanh.pop %v666
    %707 = vrot.lane.b32.xlu0 %v593, 64
    %v708 = vpop.permute.xlu0 %707
    %v710 = vmul.f32 %v689, %v708
    %v711 = vmul.f32 %v689, %v705
    %713 = vrot.lane.b32.xlu0 %v711, 64
    %v714 = vpop.permute.xlu0 %713
    %v716 = vadd.f32 %v710, %v714
    %v717 = vtanh.pop %v716
    %v718 = vmul.f32 %v704, %v717
    %v719 = vpack.c.bf16 %v718, %v718
    %721 = vrot.lane.b32.xlu0 %v719, 64
    %v722 = vpop.permute.xlu0 %721
    %v724 = vsel %vm635, %v722, 0
    %726 = vmatpush.bf16.msra.mxu0 0
    %727 = vmatpush.bf16.msra.mxu0 0
    %728 = vmatpush.bf16.msra.mxu0 0
    %729 = vmatpush.bf16.msra.mxu0 0
    %730 = vmatpush.bf16.msra.mxu0 %v625
    %731 = vmatpush.bf16.msra.mxu0 %v623
    %732 = vmatpush.bf16.msra.mxu0 %v621
    %733 = vmatpush.bf16.msra.mxu0 %v619
    %734 = vmatmul.bf16.gmra.mxu0 %v724
    %v735 = vpop.f32.mrf.mxu0
    %v736 = vadd.f32 0.0, %v735
    %v737 = vpop.f32.mrf.mxu0
    %738 = vdwg.mxu0
    %739 = vmatpush.bf16.msra.mxu0 0
    %740 = vmatpush.bf16.msra.mxu0 0
    %741 = vmatpush.bf16.msra.mxu0 0
    %742 = vmatpush.bf16.msra.mxu0 0
    %743 = vmatpush.bf16.msra.mxu0 %v626
    %744 = vmatpush.bf16.msra.mxu0 %v624
    %745 = vmatpush.bf16.msra.mxu0 %v622
    %746 = vmatpush.bf16.msra.mxu0 %v620
    %747 = vmatmul.bf16.gmra.mxu0 %v724
    %v748 = vpop.f32.mrf.mxu0
    %v749 = vadd.f32 0.0, %v748
    %v750 = vpop.f32.mrf.mxu0
    %751 = vdwg.mxu0
    %v752 = vadd.f32 %v491, %v736
    %v753 = vadd.f32 %v549, %v749
    %v754 = vxor.u32 %v752, 2147483648
    %v755 = vxor.u32 %v753, 2147483648
    %v756 = vmul.f32 %v754, 1.442695
    %v757 = vpow.pop %v756
    %v758 = vmul.f32 %v755, 1.442695
    %v759 = vpow.pop %v758
    %v760 = vadd.f32 %v757, 1.0
    %v761 = vadd.f32 %v759, 1.0
    %v762 = vrcp.pop %v760
    %v763 = vmul.f32 %v760, %v762
    %v764 = vsub.f32 1.0, %v763
    %v765 = vmul.f32 %v762, %v764
    %v766 = vadd.f32 %v762, %v765
    %vm767 = vweird.f32 %v760
    %vm768 = vweird.f32 %v762
    %vm769 = vmor %vm767, %vm768
    %v770 = vsel %vm769, %v762, %v766
    %v771 = vand.u32 2147483647, %v760
    %vm772 = vcmp.eq.f32.partialorder %v771, 8.507059e+37
    %v773 = vand.u32 %v760, 2147483648
    %v774 = vor.u32 1.1754944e-38, %v773
    %v775 = vsel %vm772, %v774, %v770
    %v776 = vmul.f32 1.0, %v775
    %v777 = vrcp.pop %v761
    %v778 = vmul.f32 %v761, %v777
    %v779 = vsub.f32 1.0, %v778
    %v780 = vmul.f32 %v777, %v779
    %v781 = vadd.f32 %v777, %v780
    %vm782 = vweird.f32 %v761
    %vm783 = vweird.f32 %v777
    %vm784 = vmor %vm782, %vm783
    %v785 = vsel %vm784, %v777, %v781
    %v786 = vand.u32 2147483647, %v761
    %vm787 = vcmp.eq.f32.partialorder %v786, 8.507059e+37
    %v788 = vand.u32 %v761, 2147483648
    %v789 = vor.u32 1.1754944e-38, %v788
    %v790 = vsel %vm787, %v789, %v785
    %v791 = vmul.f32 1.0, %v790
    %v792 = vtanh.pop %v753
    %v793 = vmul.f32 %v776, %v716
    %v794 = vmul.f32 %v776, %v792
    %796 = vrot.lane.b32.xlu0 %v794, 64
    %v797 = vpop.permute.xlu0 %796
    %v799 = vadd.f32 %v793, %v797
    %v800 = vtanh.pop %v799
    %v801 = vmul.f32 %v791, %v800
    %v802 = vpack.c.bf16 %v801, %v801
    %804 = vrot.lane.b32.xlu0 %v802, 64
    %v805 = vpop.permute.xlu0 %804
    %v807 = vsel %vm635, %v805, 0
    %809 = vmatpush.bf16.msra.mxu0 0
    %810 = vmatpush.bf16.msra.mxu0 0
    %811 = vmatpush.bf16.msra.mxu0 0
    %812 = vmatpush.bf16.msra.mxu0 0
    %813 = vmatpush.bf16.msra.mxu0 %v625
    %814 = vmatpush.bf16.msra.mxu0 %v623
    %815 = vmatpush.bf16.msra.mxu0 %v621
    %816 = vmatpush.bf16.msra.mxu0 %v619
    %817 = vmatmul.bf16.gmra.mxu0 %v807
    %v818 = vpop.f32.mrf.mxu0
    %v819 = vadd.f32 0.0, %v818
    %v820 = vpop.f32.mrf.mxu0
    %821 = vdwg.mxu0
    %822 = vmatpush.bf16.msra.mxu0 0
    %823 = vmatpush.bf16.msra.mxu0 0
    %824 = vmatpush.bf16.msra.mxu0 0
    %825 = vmatpush.bf16.msra.mxu0 0
    %826 = vmatpush.bf16.msra.mxu0 %v626
    %827 = vmatpush.bf16.msra.mxu0 %v624
    %828 = vmatpush.bf16.msra.mxu0 %v622
    %829 = vmatpush.bf16.msra.mxu0 %v620
    %830 = vmatmul.bf16.gmra.mxu0 %v807
    %v831 = vpop.f32.mrf.mxu0
    %v832 = vadd.f32 0.0, %v831
    %v833 = vpop.f32.mrf.mxu0
    %834 = vdwg.mxu0
    %v835 = vadd.f32 %v494, %v819
    %v836 = vadd.f32 %v552, %v832
    %v837 = vxor.u32 %v835, 2147483648
    %v838 = vxor.u32 %v836, 2147483648
    %v839 = vmul.f32 %v837, 1.442695
    %v840 = vpow.pop %v839
    %v841 = vmul.f32 %v838, 1.442695
    %v842 = vpow.pop %v841
    %v843 = vadd.f32 %v840, 1.0
    %v844 = vadd.f32 %v842, 1.0
    %v845 = vrcp.pop %v843
    %v846 = vmul.f32 %v843, %v845
    %v847 = vsub.f32 1.0, %v846
    %v848 = vmul.f32 %v845, %v847
    %v849 = vadd.f32 %v845, %v848
    %vm850 = vweird.f32 %v843
    %vm851 = vweird.f32 %v845
    %vm852 = vmor %vm850, %vm851
    %v853 = vsel %vm852, %v845, %v849
    %v854 = vand.u32 2147483647, %v843
    %vm855 = vcmp.eq.f32.partialorder %v854, 8.507059e+37
    %v856 = vand.u32 %v843, 2147483648
    %v857 = vor.u32 1.1754944e-38, %v856
    %v858 = vsel %vm855, %v857, %v853
    %v859 = vmul.f32 1.0, %v858
    %v860 = vrcp.pop %v844
    %v861 = vmul.f32 %v844, %v860
    %v862 = vsub.f32 1.0, %v861
    %v863 = vmul.f32 %v860, %v862
    %v864 = vadd.f32 %v860, %v863
    %vm865 = vweird.f32 %v844
    %vm866 = vweird.f32 %v860
    %vm867 = vmor %vm865, %vm866
    %v868 = vsel %vm867, %v860, %v864
    %v869 = vand.u32 2147483647, %v844
    %vm870 = vcmp.eq.f32.partialorder %v869, 8.507059e+37
    %v871 = vand.u32 %v844, 2147483648
    %v872 = vor.u32 1.1754944e-38, %v871
    %v873 = vsel %vm870, %v872, %v868
    %v874 = vmul.f32 1.0, %v873
    %v875 = vtanh.pop %v836
    %v876 = vmul.f32 %v859, %v799
    %v877 = vmul.f32 %v859, %v875
    %879 = vrot.lane.b32.xlu0 %v877, 64
    %v880 = vpop.permute.xlu0 %879
    %v882 = vadd.f32 %v876, %v880
    %v883 = vtanh.pop %v882
    %v884 = vmul.f32 %v874, %v883
    %v885 = vpack.c.bf16 %v884, %v884
    %887 = vrot.lane.b32.xlu0 %v885, 64
    %v888 = vpop.permute.xlu0 %887
    %v890 = vsel %vm635, %v888, 0
    %892 = vmatpush.bf16.msra.mxu0 0
    %893 = vmatpush.bf16.msra.mxu0 0
    %894 = vmatpush.bf16.msra.mxu0 0
    %895 = vmatpush.bf16.msra.mxu0 0
    %896 = vmatpush.bf16.msra.mxu0 %v625
    %897 = vmatpush.bf16.msra.mxu0 %v623
    %898 = vmatpush.bf16.msra.mxu0 %v621
    %899 = vmatpush.bf16.msra.mxu0 %v619
    %900 = vmatmul.bf16.gmra.mxu0 %v890
    %v901 = vpop.f32.mrf.mxu0
    %v902 = vadd.f32 0.0, %v901
    %v903 = vpop.f32.mrf.mxu0
    %904 = vdwg.mxu0
    %905 = vmatpush.bf16.msra.mxu0 0
    %906 = vmatpush.bf16.msra.mxu0 0
    %907 = vmatpush.bf16.msra.mxu0 0
    %908 = vmatpush.bf16.msra.mxu0 0
    %909 = vmatpush.bf16.msra.mxu0 %v626
    %910 = vmatpush.bf16.msra.mxu0 %v624
    %911 = vmatpush.bf16.msra.mxu0 %v622
    %912 = vmatpush.bf16.msra.mxu0 %v620
    %913 = vmatmul.bf16.gmra.mxu0 %v890
    %v914 = vpop.f32.mrf.mxu0
    %v915 = vadd.f32 0.0, %v914
    %v916 = vpop.f32.mrf.mxu0
    %917 = vdwg.mxu0
    %v918 = vadd.f32 %v496, %v902
    %v919 = vadd.f32 %v554, %v915
    %v920 = vxor.u32 %v918, 2147483648
    %v921 = vxor.u32 %v919, 2147483648
    %v922 = vmul.f32 %v920, 1.442695
    %v923 = vpow.pop %v922
    %v924 = vmul.f32 %v921, 1.442695
    %v925 = vpow.pop %v924
    %v926 = vadd.f32 %v923, 1.0
    %v927 = vadd.f32 %v925, 1.0
    %v928 = vrcp.pop %v926
    %v929 = vmul.f32 %v926, %v928
    %v930 = vsub.f32 1.0, %v929
    %v931 = vmul.f32 %v928, %v930
    %v932 = vadd.f32 %v928, %v931
    %vm933 = vweird.f32 %v926
    %vm934 = vweird.f32 %v928
    %vm935 = vmor %vm933, %vm934
    %v936 = vsel %vm935, %v928, %v932
    %v937 = vand.u32 2147483647, %v926
    %vm938 = vcmp.eq.f32.partialorder %v937, 8.507059e+37
    %v939 = vand.u32 %v926, 2147483648
    %v940 = vor.u32 1.1754944e-38, %v939
    %v941 = vsel %vm938, %v940, %v936
    %v942 = vmul.f32 1.0, %v941
    %v943 = vrcp.pop %v927
    %v944 = vmul.f32 %v927, %v943
    %v945 = vsub.f32 1.0, %v944
    %v946 = vmul.f32 %v943, %v945
    %v947 = vadd.f32 %v943, %v946
    %vm948 = vweird.f32 %v927
    %vm949 = vweird.f32 %v943
    %vm950 = vmor %vm948, %vm949
    %v951 = vsel %vm950, %v943, %v947
    %v952 = vand.u32 2147483647, %v927
    %vm953 = vcmp.eq.f32.partialorder %v952, 8.507059e+37
    %v954 = vand.u32 %v927, 2147483648
    %v955 = vor.u32 1.1754944e-38, %v954
    %v956 = vsel %vm953, %v955, %v951
    %v957 = vmul.f32 1.0, %v956
    %v958 = vtanh.pop %v919
    %v959 = vmul.f32 %v942, %v882
    %v960 = vmul.f32 %v942, %v958
    %962 = vrot.lane.b32.xlu0 %v960, 64
    %v963 = vpop.permute.xlu0 %962
    %v965 = vadd.f32 %v959, %v963
    %v966 = vtanh.pop %v965
    %v967 = vmul.f32 %v957, %v966
    %v968 = vpack.c.bf16 %v967, %v967
    %970 = vrot.lane.b32.xlu0 %v968, 64
    %v971 = vpop.permute.xlu0 %970
    %v973 = vsel %vm635, %v971, 0
    %975 = vmatpush.bf16.msra.mxu0 0
    %976 = vmatpush.bf16.msra.mxu0 0
    %977 = vmatpush.bf16.msra.mxu0 0
    %978 = vmatpush.bf16.msra.mxu0 0
    %979 = vmatpush.bf16.msra.mxu0 %v625
    %980 = vmatpush.bf16.msra.mxu0 %v623
    %981 = vmatpush.bf16.msra.mxu0 %v621
    %982 = vmatpush.bf16.msra.mxu0 %v619
    %983 = vmatmul.bf16.gmra.mxu0 %v973
    %v984 = vpop.f32.mrf.mxu0
    %v985 = vadd.f32 0.0, %v984
    %v986 = vpop.f32.mrf.mxu0
    %987 = vdwg.mxu0
    %988 = vmatpush.bf16.msra.mxu0 0
    %989 = vmatpush.bf16.msra.mxu0 0
    %990 = vmatpush.bf16.msra.mxu0 0
    %991 = vmatpush.bf16.msra.mxu0 0
    %992 = vmatpush.bf16.msra.mxu0 %v626
    %993 = vmatpush.bf16.msra.mxu0 %v624
    %994 = vmatpush.bf16.msra.mxu0 %v622
    %995 = vmatpush.bf16.msra.mxu0 %v620
    %996 = vmatmul.bf16.gmra.mxu0 %v973
    %v997 = vpop.f32.mrf.mxu0
    %v998 = vadd.f32 0.0, %v997
    %v999 = vpop.f32.mrf.mxu0
    %1000 = vdwg.mxu0
    %v1001 = vadd.f32 %v499, %v985
    %v1002 = vadd.f32 %v557, %v998
    %v1003 = vxor.u32 %v1001, 2147483648
    %v1004 = vxor.u32 %v1002, 2147483648
    %v1005 = vmul.f32 %v1003, 1.442695
    %v1006 = vpow.pop %v1005
    %v1007 = vmul.f32 %v1004, 1.442695
    %v1008 = vpow.pop %v1007
    %v1009 = vadd.f32 %v1006, 1.0
    %v1010 = vadd.f32 %v1008, 1.0
    %v1011 = vrcp.pop %v1009
    %v1012 = vmul.f32 %v1009, %v1011
    %v1013 = vsub.f32 1.0, %v1012
    %v1014 = vmul.f32 %v1011, %v1013
    %v1015 = vadd.f32 %v1011, %v1014
    %vm1016 = vweird.f32 %v1009
    %vm1017 = vweird.f32 %v1011
    %vm1018 = vmor %vm1016, %vm1017
    %v1019 = vsel %vm1018, %v1011, %v1015
    %v1020 = vand.u32 2147483647, %v1009
    %vm1021 = vcmp.eq.f32.partialorder %v1020, 8.507059e+37
    %v1022 = vand.u32 %v1009, 2147483648
    %v1023 = vor.u32 1.1754944e-38, %v1022
    %v1024 = vsel %vm1021, %v1023, %v1019
    %v1025 = vmul.f32 1.0, %v1024
    %v1026 = vrcp.pop %v1010
    %v1027 = vmul.f32 %v1010, %v1026
    %v1028 = vsub.f32 1.0, %v1027
    %v1029 = vmul.f32 %v1026, %v1028
    %v1030 = vadd.f32 %v1026, %v1029
    %vm1031 = vweird.f32 %v1010
    %vm1032 = vweird.f32 %v1026
    %vm1033 = vmor %vm1031, %vm1032
    %v1034 = vsel %vm1033, %v1026, %v1030
    %v1035 = vand.u32 2147483647, %v1010
    %vm1036 = vcmp.eq.f32.partialorder %v1035, 8.507059e+37
    %v1037 = vand.u32 %v1010, 2147483648
    %v1038 = vor.u32 1.1754944e-38, %v1037
    %v1039 = vsel %vm1036, %v1038, %v1034
    %v1040 = vmul.f32 1.0, %v1039
    %v1041 = vtanh.pop %v1002
    %v1042 = vmul.f32 %v1025, %v965
    %v1043 = vmul.f32 %v1025, %v1041
    %1045 = vrot.lane.b32.xlu0 %v1043, 64
    %v1046 = vpop.permute.xlu0 %1045
    %v1048 = vadd.f32 %v1042, %v1046
    %v1049 = vtanh.pop %v1048
    %v1050 = vmul.f32 %v1040, %v1049
    %v1051 = vpack.c.bf16 %v1050, %v1050
    %1053 = vrot.lane.b32.xlu0 %v1051, 64
    %v1054 = vpop.permute.xlu0 %1053
    %v1056 = vsel %vm635, %v1054, 0
    %1058 = vmatpush.bf16.msra.mxu0 0
    %1059 = vmatpush.bf16.msra.mxu0 0
    %1060 = vmatpush.bf16.msra.mxu0 0
    %1061 = vmatpush.bf16.msra.mxu0 0
    %1062 = vmatpush.bf16.msra.mxu0 %v625
    %1063 = vmatpush.bf16.msra.mxu0 %v623
    %1064 = vmatpush.bf16.msra.mxu0 %v621
    %1065 = vmatpush.bf16.msra.mxu0 %v619
    %1066 = vmatmul.bf16.gmra.mxu0 %v1056
    %v1067 = vpop.f32.mrf.mxu0
    %v1068 = vadd.f32 0.0, %v1067
    %v1069 = vpop.f32.mrf.mxu0
    %1070 = vdwg.mxu0
    %1071 = vmatpush.bf16.msra.mxu0 0
    %1072 = vmatpush.bf16.msra.mxu0 0
    %1073 = vmatpush.bf16.msra.mxu0 0
    %1074 = vmatpush.bf16.msra.mxu0 0
    %1075 = vmatpush.bf16.msra.mxu0 %v626
    %1076 = vmatpush.bf16.msra.mxu0 %v624
    %1077 = vmatpush.bf16.msra.mxu0 %v622
    %1078 = vmatpush.bf16.msra.mxu0 %v620
    %1079 = vmatmul.bf16.gmra.mxu0 %v1056
    %v1080 = vpop.f32.mrf.mxu0
    %v1081 = vadd.f32 0.0, %v1080
    %v1082 = vpop.f32.mrf.mxu0
    %1083 = vdwg.mxu0
    %v1084 = vadd.f32 %v501, %v1068
    %v1085 = vadd.f32 %v559, %v1081
    %v1086 = vxor.u32 %v1084, 2147483648
    %v1087 = vxor.u32 %v1085, 2147483648
    %v1088 = vmul.f32 %v1086, 1.442695
    %v1089 = vpow.pop %v1088
    %v1090 = vmul.f32 %v1087, 1.442695
    %v1091 = vpow.pop %v1090
    %v1092 = vadd.f32 %v1089, 1.0
    %v1093 = vadd.f32 %v1091, 1.0
    %v1094 = vrcp.pop %v1092
    %v1095 = vmul.f32 %v1092, %v1094
    %v1096 = vsub.f32 1.0, %v1095
    %v1097 = vmul.f32 %v1094, %v1096
    %v1098 = vadd.f32 %v1094, %v1097
    %vm1099 = vweird.f32 %v1092
    %vm1100 = vweird.f32 %v1094
    %vm1101 = vmor %vm1099, %vm1100
    %v1102 = vsel %vm1101, %v1094, %v1098
    %v1103 = vand.u32 2147483647, %v1092
    %vm1104 = vcmp.eq.f32.partialorder %v1103, 8.507059e+37
    %v1105 = vand.u32 %v1092, 2147483648
    %v1106 = vor.u32 1.1754944e-38, %v1105
    %v1107 = vsel %vm1104, %v1106, %v1102
    %v1108 = vmul.f32 1.0, %v1107
    %v1109 = vrcp.pop %v1093
    %v1110 = vmul.f32 %v1093, %v1109
    %v1111 = vsub.f32 1.0, %v1110
    %v1112 = vmul.f32 %v1109, %v1111
    %v1113 = vadd.f32 %v1109, %v1112
    %vm1114 = vweird.f32 %v1093
    %vm1115 = vweird.f32 %v1109
    %vm1116 = vmor %vm1114, %vm1115
    %v1117 = vsel %vm1116, %v1109, %v1113
    %v1118 = vand.u32 2147483647, %v1093
    %vm1119 = vcmp.eq.f32.partialorder %v1118, 8.507059e+37
    %v1120 = vand.u32 %v1093, 2147483648
    %v1121 = vor.u32 1.1754944e-38, %v1120
    %v1122 = vsel %vm1119, %v1121, %v1117
    %v1123 = vmul.f32 1.0, %v1122
    %v1124 = vtanh.pop %v1085
    %v1125 = vmul.f32 %v1108, %v1048
    %v1126 = vmul.f32 %v1108, %v1124
    %1128 = vrot.lane.b32.xlu0 %v1126, 64
    %v1129 = vpop.permute.xlu0 %1128
    %v1131 = vadd.f32 %v1125, %v1129
    %v1132 = vtanh.pop %v1131
    %v1133 = vmul.f32 %v1123, %v1132
    %v1134 = vpack.c.bf16 %v1133, %v1133
    %1136 = vrot.lane.b32.xlu0 %v1134, 64
    %v1137 = vpop.permute.xlu0 %1136
    %v1139 = vsel %vm635, %v1137, 0
    %1141 = vmatpush.bf16.msra.mxu0 0
    %1142 = vmatpush.bf16.msra.mxu0 0
    %1143 = vmatpush.bf16.msra.mxu0 0
    %1144 = vmatpush.bf16.msra.mxu0 0
    %1145 = vmatpush.bf16.msra.mxu0 %v625
    %1146 = vmatpush.bf16.msra.mxu0 %v623
    %1147 = vmatpush.bf16.msra.mxu0 %v621
    %1148 = vmatpush.bf16.msra.mxu0 %v619
    %1149 = vmatmul.bf16.gmra.mxu0 %v1139
    %v1150 = vpop.f32.mrf.mxu0
    %v1151 = vadd.f32 0.0, %v1150
    %v1152 = vpop.f32.mrf.mxu0
    %1153 = vdwg.mxu0
    %1154 = vmatpush.bf16.msra.mxu0 0
    %1155 = vmatpush.bf16.msra.mxu0 0
    %1156 = vmatpush.bf16.msra.mxu0 0
    %1157 = vmatpush.bf16.msra.mxu0 0
    %1158 = vmatpush.bf16.msra.mxu0 %v626
    %1159 = vmatpush.bf16.msra.mxu0 %v624
    %1160 = vmatpush.bf16.msra.mxu0 %v622
    %1161 = vmatpush.bf16.msra.mxu0 %v620
    %1162 = vmatmul.bf16.gmra.mxu0 %v1139
    %v1163 = vpop.f32.mrf.mxu0
    %v1164 = vadd.f32 0.0, %v1163
    %v1165 = vpop.f32.mrf.mxu0
    %1166 = vdwg.mxu0
    %v1167 = vadd.f32 %v504, %v1151
    %v1168 = vadd.f32 %v562, %v1164
    %v1169 = vxor.u32 %v1167, 2147483648
    %v1170 = vxor.u32 %v1168, 2147483648
    %v1171 = vmul.f32 %v1169, 1.442695
    %v1172 = vpow.pop %v1171
    %v1173 = vmul.f32 %v1170, 1.442695
    %v1174 = vpow.pop %v1173
    %v1175 = vadd.f32 %v1172, 1.0
    %v1176 = vadd.f32 %v1174, 1.0
    %v1177 = vrcp.pop %v1175
    %v1178 = vmul.f32 %v1175, %v1177
    %v1179 = vsub.f32 1.0, %v1178
    %v1180 = vmul.f32 %v1177, %v1179
    %v1181 = vadd.f32 %v1177, %v1180
    %vm1182 = vweird.f32 %v1175
    %vm1183 = vweird.f32 %v1177
    %vm1184 = vmor %vm1182, %vm1183
    %v1185 = vsel %vm1184, %v1177, %v1181
    %v1186 = vand.u32 2147483647, %v1175
    %vm1187 = vcmp.eq.f32.partialorder %v1186, 8.507059e+37
    %v1188 = vand.u32 %v1175, 2147483648
    %v1189 = vor.u32 1.1754944e-38, %v1188
    %v1190 = vsel %vm1187, %v1189, %v1185
    %v1191 = vmul.f32 1.0, %v1190
    %v1192 = vrcp.pop %v1176
    %v1193 = vmul.f32 %v1176, %v1192
    %v1194 = vsub.f32 1.0, %v1193
    %v1195 = vmul.f32 %v1192, %v1194
    %v1196 = vadd.f32 %v1192, %v1195
    %vm1197 = vweird.f32 %v1176
    %vm1198 = vweird.f32 %v1192
    %vm1199 = vmor %vm1197, %vm1198
    %v1200 = vsel %vm1199, %v1192, %v1196
    %v1201 = vand.u32 2147483647, %v1176
    %vm1202 = vcmp.eq.f32.partialorder %v1201, 8.507059e+37
    %v1203 = vand.u32 %v1176, 2147483648
    %v1204 = vor.u32 1.1754944e-38, %v1203
    %v1205 = vsel %vm1202, %v1204, %v1200
    %v1206 = vmul.f32 1.0, %v1205
    %v1207 = vtanh.pop %v1168
    %v1208 = vmul.f32 %v1191, %v1131
    %v1209 = vmul.f32 %v1191, %v1207
    %1211 = vrot.lane.b32.xlu0 %v1209, 64
    %v1212 = vpop.permute.xlu0 %1211
    %v1214 = vadd.f32 %v1208, %v1212
    %v1215 = vtanh.pop %v1214
    %v1216 = vmul.f32 %v1206, %v1215
    %v1217 = vpack.c.bf16 %v1216, %v1216
    %1219 = vrot.lane.b32.xlu0 %v1217, 64
    %v1220 = vpop.permute.xlu0 %1219
    %v1222 = vsel %vm635, %v1220, 0
    %1224 = vmatpush.bf16.msra.mxu0 0
    %1225 = vmatpush.bf16.msra.mxu0 0
    %1226 = vmatpush.bf16.msra.mxu0 0
    %1227 = vmatpush.bf16.msra.mxu0 0
    %1228 = vmatpush.bf16.msra.mxu0 %v625
    %1229 = vmatpush.bf16.msra.mxu0 %v623
    %1230 = vmatpush.bf16.msra.mxu0 %v621
    %1231 = vmatpush.bf16.msra.mxu0 %v619
    %1232 = vmatmul.bf16.gmra.mxu0 %v1222
    %v1233 = vpop.f32.mrf.mxu0
    %v1234 = vadd.f32 0.0, %v1233
    %v1235 = vpop.f32.mrf.mxu0
    %1236 = vdwg.mxu0
    %1237 = vmatpush.bf16.msra.mxu0 0
    %1238 = vmatpush.bf16.msra.mxu0 0
    %1239 = vmatpush.bf16.msra.mxu0 0
    %1240 = vmatpush.bf16.msra.mxu0 0
    %1241 = vmatpush.bf16.msra.mxu0 %v626
    %1242 = vmatpush.bf16.msra.mxu0 %v624
    %1243 = vmatpush.bf16.msra.mxu0 %v622
    %1244 = vmatpush.bf16.msra.mxu0 %v620
    %1245 = vmatmul.bf16.gmra.mxu0 %v1222
    %v1246 = vpop.f32.mrf.mxu0
    %v1247 = vadd.f32 0.0, %v1246
    %v1248 = vpop.f32.mrf.mxu0
    %1249 = vdwg.mxu0
    %v1250 = vadd.f32 %v506, %v1234
    %v1251 = vadd.f32 %v564, %v1247
    %v1252 = vxor.u32 %v1250, 2147483648
    %v1253 = vxor.u32 %v1251, 2147483648
    %v1254 = vmul.f32 %v1252, 1.442695
    %v1255 = vpow.pop %v1254
    %v1256 = vmul.f32 %v1253, 1.442695
    %v1257 = vpow.pop %v1256
    %v1258 = vadd.f32 %v1255, 1.0
    %v1259 = vadd.f32 %v1257, 1.0
    %v1260 = vrcp.pop %v1258
    %v1261 = vmul.f32 %v1258, %v1260
    %v1262 = vsub.f32 1.0, %v1261
    %v1263 = vmul.f32 %v1260, %v1262
    %v1264 = vadd.f32 %v1260, %v1263
    %vm1265 = vweird.f32 %v1258
    %vm1266 = vweird.f32 %v1260
    %vm1267 = vmor %vm1265, %vm1266
    %v1268 = vsel %vm1267, %v1260, %v1264
    %v1269 = vand.u32 2147483647, %v1258
    %vm1270 = vcmp.eq.f32.partialorder %v1269, 8.507059e+37
    %v1271 = vand.u32 %v1258, 2147483648
    %v1272 = vor.u32 1.1754944e-38, %v1271
    %v1273 = vsel %vm1270, %v1272, %v1268
    %v1274 = vmul.f32 1.0, %v1273
    %v1275 = vrcp.pop %v1259
    %v1276 = vmul.f32 %v1259, %v1275
    %v1277 = vsub.f32 1.0, %v1276
    %v1278 = vmul.f32 %v1275, %v1277
    %v1279 = vadd.f32 %v1275, %v1278
    %vm1280 = vweird.f32 %v1259
    %vm1281 = vweird.f32 %v1275
    %vm1282 = vmor %vm1280, %vm1281
    %v1283 = vsel %vm1282, %v1275, %v1279
    %v1284 = vand.u32 2147483647, %v1259
    %vm1285 = vcmp.eq.f32.partialorder %v1284, 8.507059e+37
    %v1286 = vand.u32 %v1259, 2147483648
    %v1287 = vor.u32 1.1754944e-38, %v1286
    %v1288 = vsel %vm1285, %v1287, %v1283
    %v1289 = vmul.f32 1.0, %v1288
    %v1290 = vtanh.pop %v1251
    %v1291 = vmul.f32 %v1274, %v1214
    %v1292 = vmul.f32 %v1274, %v1290
    %1294 = vrot.lane.b32.xlu0 %v1292, 64
    %v1295 = vpop.permute.xlu0 %1294
    %v1297 = vadd.f32 %v1291, %v1295
    %v1298 = vtanh.pop %v1297
    %v1299 = vmul.f32 %v1289, %v1298
    %1301 = vrot.lane.b32.xlu0 %v1299, 64
    %v1302 = vpop.permute.xlu0 %1301
    %vm1304 = vcmask 254976
    %1305 = vst.msk [vmem:[#allocation12] sm:$0x3] %vm1304, %v1302
    %1306 = vrot.lane.b32.xlu0 %v1299, 32
    %v1307 = vpop.permute.xlu0 %1306
    %s1309 = scalar_lea.vmem [#allocation12], 2
    %1310 = vst.msk [vmem:[%s1309] sm:$0x3] %vm1304, %v1307
    %1312 = vrot.lane.b32.xlu0 %v1297, 64
    %v1313 = vpop.permute.xlu0 %1312
    %1315 = vst.msk [vmem:[#allocation14] sm:$0x3] %vm1304, %v1313
    %1316 = vrot.lane.b32.xlu0 %v1297, 32
    %v1317 = vpop.permute.xlu0 %1316
    %s1319 = scalar_lea.vmem [#allocation14], 2
    %1320 = vst.msk [vmem:[%s1319] sm:$0x3] %vm1304, %v1317
    %1328 = vrot.lane.b32.xlu0 %v718, 64
    %v1329 = vpop.permute.xlu0 %1328
    %1330 = vrot.lane.b32.xlu0 %v801, 64
    %v1331 = vpop.permute.xlu0 %1330
    %1332 = vrot.lane.b32.xlu0 %v884, 64
    %v1333 = vpop.permute.xlu0 %1332
    %1334 = vrot.lane.b32.xlu0 %v967, 64
    %v1335 = vpop.permute.xlu0 %1334
    %1336 = vrot.lane.b32.xlu0 %v1050, 64
    %v1337 = vpop.permute.xlu0 %1336
    %1338 = vrot.lane.b32.xlu0 %v1133, 64
    %v1339 = vpop.permute.xlu0 %1338
    %1340 = vrot.lane.b32.xlu0 %v1216, 64
    %v1341 = vpop.permute.xlu0 %1340
    %v1349 = vsel %vm635, %v1329, %v1299
    %v1350 = vsel %vm635, %v1331, %v1216
    %v1351 = vsel %vm635, %v1333, %v1133
    %v1352 = vsel %vm635, %v1335, %v1050
    %v1353 = vsel %vm635, %v1337, %v967
    %v1354 = vsel %vm635, %v1339, %v884
    %v1355 = vsel %vm635, %v1341, %v801
    %v1356 = vsel %vm635, %v1302, %v718
    %v1357 = vpack.c.bf16 %v1350, %v1349
    %v1358 = vpack.c.bf16 %v1352, %v1351
    %v1359 = vpack.c.bf16 %v1354, %v1353
    %v1360 = vpack.c.bf16 %v1356, %v1355
    %v1361 = vld [vmem:[#allocation8] sm:$0xff]
    %v1362 = vld [vmem:[#allocation8 + $0x8] sm:$0xff]
    %v1363 = vld [vmem:[#allocation8 + $0x10] sm:$0xff]
    %v1364 = vld [vmem:[#allocation8 + $0x18] sm:$0xff]
    %v1365 = vld [vmem:[#allocation8 + $0x20] sm:$0xff]
    %v1366 = vld [vmem:[#allocation8 + $0x28] sm:$0xff]
    %v1367 = vld [vmem:[#allocation8 + $0x30] sm:$0xff]
    %v1368 = vld [vmem:[#allocation8 + $0x38] sm:$0xff]
    %v1369 = vld [vmem:[#allocation8 + $0x40] sm:$0xff]
    %v1370 = vld [vmem:[#allocation8 + $0x48] sm:$0xff]
    %v1371 = vld [vmem:[#allocation8 + $0x50] sm:$0xff]
    %v1372 = vld [vmem:[#allocation8 + $0x58] sm:$0xff]
    %v1373 = vld [vmem:[#allocation8 + $0x60] sm:$0xff]
    %v1374 = vld [vmem:[#allocation8 + $0x68] sm:$0xff]
    %v1375 = vld [vmem:[#allocation8 + $0x70] sm:$0xff]
    %v1376 = vld [vmem:[#allocation8 + $0x78] sm:$0xff]
    %s1377 = scalar_lea.vmem %s4, 2
    %v1378 = vld [vmem:[%s1377] sm:$0x3]
    %v1380 = vperm.slane %v1378, 0
    %v1381 = vperm.slane %v1378, 1
    %v1400 = vunpack.c.l.b16 %v1361
    %v1401 = vunpack.c.h.b16 %v1361
    %v1402 = vunpack.c.l.b16 %v1362
    %v1403 = vunpack.c.h.b16 %v1362
    %v1404 = vunpack.c.l.b16 %v1363
    %v1405 = vunpack.c.h.b16 %v1363
    %v1406 = vunpack.c.l.b16 %v1364
    %v1407 = vunpack.c.h.b16 %v1364
    %v1408 = vunpack.c.l.b16 %v1365
    %v1409 = vunpack.c.h.b16 %v1365
    %v1410 = vunpack.c.l.b16 %v1366
    %v1411 = vunpack.c.h.b16 %v1366
    %v1412 = vunpack.c.l.b16 %v1367
    %v1413 = vunpack.c.h.b16 %v1367
    %v1414 = vunpack.c.l.b16 %v1368
    %v1415 = vunpack.c.h.b16 %v1368
    %v1416 = vunpack.c.l.b16 %v1369
    %v1417 = vunpack.c.h.b16 %v1369
    %v1418 = vunpack.c.l.b16 %v1370
    %v1419 = vunpack.c.h.b16 %v1370
    %v1420 = vunpack.c.l.b16 %v1371
    %v1421 = vunpack.c.h.b16 %v1371
    %v1422 = vunpack.c.l.b16 %v1372
    %v1423 = vunpack.c.h.b16 %v1372
    %v1424 = vunpack.c.l.b16 %v1373
    %v1425 = vunpack.c.h.b16 %v1373
    %v1426 = vunpack.c.l.b16 %v1374
    %v1427 = vunpack.c.h.b16 %v1374
    %v1428 = vunpack.c.l.b16 %v1375
    %v1429 = vunpack.c.h.b16 %v1375
    %v1430 = vunpack.c.l.b16 %v1376
    %v1431 = vunpack.c.h.b16 %v1376
    %v1432 = vpack.c.b16 %v1402, %v1400
    %v1433 = vpack.c.b16 %v1403, %v1401
    %v1434 = vpack.c.b16 %v1406, %v1404
    %v1435 = vpack.c.b16 %v1407, %v1405
    %v1436 = vpack.c.b16 %v1410, %v1408
    %v1437 = vpack.c.b16 %v1411, %v1409
    %v1438 = vpack.c.b16 %v1414, %v1412
    %v1439 = vpack.c.b16 %v1415, %v1413
    %v1440 = vpack.c.b16 %v1418, %v1416
    %v1441 = vpack.c.b16 %v1419, %v1417
    %v1442 = vpack.c.b16 %v1422, %v1420
    %v1443 = vpack.c.b16 %v1423, %v1421
    %v1444 = vpack.c.b16 %v1426, %v1424
    %v1445 = vpack.c.b16 %v1427, %v1425
    %v1446 = vpack.c.b16 %v1430, %v1428
    %v1447 = vpack.c.b16 %v1431, %v1429
    %1464 = vmatpush.bf16.msra.mxu0 %v1446
    %1465 = vmatpush.bf16.msra.mxu0 %v1444
    %1466 = vmatpush.bf16.msra.mxu0 %v1442
    %1467 = vmatpush.bf16.msra.mxu0 %v1440
    %1468 = vmatpush.bf16.msra.mxu0 %v1438
    %1469 = vmatpush.bf16.msra.mxu0 %v1436
    %1470 = vmatpush.bf16.msra.mxu0 %v1434
    %1471 = vmatpush.bf16.msra.mxu0 %v1432
    %1472 = vmatmul.bf16.gmra.mxu0 %v1357
    %v1473 = vpop.f32.mrf.mxu0
    %v1474 = vadd.f32 %v1380, %v1473
    %v1475 = vpop.f32.mrf.mxu0
    %v1476 = vadd.f32 %v1380, %v1475
    %1477 = vmatmul.bf16.gmra.mxu0 %v1358
    %v1478 = vpop.f32.mrf.mxu0
    %v1479 = vadd.f32 %v1380, %v1478
    %v1480 = vpop.f32.mrf.mxu0
    %v1481 = vadd.f32 %v1380, %v1480
    %1482 = vmatmul.bf16.gmra.mxu0 %v1359
    %v1483 = vpop.f32.mrf.mxu0
    %v1484 = vadd.f32 %v1380, %v1483
    %v1485 = vpop.f32.mrf.mxu0
    %v1486 = vadd.f32 %v1380, %v1485
    %1487 = vmatmul.bf16.gmra.mxu0 %v1360
    %v1488 = vpop.f32.mrf.mxu0
    %v1489 = vadd.f32 %v1380, %v1488
    %v1490 = vpop.f32.mrf.mxu0
    %v1491 = vadd.f32 %v1380, %v1490
    %1492 = vdwg.mxu0
    %1493 = vmatpush.bf16.msra.mxu0 %v1447
    %1494 = vmatpush.bf16.msra.mxu0 %v1445
    %1495 = vmatpush.bf16.msra.mxu0 %v1443
    %1496 = vmatpush.bf16.msra.mxu0 %v1441
    %1497 = vmatpush.bf16.msra.mxu0 %v1439
    %1498 = vmatpush.bf16.msra.mxu0 %v1437
    %1499 = vmatpush.bf16.msra.mxu0 %v1435
    %1500 = vmatpush.bf16.msra.mxu0 %v1433
    %1501 = vmatmul.bf16.gmra.mxu0 %v1357
    %v1502 = vpop.f32.mrf.mxu0
    %v1503 = vadd.f32 %v1381, %v1502
    %v1504 = vpop.f32.mrf.mxu0
    %v1505 = vadd.f32 %v1381, %v1504
    %1506 = vmatmul.bf16.gmra.mxu0 %v1358
    %v1507 = vpop.f32.mrf.mxu0
    %v1508 = vadd.f32 %v1381, %v1507
    %v1509 = vpop.f32.mrf.mxu0
    %v1510 = vadd.f32 %v1381, %v1509
    %1511 = vmatmul.bf16.gmra.mxu0 %v1359
    %v1512 = vpop.f32.mrf.mxu0
    %v1513 = vadd.f32 %v1381, %v1512
    %v1514 = vpop.f32.mrf.mxu0
    %v1515 = vadd.f32 %v1381, %v1514
    %1516 = vmatmul.bf16.gmra.mxu0 %v1360
    %v1517 = vpop.f32.mrf.mxu0
    %v1518 = vadd.f32 %v1381, %v1517
    %v1519 = vpop.f32.mrf.mxu0
    %v1520 = vadd.f32 %v1381, %v1519
    %1521 = vdwg.mxu0
    %s1522 = scalar_lea.vmem [#allocation10], 64
    %v1523 = vld [vmem:[%s1522] sm:$0xff]
    %v1524 = vld [vmem:[%s1522 + $0x8] sm:$0xff]
    %v1525 = vld [vmem:[%s1522 + $0x10] sm:$0xff]
    %v1526 = vld [vmem:[%s1522 + $0x18] sm:$0xff]
    %v1527 = vld [vmem:[%s1522 + $0x20] sm:$0xff]
    %v1528 = vld [vmem:[%s1522 + $0x28] sm:$0xff]
    %v1529 = vld [vmem:[%s1522 + $0x30] sm:$0xff]
    %v1530 = vld [vmem:[%s1522 + $0x38] sm:$0xff]
    %s1531 = scalar_lea.vmem %s5, 4
    %v1532 = vld [vmem:[%s1531] sm:$0x3]
    %s1533 = scalar_lea.vmem %s5, 6
    %v1534 = vld [vmem:[%s1533] sm:$0x3]
    %1536 = vrot.lane.b32.xlu0 %v1534, 32
    %v1537 = vpop.permute.xlu0 %1536
    %v1539 = vsel %vm581, %v1532, %v1537
    %v1540 = vsel %vm583, %v1539, 0.0
    %s1541 = scalar_lea.vmem %s6, 4
    %v1542 = vld [vmem:[%s1541] sm:$0x3]
    %s1543 = scalar_lea.vmem %s6, 6
    %v1544 = vld [vmem:[%s1543] sm:$0x3]
    %1546 = vrot.lane.b32.xlu0 %v1544, 32
    %v1547 = vpop.permute.xlu0 %1546
    %v1549 = vsel %vm581, %v1542, %v1547
    %v1550 = vsel %vm583, %v1549, 0.0
    %v1551 = vpack.c.bf16 %v1540, %v1540
    %v1560 = vunpack.c.l.b16 %v1523
    %v1561 = vunpack.c.h.b16 %v1523
    %v1562 = vunpack.c.l.b16 %v1524
    %v1563 = vunpack.c.h.b16 %v1524
    %v1564 = vunpack.c.l.b16 %v1525
    %v1565 = vunpack.c.h.b16 %v1525
    %v1566 = vunpack.c.l.b16 %v1526
    %v1567 = vunpack.c.h.b16 %v1526
    %v1568 = vunpack.c.l.b16 %v1527
    %v1569 = vunpack.c.h.b16 %v1527
    %v1570 = vunpack.c.l.b16 %v1528
    %v1571 = vunpack.c.h.b16 %v1528
    %v1572 = vunpack.c.l.b16 %v1529
    %v1573 = vunpack.c.h.b16 %v1529
    %v1574 = vunpack.c.l.b16 %v1530
    %v1575 = vunpack.c.h.b16 %v1530
    %v1576 = vpack.c.b16 %v1562, %v1560
    %v1577 = vpack.c.b16 %v1563, %v1561
    %v1578 = vpack.c.b16 %v1566, %v1564
    %v1579 = vpack.c.b16 %v1567, %v1565
    %v1580 = vpack.c.b16 %v1570, %v1568
    %v1581 = vpack.c.b16 %v1571, %v1569
    %v1582 = vpack.c.b16 %v1574, %v1572
    %v1583 = vpack.c.b16 %v1575, %v1573
    %v1593 = vsel %vm635, %v1551, 0
    %1595 = vmatpush.bf16.msra.mxu0 0
    %1596 = vmatpush.bf16.msra.mxu0 0
    %1597 = vmatpush.bf16.msra.mxu0 0
    %1598 = vmatpush.bf16.msra.mxu0 0
    %1599 = vmatpush.bf16.msra.mxu0 %v1582
    %1600 = vmatpush.bf16.msra.mxu0 %v1580
    %1601 = vmatpush.bf16.msra.mxu0 %v1578
    %1602 = vmatpush.bf16.msra.mxu0 %v1576
    %1603 = vmatmul.bf16.gmra.mxu0 %v1593
    %v1604 = vpop.f32.mrf.mxu0
    %v1605 = vadd.f32 0.0, %v1604
    %v1606 = vpop.f32.mrf.mxu0
    %1607 = vdwg.mxu0
    %1608 = vmatpush.bf16.msra.mxu0 0
    %1609 = vmatpush.bf16.msra.mxu0 0
    %1610 = vmatpush.bf16.msra.mxu0 0
    %1611 = vmatpush.bf16.msra.mxu0 0
    %1612 = vmatpush.bf16.msra.mxu0 %v1583
    %1613 = vmatpush.bf16.msra.mxu0 %v1581
    %1614 = vmatpush.bf16.msra.mxu0 %v1579
    %1615 = vmatpush.bf16.msra.mxu0 %v1577
    %1616 = vmatmul.bf16.gmra.mxu0 %v1593
    %v1617 = vpop.f32.mrf.mxu0
    %v1618 = vadd.f32 0.0, %v1617
    %v1619 = vpop.f32.mrf.mxu0
    %1620 = vdwg.mxu0
    %v1621 = vadd.f32 %v1474, %v1605
    %v1622 = vadd.f32 %v1503, %v1618
    %v1623 = vxor.u32 %v1621, 2147483648
    %v1624 = vxor.u32 %v1622, 2147483648
    %v1625 = vmul.f32 %v1623, 1.442695
    %v1626 = vpow.pop %v1625
    %v1627 = vmul.f32 %v1624, 1.442695
    %v1628 = vpow.pop %v1627
    %v1629 = vadd.f32 %v1626, 1.0
    %v1630 = vadd.f32 %v1628, 1.0
    %v1631 = vrcp.pop %v1629
    %v1632 = vmul.f32 %v1629, %v1631
    %v1633 = vsub.f32 1.0, %v1632
    %v1634 = vmul.f32 %v1631, %v1633
    %v1635 = vadd.f32 %v1631, %v1634
    %vm1636 = vweird.f32 %v1629
    %vm1637 = vweird.f32 %v1631
    %vm1638 = vmor %vm1636, %vm1637
    %v1639 = vsel %vm1638, %v1631, %v1635
    %v1640 = vand.u32 2147483647, %v1629
    %vm1641 = vcmp.eq.f32.partialorder %v1640, 8.507059e+37
    %v1642 = vand.u32 %v1629, 2147483648
    %v1643 = vor.u32 1.1754944e-38, %v1642
    %v1644 = vsel %vm1641, %v1643, %v1639
    %v1645 = vmul.f32 1.0, %v1644
    %v1646 = vrcp.pop %v1630
    %v1647 = vmul.f32 %v1630, %v1646
    %v1648 = vsub.f32 1.0, %v1647
    %v1649 = vmul.f32 %v1646, %v1648
    %v1650 = vadd.f32 %v1646, %v1649
    %vm1651 = vweird.f32 %v1630
    %vm1652 = vweird.f32 %v1646
    %vm1653 = vmor %vm1651, %vm1652
    %v1654 = vsel %vm1653, %v1646, %v1650
    %v1655 = vand.u32 2147483647, %v1630
    %vm1656 = vcmp.eq.f32.partialorder %v1655, 8.507059e+37
    %v1657 = vand.u32 %v1630, 2147483648
    %v1658 = vor.u32 1.1754944e-38, %v1657
    %v1659 = vsel %vm1656, %v1658, %v1654
    %v1660 = vmul.f32 1.0, %v1659
    %v1661 = vtanh.pop %v1622
    %1663 = vrot.lane.b32.xlu0 %v1550, 64
    %v1664 = vpop.permute.xlu0 %1663
    %v1666 = vmul.f32 %v1645, %v1664
    %v1667 = vmul.f32 %v1645, %v1661
    %1669 = vrot.lane.b32.xlu0 %v1667, 64
    %v1670 = vpop.permute.xlu0 %1669
    %v1672 = vadd.f32 %v1666, %v1670
    %v1673 = vtanh.pop %v1672
    %v1674 = vmul.f32 %v1660, %v1673
    %v1675 = vpack.c.bf16 %v1674, %v1674
    %1677 = vrot.lane.b32.xlu0 %v1675, 64
    %v1678 = vpop.permute.xlu0 %1677
    %v1680 = vsel %vm635, %v1678, 0
    %1682 = vmatpush.bf16.msra.mxu0 0
    %1683 = vmatpush.bf16.msra.mxu0 0
    %1684 = vmatpush.bf16.msra.mxu0 0
    %1685 = vmatpush.bf16.msra.mxu0 0
    %1686 = vmatpush.bf16.msra.mxu0 %v1582
    %1687 = vmatpush.bf16.msra.mxu0 %v1580
    %1688 = vmatpush.bf16.msra.mxu0 %v1578
    %1689 = vmatpush.bf16.msra.mxu0 %v1576
    %1690 = vmatmul.bf16.gmra.mxu0 %v1680
    %v1691 = vpop.f32.mrf.mxu0
    %v1692 = vadd.f32 0.0, %v1691
    %v1693 = vpop.f32.mrf.mxu0
    %1694 = vdwg.mxu0
    %1695 = vmatpush.bf16.msra.mxu0 0
    %1696 = vmatpush.bf16.msra.mxu0 0
    %1697 = vmatpush.bf16.msra.mxu0 0
    %1698 = vmatpush.bf16.msra.mxu0 0
    %1699 = vmatpush.bf16.msra.mxu0 %v1583
    %1700 = vmatpush.bf16.msra.mxu0 %v1581
    %1701 = vmatpush.bf16.msra.mxu0 %v1579
    %1702 = vmatpush.bf16.msra.mxu0 %v1577
    %1703 = vmatmul.bf16.gmra.mxu0 %v1680
    %v1704 = vpop.f32.mrf.mxu0
    %v1705 = vadd.f32 0.0, %v1704
    %v1706 = vpop.f32.mrf.mxu0
    %1707 = vdwg.mxu0
    %v1708 = vadd.f32 %v1476, %v1692
    %v1709 = vadd.f32 %v1505, %v1705
    %v1710 = vxor.u32 %v1708, 2147483648
    %v1711 = vxor.u32 %v1709, 2147483648
    %v1712 = vmul.f32 %v1710, 1.442695
    %v1713 = vpow.pop %v1712
    %v1714 = vmul.f32 %v1711, 1.442695
    %v1715 = vpow.pop %v1714
    %v1716 = vadd.f32 %v1713, 1.0
    %v1717 = vadd.f32 %v1715, 1.0
    %v1718 = vrcp.pop %v1716
    %v1719 = vmul.f32 %v1716, %v1718
    %v1720 = vsub.f32 1.0, %v1719
    %v1721 = vmul.f32 %v1718, %v1720
    %v1722 = vadd.f32 %v1718, %v1721
    %vm1723 = vweird.f32 %v1716
    %vm1724 = vweird.f32 %v1718
    %vm1725 = vmor %vm1723, %vm1724
    %v1726 = vsel %vm1725, %v1718, %v1722
    %v1727 = vand.u32 2147483647, %v1716
    %vm1728 = vcmp.eq.f32.partialorder %v1727, 8.507059e+37
    %v1729 = vand.u32 %v1716, 2147483648
    %v1730 = vor.u32 1.1754944e-38, %v1729
    %v1731 = vsel %vm1728, %v1730, %v1726
    %v1732 = vmul.f32 1.0, %v1731
    %v1733 = vrcp.pop %v1717
    %v1734 = vmul.f32 %v1717, %v1733
    %v1735 = vsub.f32 1.0, %v1734
    %v1736 = vmul.f32 %v1733, %v1735
    %v1737 = vadd.f32 %v1733, %v1736
    %vm1738 = vweird.f32 %v1717
    %vm1739 = vweird.f32 %v1733
    %vm1740 = vmor %vm1738, %vm1739
    %v1741 = vsel %vm1740, %v1733, %v1737
    %v1742 = vand.u32 2147483647, %v1717
    %vm1743 = vcmp.eq.f32.partialorder %v1742, 8.507059e+37
    %v1744 = vand.u32 %v1717, 2147483648
    %v1745 = vor.u32 1.1754944e-38, %v1744
    %v1746 = vsel %vm1743, %v1745, %v1741
    %v1747 = vmul.f32 1.0, %v1746
    %v1748 = vtanh.pop %v1709
    %v1749 = vmul.f32 %v1732, %v1672
    %v1750 = vmul.f32 %v1732, %v1748
    %1752 = vrot.lane.b32.xlu0 %v1750, 64
    %v1753 = vpop.permute.xlu0 %1752
    %v1755 = vadd.f32 %v1749, %v1753
    %v1756 = vtanh.pop %v1755
    %v1757 = vmul.f32 %v1747, %v1756
    %v1758 = vpack.c.bf16 %v1757, %v1757
    %1760 = vrot.lane.b32.xlu0 %v1758, 64
    %v1761 = vpop.permute.xlu0 %1760
    %v1763 = vsel %vm635, %v1761, 0
    %1765 = vmatpush.bf16.msra.mxu0 0
    %1766 = vmatpush.bf16.msra.mxu0 0
    %1767 = vmatpush.bf16.msra.mxu0 0
    %1768 = vmatpush.bf16.msra.mxu0 0
    %1769 = vmatpush.bf16.msra.mxu0 %v1582
    %1770 = vmatpush.bf16.msra.mxu0 %v1580
    %1771 = vmatpush.bf16.msra.mxu0 %v1578
    %1772 = vmatpush.bf16.msra.mxu0 %v1576
    %1773 = vmatmul.bf16.gmra.mxu0 %v1763
    %v1774 = vpop.f32.mrf.mxu0
    %v1775 = vadd.f32 0.0, %v1774
    %v1776 = vpop.f32.mrf.mxu0
    %1777 = vdwg.mxu0
    %1778 = vmatpush.bf16.msra.mxu0 0
    %1779 = vmatpush.bf16.msra.mxu0 0
    %1780 = vmatpush.bf16.msra.mxu0 0
    %1781 = vmatpush.bf16.msra.mxu0 0
    %1782 = vmatpush.bf16.msra.mxu0 %v1583
    %1783 = vmatpush.bf16.msra.mxu0 %v1581
    %1784 = vmatpush.bf16.msra.mxu0 %v1579
    %1785 = vmatpush.bf16.msra.mxu0 %v1577
    %1786 = vmatmul.bf16.gmra.mxu0 %v1763
    %v1787 = vpop.f32.mrf.mxu0
    %v1788 = vadd.f32 0.0, %v1787
    %v1789 = vpop.f32.mrf.mxu0
    %1790 = vdwg.mxu0
    %v1791 = vadd.f32 %v1479, %v1775
    %v1792 = vadd.f32 %v1508, %v1788
    %v1793 = vxor.u32 %v1791, 2147483648
    %v1794 = vxor.u32 %v1792, 2147483648
    %v1795 = vmul.f32 %v1793, 1.442695
    %v1796 = vpow.pop %v1795
    %v1797 = vmul.f32 %v1794, 1.442695
    %v1798 = vpow.pop %v1797
    %v1799 = vadd.f32 %v1796, 1.0
    %v1800 = vadd.f32 %v1798, 1.0
    %v1801 = vrcp.pop %v1799
    %v1802 = vmul.f32 %v1799, %v1801
    %v1803 = vsub.f32 1.0, %v1802
    %v1804 = vmul.f32 %v1801, %v1803
    %v1805 = vadd.f32 %v1801, %v1804
    %vm1806 = vweird.f32 %v1799
    %vm1807 = vweird.f32 %v1801
    %vm1808 = vmor %vm1806, %vm1807
    %v1809 = vsel %vm1808, %v1801, %v1805
    %v1810 = vand.u32 2147483647, %v1799
    %vm1811 = vcmp.eq.f32.partialorder %v1810, 8.507059e+37
    %v1812 = vand.u32 %v1799, 2147483648
    %v1813 = vor.u32 1.1754944e-38, %v1812
    %v1814 = vsel %vm1811, %v1813, %v1809
    %v1815 = vmul.f32 1.0, %v1814
    %v1816 = vrcp.pop %v1800
    %v1817 = vmul.f32 %v1800, %v1816
    %v1818 = vsub.f32 1.0, %v1817
    %v1819 = vmul.f32 %v1816, %v1818
    %v1820 = vadd.f32 %v1816, %v1819
    %vm1821 = vweird.f32 %v1800
    %vm1822 = vweird.f32 %v1816
    %vm1823 = vmor %vm1821, %vm1822
    %v1824 = vsel %vm1823, %v1816, %v1820
    %v1825 = vand.u32 2147483647, %v1800
    %vm1826 = vcmp.eq.f32.partialorder %v1825, 8.507059e+37
    %v1827 = vand.u32 %v1800, 2147483648
    %v1828 = vor.u32 1.1754944e-38, %v1827
    %v1829 = vsel %vm1826, %v1828, %v1824
    %v1830 = vmul.f32 1.0, %v1829
    %v1831 = vtanh.pop %v1792
    %v1832 = vmul.f32 %v1815, %v1755
    %v1833 = vmul.f32 %v1815, %v1831
    %1835 = vrot.lane.b32.xlu0 %v1833, 64
    %v1836 = vpop.permute.xlu0 %1835
    %v1838 = vadd.f32 %v1832, %v1836
    %v1839 = vtanh.pop %v1838
    %v1840 = vmul.f32 %v1830, %v1839
    %v1841 = vpack.c.bf16 %v1840, %v1840
    %1843 = vrot.lane.b32.xlu0 %v1841, 64
    %v1844 = vpop.permute.xlu0 %1843
    %v1846 = vsel %vm635, %v1844, 0
    %1848 = vmatpush.bf16.msra.mxu0 0
    %1849 = vmatpush.bf16.msra.mxu0 0
    %1850 = vmatpush.bf16.msra.mxu0 0
    %1851 = vmatpush.bf16.msra.mxu0 0
    %1852 = vmatpush.bf16.msra.mxu0 %v1582
    %1853 = vmatpush.bf16.msra.mxu0 %v1580
    %1854 = vmatpush.bf16.msra.mxu0 %v1578
    %1855 = vmatpush.bf16.msra.mxu0 %v1576
    %1856 = vmatmul.bf16.gmra.mxu0 %v1846
    %v1857 = vpop.f32.mrf.mxu0
    %v1858 = vadd.f32 0.0, %v1857
    %v1859 = vpop.f32.mrf.mxu0
    %1860 = vdwg.mxu0
    %1861 = vmatpush.bf16.msra.mxu0 0
    %1862 = vmatpush.bf16.msra.mxu0 0
    %1863 = vmatpush.bf16.msra.mxu0 0
    %1864 = vmatpush.bf16.msra.mxu0 0
    %1865 = vmatpush.bf16.msra.mxu0 %v1583
    %1866 = vmatpush.bf16.msra.mxu0 %v1581
    %1867 = vmatpush.bf16.msra.mxu0 %v1579
    %1868 = vmatpush.bf16.msra.mxu0 %v1577
    %1869 = vmatmul.bf16.gmra.mxu0 %v1846
    %v1870 = vpop.f32.mrf.mxu0
    %v1871 = vadd.f32 0.0, %v1870
    %v1872 = vpop.f32.mrf.mxu0
    %1873 = vdwg.mxu0
    %v1874 = vadd.f32 %v1481, %v1858
    %v1875 = vadd.f32 %v1510, %v1871
    %v1876 = vxor.u32 %v1874, 2147483648
    %v1877 = vxor.u32 %v1875, 2147483648
    %v1878 = vmul.f32 %v1876, 1.442695
    %v1879 = vpow.pop %v1878
    %v1880 = vmul.f32 %v1877, 1.442695
    %v1881 = vpow.pop %v1880
    %v1882 = vadd.f32 %v1879, 1.0
    %v1883 = vadd.f32 %v1881, 1.0
    %v1884 = vrcp.pop %v1882
    %v1885 = vmul.f32 %v1882, %v1884
    %v1886 = vsub.f32 1.0, %v1885
    %v1887 = vmul.f32 %v1884, %v1886
    %v1888 = vadd.f32 %v1884, %v1887
    %vm1889 = vweird.f32 %v1882
    %vm1890 = vweird.f32 %v1884
    %vm1891 = vmor %vm1889, %vm1890
    %v1892 = vsel %vm1891, %v1884, %v1888
    %v1893 = vand.u32 2147483647, %v1882
    %vm1894 = vcmp.eq.f32.partialorder %v1893, 8.507059e+37
    %v1895 = vand.u32 %v1882, 2147483648
    %v1896 = vor.u32 1.1754944e-38, %v1895
    %v1897 = vsel %vm1894, %v1896, %v1892
    %v1898 = vmul.f32 1.0, %v1897
    %v1899 = vrcp.pop %v1883
    %v1900 = vmul.f32 %v1883, %v1899
    %v1901 = vsub.f32 1.0, %v1900
    %v1902 = vmul.f32 %v1899, %v1901
    %v1903 = vadd.f32 %v1899, %v1902
    %vm1904 = vweird.f32 %v1883
    %vm1905 = vweird.f32 %v1899
    %vm1906 = vmor %vm1904, %vm1905
    %v1907 = vsel %vm1906, %v1899, %v1903
    %v1908 = vand.u32 2147483647, %v1883
    %vm1909 = vcmp.eq.f32.partialorder %v1908, 8.507059e+37
    %v1910 = vand.u32 %v1883, 2147483648
    %v1911 = vor.u32 1.1754944e-38, %v1910
    %v1912 = vsel %vm1909, %v1911, %v1907
    %v1913 = vmul.f32 1.0, %v1912
    %v1914 = vtanh.pop %v1875
    %v1915 = vmul.f32 %v1898, %v1838
    %v1916 = vmul.f32 %v1898, %v1914
    %1918 = vrot.lane.b32.xlu0 %v1916, 64
    %v1919 = vpop.permute.xlu0 %1918
    %v1921 = vadd.f32 %v1915, %v1919
    %v1922 = vtanh.pop %v1921
    %v1923 = vmul.f32 %v1913, %v1922
    %v1924 = vpack.c.bf16 %v1923, %v1923
    %1926 = vrot.lane.b32.xlu0 %v1924, 64
    %v1927 = vpop.permute.xlu0 %1926
    %v1929 = vsel %vm635, %v1927, 0
    %1931 = vmatpush.bf16.msra.mxu0 0
    %1932 = vmatpush.bf16.msra.mxu0 0
    %1933 = vmatpush.bf16.msra.mxu0 0
    %1934 = vmatpush.bf16.msra.mxu0 0
    %1935 = vmatpush.bf16.msra.mxu0 %v1582
    %1936 = vmatpush.bf16.msra.mxu0 %v1580
    %1937 = vmatpush.bf16.msra.mxu0 %v1578
    %1938 = vmatpush.bf16.msra.mxu0 %v1576
    %1939 = vmatmul.bf16.gmra.mxu0 %v1929
    %v1940 = vpop.f32.mrf.mxu0
    %v1941 = vadd.f32 0.0, %v1940
    %v1942 = vpop.f32.mrf.mxu0
    %1943 = vdwg.mxu0
    %1944 = vmatpush.bf16.msra.mxu0 0
    %1945 = vmatpush.bf16.msra.mxu0 0
    %1946 = vmatpush.bf16.msra.mxu0 0
    %1947 = vmatpush.bf16.msra.mxu0 0
    %1948 = vmatpush.bf16.msra.mxu0 %v1583
    %1949 = vmatpush.bf16.msra.mxu0 %v1581
    %1950 = vmatpush.bf16.msra.mxu0 %v1579
    %1951 = vmatpush.bf16.msra.mxu0 %v1577
    %1952 = vmatmul.bf16.gmra.mxu0 %v1929
    %v1953 = vpop.f32.mrf.mxu0
    %v1954 = vadd.f32 0.0, %v1953
    %v1955 = vpop.f32.mrf.mxu0
    %1956 = vdwg.mxu0
    %v1957 = vadd.f32 %v1484, %v1941
    %v1958 = vadd.f32 %v1513, %v1954
    %v1959 = vxor.u32 %v1957, 2147483648
    %v1960 = vxor.u32 %v1958, 2147483648
    %v1961 = vmul.f32 %v1959, 1.442695
    %v1962 = vpow.pop %v1961
    %v1963 = vmul.f32 %v1960, 1.442695
    %v1964 = vpow.pop %v1963
    %v1965 = vadd.f32 %v1962, 1.0
    %v1966 = vadd.f32 %v1964, 1.0
    %v1967 = vrcp.pop %v1965
    %v1968 = vmul.f32 %v1965, %v1967
    %v1969 = vsub.f32 1.0, %v1968
    %v1970 = vmul.f32 %v1967, %v1969
    %v1971 = vadd.f32 %v1967, %v1970
    %vm1972 = vweird.f32 %v1965
    %vm1973 = vweird.f32 %v1967
    %vm1974 = vmor %vm1972, %vm1973
    %v1975 = vsel %vm1974, %v1967, %v1971
    %v1976 = vand.u32 2147483647, %v1965
    %vm1977 = vcmp.eq.f32.partialorder %v1976, 8.507059e+37
    %v1978 = vand.u32 %v1965, 2147483648
    %v1979 = vor.u32 1.1754944e-38, %v1978
    %v1980 = vsel %vm1977, %v1979, %v1975
    %v1981 = vmul.f32 1.0, %v1980
    %v1982 = vrcp.pop %v1966
    %v1983 = vmul.f32 %v1966, %v1982
    %v1984 = vsub.f32 1.0, %v1983
    %v1985 = vmul.f32 %v1982, %v1984
    %v1986 = vadd.f32 %v1982, %v1985
    %vm1987 = vweird.f32 %v1966
    %vm1988 = vweird.f32 %v1982
    %vm1989 = vmor %vm1987, %vm1988
    %v1990 = vsel %vm1989, %v1982, %v1986
    %v1991 = vand.u32 2147483647, %v1966
    %vm1992 = vcmp.eq.f32.partialorder %v1991, 8.507059e+37
    %v1993 = vand.u32 %v1966, 2147483648
    %v1994 = vor.u32 1.1754944e-38, %v1993
    %v1995 = vsel %vm1992, %v1994, %v1990
    %v1996 = vmul.f32 1.0, %v1995
    %v1997 = vtanh.pop %v1958
    %v1998 = vmul.f32 %v1981, %v1921
    %v1999 = vmul.f32 %v1981, %v1997
    %2001 = vrot.lane.b32.xlu0 %v1999, 64
    %v2002 = vpop.permute.xlu0 %2001
    %v2004 = vadd.f32 %v1998, %v2002
    %v2005 = vtanh.pop %v2004
    %v2006 = vmul.f32 %v1996, %v2005
    %v2007 = vpack.c.bf16 %v2006, %v2006
    %2009 = vrot.lane.b32.xlu0 %v2007, 64
    %v2010 = vpop.permute.xlu0 %2009
    %v2012 = vsel %vm635, %v2010, 0
    %2014 = vmatpush.bf16.msra.mxu0 0
    %2015 = vmatpush.bf16.msra.mxu0 0
    %2016 = vmatpush.bf16.msra.mxu0 0
    %2017 = vmatpush.bf16.msra.mxu0 0
    %2018 = vmatpush.bf16.msra.mxu0 %v1582
    %2019 = vmatpush.bf16.msra.mxu0 %v1580
    %2020 = vmatpush.bf16.msra.mxu0 %v1578
    %2021 = vmatpush.bf16.msra.mxu0 %v1576
    %2022 = vmatmul.bf16.gmra.mxu0 %v2012
    %v2023 = vpop.f32.mrf.mxu0
    %v2024 = vadd.f32 0.0, %v2023
    %v2025 = vpop.f32.mrf.mxu0
    %2026 = vdwg.mxu0
    %2027 = vmatpush.bf16.msra.mxu0 0
    %2028 = vmatpush.bf16.msra.mxu0 0
    %2029 = vmatpush.bf16.msra.mxu0 0
    %2030 = vmatpush.bf16.msra.mxu0 0
    %2031 = vmatpush.bf16.msra.mxu0 %v1583
    %2032 = vmatpush.bf16.msra.mxu0 %v1581
    %2033 = vmatpush.bf16.msra.mxu0 %v1579
    %2034 = vmatpush.bf16.msra.mxu0 %v1577
    %2035 = vmatmul.bf16.gmra.mxu0 %v2012
    %v2036 = vpop.f32.mrf.mxu0
    %v2037 = vadd.f32 0.0, %v2036
    %v2038 = vpop.f32.mrf.mxu0
    %2039 = vdwg.mxu0
    %v2040 = vadd.f32 %v1486, %v2024
    %v2041 = vadd.f32 %v1515, %v2037
    %v2042 = vxor.u32 %v2040, 2147483648
    %v2043 = vxor.u32 %v2041, 2147483648
    %v2044 = vmul.f32 %v2042, 1.442695
    %v2045 = vpow.pop %v2044
    %v2046 = vmul.f32 %v2043, 1.442695
    %v2047 = vpow.pop %v2046
    %v2048 = vadd.f32 %v2045, 1.0
    %v2049 = vadd.f32 %v2047, 1.0
    %v2050 = vrcp.pop %v2048
    %v2051 = vmul.f32 %v2048, %v2050
    %v2052 = vsub.f32 1.0, %v2051
    %v2053 = vmul.f32 %v2050, %v2052
    %v2054 = vadd.f32 %v2050, %v2053
    %vm2055 = vweird.f32 %v2048
    %vm2056 = vweird.f32 %v2050
    %vm2057 = vmor %vm2055, %vm2056
    %v2058 = vsel %vm2057, %v2050, %v2054
    %v2059 = vand.u32 2147483647, %v2048
    %vm2060 = vcmp.eq.f32.partialorder %v2059, 8.507059e+37
    %v2061 = vand.u32 %v2048, 2147483648
    %v2062 = vor.u32 1.1754944e-38, %v2061
    %v2063 = vsel %vm2060, %v2062, %v2058
    %v2064 = vmul.f32 1.0, %v2063
    %v2065 = vrcp.pop %v2049
    %v2066 = vmul.f32 %v2049, %v2065
    %v2067 = vsub.f32 1.0, %v2066
    %v2068 = vmul.f32 %v2065, %v2067
    %v2069 = vadd.f32 %v2065, %v2068
    %vm2070 = vweird.f32 %v2049
    %vm2071 = vweird.f32 %v2065
    %vm2072 = vmor %vm2070, %vm2071
    %v2073 = vsel %vm2072, %v2065, %v2069
    %v2074 = vand.u32 2147483647, %v2049
    %vm2075 = vcmp.eq.f32.partialorder %v2074, 8.507059e+37
    %v2076 = vand.u32 %v2049, 2147483648
    %v2077 = vor.u32 1.1754944e-38, %v2076
    %v2078 = vsel %vm2075, %v2077, %v2073
    %v2079 = vmul.f32 1.0, %v2078
    %v2080 = vtanh.pop %v2041
    %v2081 = vmul.f32 %v2064, %v2004
    %v2082 = vmul.f32 %v2064, %v2080
    %2084 = vrot.lane.b32.xlu0 %v2082, 64
    %v2085 = vpop.permute.xlu0 %2084
    %v2087 = vadd.f32 %v2081, %v2085
    %v2088 = vtanh.pop %v2087
    %v2089 = vmul.f32 %v2079, %v2088
    %v2090 = vpack.c.bf16 %v2089, %v2089
    %2092 = vrot.lane.b32.xlu0 %v2090, 64
    %v2093 = vpop.permute.xlu0 %2092
    %v2095 = vsel %vm635, %v2093, 0
    %2097 = vmatpush.bf16.msra.mxu0 0
    %2098 = vmatpush.bf16.msra.mxu0 0
    %2099 = vmatpush.bf16.msra.mxu0 0
    %2100 = vmatpush.bf16.msra.mxu0 0
    %2101 = vmatpush.bf16.msra.mxu0 %v1582
    %2102 = vmatpush.bf16.msra.mxu0 %v1580
    %2103 = vmatpush.bf16.msra.mxu0 %v1578
    %2104 = vmatpush.bf16.msra.mxu0 %v1576
    %2105 = vmatmul.bf16.gmra.mxu0 %v2095
    %v2106 = vpop.f32.mrf.mxu0
    %v2107 = vadd.f32 0.0, %v2106
    %v2108 = vpop.f32.mrf.mxu0
    %2109 = vdwg.mxu0
    %2110 = vmatpush.bf16.msra.mxu0 0
    %2111 = vmatpush.bf16.msra.mxu0 0
    %2112 = vmatpush.bf16.msra.mxu0 0
    %2113 = vmatpush.bf16.msra.mxu0 0
    %2114 = vmatpush.bf16.msra.mxu0 %v1583
    %2115 = vmatpush.bf16.msra.mxu0 %v1581
    %2116 = vmatpush.bf16.msra.mxu0 %v1579
    %2117 = vmatpush.bf16.msra.mxu0 %v1577
    %2118 = vmatmul.bf16.gmra.mxu0 %v2095
    %v2119 = vpop.f32.mrf.mxu0
    %v2120 = vadd.f32 0.0, %v2119
    %v2121 = vpop.f32.mrf.mxu0
    %2122 = vdwg.mxu0
    %v2123 = vadd.f32 %v1489, %v2107
    %v2124 = vadd.f32 %v1518, %v2120
    %v2125 = vxor.u32 %v2123, 2147483648
    %v2126 = vxor.u32 %v2124, 2147483648
    %v2127 = vmul.f32 %v2125, 1.442695
    %v2128 = vpow.pop %v2127
    %v2129 = vmul.f32 %v2126, 1.442695
    %v2130 = vpow.pop %v2129
    %v2131 = vadd.f32 %v2128, 1.0
    %v2132 = vadd.f32 %v2130, 1.0
    %v2133 = vrcp.pop %v2131
    %v2134 = vmul.f32 %v2131, %v2133
    %v2135 = vsub.f32 1.0, %v2134
    %v2136 = vmul.f32 %v2133, %v2135
    %v2137 = vadd.f32 %v2133, %v2136
    %vm2138 = vweird.f32 %v2131
    %vm2139 = vweird.f32 %v2133
    %vm2140 = vmor %vm2138, %vm2139
    %v2141 = vsel %vm2140, %v2133, %v2137
    %v2142 = vand.u32 2147483647, %v2131
    %vm2143 = vcmp.eq.f32.partialorder %v2142, 8.507059e+37
    %v2144 = vand.u32 %v2131, 2147483648
    %v2145 = vor.u32 1.1754944e-38, %v2144
    %v2146 = vsel %vm2143, %v2145, %v2141
    %v2147 = vmul.f32 1.0, %v2146
    %v2148 = vrcp.pop %v2132
    %v2149 = vmul.f32 %v2132, %v2148
    %v2150 = vsub.f32 1.0, %v2149
    %v2151 = vmul.f32 %v2148, %v2150
    %v2152 = vadd.f32 %v2148, %v2151
    %vm2153 = vweird.f32 %v2132
    %vm2154 = vweird.f32 %v2148
    %vm2155 = vmor %vm2153, %vm2154
    %v2156 = vsel %vm2155, %v2148, %v2152
    %v2157 = vand.u32 2147483647, %v2132
    %vm2158 = vcmp.eq.f32.partialorder %v2157, 8.507059e+37
    %v2159 = vand.u32 %v2132, 2147483648
    %v2160 = vor.u32 1.1754944e-38, %v2159
    %v2161 = vsel %vm2158, %v2160, %v2156
    %v2162 = vmul.f32 1.0, %v2161
    %v2163 = vtanh.pop %v2124
    %v2164 = vmul.f32 %v2147, %v2087
    %v2165 = vmul.f32 %v2147, %v2163
    %2167 = vrot.lane.b32.xlu0 %v2165, 64
    %v2168 = vpop.permute.xlu0 %2167
    %v2170 = vadd.f32 %v2164, %v2168
    %v2171 = vtanh.pop %v2170
    %v2172 = vmul.f32 %v2162, %v2171
    %v2173 = vpack.c.bf16 %v2172, %v2172
    %2175 = vrot.lane.b32.xlu0 %v2173, 64
    %v2176 = vpop.permute.xlu0 %2175
    %v2178 = vsel %vm635, %v2176, 0
    %2180 = vmatpush.bf16.msra.mxu0 0
    %2181 = vmatpush.bf16.msra.mxu0 0
    %2182 = vmatpush.bf16.msra.mxu0 0
    %2183 = vmatpush.bf16.msra.mxu0 0
    %2184 = vmatpush.bf16.msra.mxu0 %v1582
    %2185 = vmatpush.bf16.msra.mxu0 %v1580
    %2186 = vmatpush.bf16.msra.mxu0 %v1578
    %2187 = vmatpush.bf16.msra.mxu0 %v1576
    %2188 = vmatmul.bf16.gmra.mxu0 %v2178
    %v2189 = vpop.f32.mrf.mxu0
    %v2190 = vadd.f32 0.0, %v2189
    %v2191 = vpop.f32.mrf.mxu0
    %2192 = vdwg.mxu0
    %2193 = vmatpush.bf16.msra.mxu0 0
    %2194 = vmatpush.bf16.msra.mxu0 0
    %2195 = vmatpush.bf16.msra.mxu0 0
    %2196 = vmatpush.bf16.msra.mxu0 0
    %2197 = vmatpush.bf16.msra.mxu0 %v1583
    %2198 = vmatpush.bf16.msra.mxu0 %v1581
    %2199 = vmatpush.bf16.msra.mxu0 %v1579
    %2200 = vmatpush.bf16.msra.mxu0 %v1577
    %2201 = vmatmul.bf16.gmra.mxu0 %v2178
    %v2202 = vpop.f32.mrf.mxu0
    %v2203 = vadd.f32 0.0, %v2202
    %v2204 = vpop.f32.mrf.mxu0
    %2205 = vdwg.mxu0
    %v2206 = vadd.f32 %v1491, %v2190
    %v2207 = vadd.f32 %v1520, %v2203
    %v2208 = vxor.u32 %v2206, 2147483648
    %v2209 = vxor.u32 %v2207, 2147483648
    %v2210 = vmul.f32 %v2208, 1.442695
    %v2211 = vpow.pop %v2210
    %v2212 = vmul.f32 %v2209, 1.442695
    %v2213 = vpow.pop %v2212
    %v2214 = vadd.f32 %v2211, 1.0
    %v2215 = vadd.f32 %v2213, 1.0
    %v2216 = vrcp.pop %v2214
    %v2217 = vmul.f32 %v2214, %v2216
    %v2218 = vsub.f32 1.0, %v2217
    %v2219 = vmul.f32 %v2216, %v2218
    %v2220 = vadd.f32 %v2216, %v2219
    %vm2221 = vweird.f32 %v2214
    %vm2222 = vweird.f32 %v2216
    %vm2223 = vmor %vm2221, %vm2222
    %v2224 = vsel %vm2223, %v2216, %v2220
    %v2225 = vand.u32 2147483647, %v2214
    %vm2226 = vcmp.eq.f32.partialorder %v2225, 8.507059e+37
    %v2227 = vand.u32 %v2214, 2147483648
    %v2228 = vor.u32 1.1754944e-38, %v2227
    %v2229 = vsel %vm2226, %v2228, %v2224
    %v2230 = vmul.f32 1.0, %v2229
    %v2231 = vrcp.pop %v2215
    %v2232 = vmul.f32 %v2215, %v2231
    %v2233 = vsub.f32 1.0, %v2232
    %v2234 = vmul.f32 %v2231, %v2233
    %v2235 = vadd.f32 %v2231, %v2234
    %vm2236 = vweird.f32 %v2215
    %vm2237 = vweird.f32 %v2231
    %vm2238 = vmor %vm2236, %vm2237
    %v2239 = vsel %vm2238, %v2231, %v2235
    %v2240 = vand.u32 2147483647, %v2215
    %vm2241 = vcmp.eq.f32.partialorder %v2240, 8.507059e+37
    %v2242 = vand.u32 %v2215, 2147483648
    %v2243 = vor.u32 1.1754944e-38, %v2242
    %v2244 = vsel %vm2241, %v2243, %v2239
    %v2245 = vmul.f32 1.0, %v2244
    %v2246 = vtanh.pop %v2207
    %v2247 = vmul.f32 %v2230, %v2170
    %v2248 = vmul.f32 %v2230, %v2246
    %2250 = vrot.lane.b32.xlu0 %v2248, 64
    %v2251 = vpop.permute.xlu0 %2250
    %v2253 = vadd.f32 %v2247, %v2251
    %v2254 = vtanh.pop %v2253
    %v2255 = vmul.f32 %v2245, %v2254
    %2257 = vrot.lane.b32.xlu0 %v2255, 64
    %v2258 = vpop.permute.xlu0 %2257
    %s2260 = scalar_lea.vmem [#allocation12], 4
    %2261 = vst.msk [vmem:[%s2260] sm:$0x3] %vm1304, %v2258
    %2262 = vrot.lane.b32.xlu0 %v2255, 32
    %v2263 = vpop.permute.xlu0 %2262
    %s2265 = scalar_lea.vmem [#allocation12], 6
    %2266 = vst.msk [vmem:[%s2265] sm:$0x3] %vm1304, %v2263
    %2268 = vrot.lane.b32.xlu0 %v2253, 64
    %v2269 = vpop.permute.xlu0 %2268
    %s2271 = scalar_lea.vmem [#allocation14], 4
    %2272 = vst.msk [vmem:[%s2271] sm:$0x3] %vm1304, %v2269
    %2273 = vrot.lane.b32.xlu0 %v2253, 32
    %v2274 = vpop.permute.xlu0 %2273
    %s2276 = scalar_lea.vmem [#allocation14], 6
    %2277 = vst.msk [vmem:[%s2276] sm:$0x3] %vm1304, %v2274
    %2285 = vrot.lane.b32.xlu0 %v1674, 64
    %v2286 = vpop.permute.xlu0 %2285
    %2287 = vrot.lane.b32.xlu0 %v1757, 64
    %v2288 = vpop.permute.xlu0 %2287
    %2289 = vrot.lane.b32.xlu0 %v1840, 64
    %v2290 = vpop.permute.xlu0 %2289
    %2291 = vrot.lane.b32.xlu0 %v1923, 64
    %v2292 = vpop.permute.xlu0 %2291
    %2293 = vrot.lane.b32.xlu0 %v2006, 64
    %v2294 = vpop.permute.xlu0 %2293
    %2295 = vrot.lane.b32.xlu0 %v2089, 64
    %v2296 = vpop.permute.xlu0 %2295
    %2297 = vrot.lane.b32.xlu0 %v2172, 64
    %v2298 = vpop.permute.xlu0 %2297
    %v2306 = vsel %vm635, %v2286, %v2255
    %v2307 = vsel %vm635, %v2288, %v2172
    %v2308 = vsel %vm635, %v2290, %v2089
    %v2309 = vsel %vm635, %v2292, %v2006
    %v2310 = vsel %vm635, %v2294, %v1923
    %v2311 = vsel %vm635, %v2296, %v1840
    %v2312 = vsel %vm635, %v2298, %v1757
    %v2313 = vsel %vm635, %v2258, %v1674
    %v2314 = vpack.c.bf16 %v2307, %v2306
    %v2315 = vpack.c.bf16 %v2309, %v2308
    %v2316 = vpack.c.bf16 %v2311, %v2310
    %v2317 = vpack.c.bf16 %v2313, %v2312
    %s2318 = scalar_lea.vmem [#allocation8], 128
    %v2319 = vld [vmem:[%s2318] sm:$0xff]
    %v2320 = vld [vmem:[%s2318 + $0x8] sm:$0xff]
    %v2321 = vld [vmem:[%s2318 + $0x10] sm:$0xff]
    %v2322 = vld [vmem:[%s2318 + $0x18] sm:$0xff]
    %v2323 = vld [vmem:[%s2318 + $0x20] sm:$0xff]
    %v2324 = vld [vmem:[%s2318 + $0x28] sm:$0xff]
    %v2325 = vld [vmem:[%s2318 + $0x30] sm:$0xff]
    %v2326 = vld [vmem:[%s2318 + $0x38] sm:$0xff]
    %v2327 = vld [vmem:[%s2318 + $0x40] sm:$0xff]
    %v2328 = vld [vmem:[%s2318 + $0x48] sm:$0xff]
    %v2329 = vld [vmem:[%s2318 + $0x50] sm:$0xff]
    %v2330 = vld [vmem:[%s2318 + $0x58] sm:$0xff]
    %v2331 = vld [vmem:[%s2318 + $0x60] sm:$0xff]
    %v2332 = vld [vmem:[%s2318 + $0x68] sm:$0xff]
    %v2333 = vld [vmem:[%s2318 + $0x70] sm:$0xff]
    %v2334 = vld [vmem:[%s2318 + $0x78] sm:$0xff]
    %s2335 = scalar_lea.vmem %s4, 4
    %v2336 = vld [vmem:[%s2335] sm:$0x3]
    %v2338 = vperm.slane %v2336, 0
    %v2339 = vperm.slane %v2336, 1
    %v2358 = vunpack.c.l.b16 %v2319
    %v2359 = vunpack.c.h.b16 %v2319
    %v2360 = vunpack.c.l.b16 %v2320
    %v2361 = vunpack.c.h.b16 %v2320
    %v2362 = vunpack.c.l.b16 %v2321
    %v2363 = vunpack.c.h.b16 %v2321
    %v2364 = vunpack.c.l.b16 %v2322
    %v2365 = vunpack.c.h.b16 %v2322
    %v2366 = vunpack.c.l.b16 %v2323
    %v2367 = vunpack.c.h.b16 %v2323
    %v2368 = vunpack.c.l.b16 %v2324
    %v2369 = vunpack.c.h.b16 %v2324
    %v2370 = vunpack.c.l.b16 %v2325
    %v2371 = vunpack.c.h.b16 %v2325
    %v2372 = vunpack.c.l.b16 %v2326
    %v2373 = vunpack.c.h.b16 %v2326
    %v2374 = vunpack.c.l.b16 %v2327
    %v2375 = vunpack.c.h.b16 %v2327
    %v2376 = vunpack.c.l.b16 %v2328
    %v2377 = vunpack.c.h.b16 %v2328
    %v2378 = vunpack.c.l.b16 %v2329
    %v2379 = vunpack.c.h.b16 %v2329
    %v2380 = vunpack.c.l.b16 %v2330
    %v2381 = vunpack.c.h.b16 %v2330
    %v2382 = vunpack.c.l.b16 %v2331
    %v2383 = vunpack.c.h.b16 %v2331
    %v2384 = vunpack.c.l.b16 %v2332
    %v2385 = vunpack.c.h.b16 %v2332
    %v2386 = vunpack.c.l.b16 %v2333
    %v2387 = vunpack.c.h.b16 %v2333
    %v2388 = vunpack.c.l.b16 %v2334
    %v2389 = vunpack.c.h.b16 %v2334
    %v2390 = vpack.c.b16 %v2360, %v2358
    %v2391 = vpack.c.b16 %v2361, %v2359
    %v2392 = vpack.c.b16 %v2364, %v2362
    %v2393 = vpack.c.b16 %v2365, %v2363
    %v2394 = vpack.c.b16 %v2368, %v2366
    %v2395 = vpack.c.b16 %v2369, %v2367
    %v2396 = vpack.c.b16 %v2372, %v2370
    %v2397 = vpack.c.b16 %v2373, %v2371
    %v2398 = vpack.c.b16 %v2376, %v2374
    %v2399 = vpack.c.b16 %v2377, %v2375
    %v2400 = vpack.c.b16 %v2380, %v2378
    %v2401 = vpack.c.b16 %v2381, %v2379
    %v2402 = vpack.c.b16 %v2384, %v2382
    %v2403 = vpack.c.b16 %v2385, %v2383
    %v2404 = vpack.c.b16 %v2388, %v2386
    %v2405 = vpack.c.b16 %v2389, %v2387
    %2422 = vmatpush.bf16.msra.mxu0 %v2404
    %2423 = vmatpush.bf16.msra.mxu0 %v2402
    %2424 = vmatpush.bf16.msra.mxu0 %v2400
    %2425 = vmatpush.bf16.msra.mxu0 %v2398
    %2426 = vmatpush.bf16.msra.mxu0 %v2396
    %2427 = vmatpush.bf16.msra.mxu0 %v2394
    %2428 = vmatpush.bf16.msra.mxu0 %v2392
    %2429 = vmatpush.bf16.msra.mxu0 %v2390
    %2430 = vmatmul.bf16.gmra.mxu0 %v2314
    %v2431 = vpop.f32.mrf.mxu0
    %v2432 = vadd.f32 %v2338, %v2431
    %v2433 = vpop.f32.mrf.mxu0
    %v2434 = vadd.f32 %v2338, %v2433
    %2435 = vmatmul.bf16.gmra.mxu0 %v2315
    %v2436 = vpop.f32.mrf.mxu0
    %v2437 = vadd.f32 %v2338, %v2436
    %v2438 = vpop.f32.mrf.mxu0
    %v2439 = vadd.f32 %v2338, %v2438
    %2440 = vmatmul.bf16.gmra.mxu0 %v2316
    %v2441 = vpop.f32.mrf.mxu0
    %v2442 = vadd.f32 %v2338, %v2441
    %v2443 = vpop.f32.mrf.mxu0
    %v2444 = vadd.f32 %v2338, %v2443
    %2445 = vmatmul.bf16.gmra.mxu0 %v2317
    %v2446 = vpop.f32.mrf.mxu0
    %v2447 = vadd.f32 %v2338, %v2446
    %v2448 = vpop.f32.mrf.mxu0
    %v2449 = vadd.f32 %v2338, %v2448
    %2450 = vdwg.mxu0
    %2451 = vmatpush.bf16.msra.mxu0 %v2405
    %2452 = vmatpush.bf16.msra.mxu0 %v2403
    %2453 = vmatpush.bf16.msra.mxu0 %v2401
    %2454 = vmatpush.bf16.msra.mxu0 %v2399
    %2455 = vmatpush.bf16.msra.mxu0 %v2397
    %2456 = vmatpush.bf16.msra.mxu0 %v2395
    %2457 = vmatpush.bf16.msra.mxu0 %v2393
    %2458 = vmatpush.bf16.msra.mxu0 %v2391
    %2459 = vmatmul.bf16.gmra.mxu0 %v2314
    %v2460 = vpop.f32.mrf.mxu0
    %v2461 = vadd.f32 %v2339, %v2460
    %v2462 = vpop.f32.mrf.mxu0
    %v2463 = vadd.f32 %v2339, %v2462
    %2464 = vmatmul.bf16.gmra.mxu0 %v2315
    %v2465 = vpop.f32.mrf.mxu0
    %v2466 = vadd.f32 %v2339, %v2465
    %v2467 = vpop.f32.mrf.mxu0
    %v2468 = vadd.f32 %v2339, %v2467
    %2469 = vmatmul.bf16.gmra.mxu0 %v2316
    %v2470 = vpop.f32.mrf.mxu0
    %v2471 = vadd.f32 %v2339, %v2470
    %v2472 = vpop.f32.mrf.mxu0
    %v2473 = vadd.f32 %v2339, %v2472
    %2474 = vmatmul.bf16.gmra.mxu0 %v2317
    %v2475 = vpop.f32.mrf.mxu0
    %v2476 = vadd.f32 %v2339, %v2475
    %v2477 = vpop.f32.mrf.mxu0
    %v2478 = vadd.f32 %v2339, %v2477
    %2479 = vdwg.mxu0
    %s2480 = scalar_lea.vmem [#allocation10], 128
    %v2481 = vld [vmem:[%s2480] sm:$0xff]
    %v2482 = vld [vmem:[%s2480 + $0x8] sm:$0xff]
    %v2483 = vld [vmem:[%s2480 + $0x10] sm:$0xff]
    %v2484 = vld [vmem:[%s2480 + $0x18] sm:$0xff]
    %v2485 = vld [vmem:[%s2480 + $0x20] sm:$0xff]
    %v2486 = vld [vmem:[%s2480 + $0x28] sm:$0xff]
    %v2487 = vld [vmem:[%s2480 + $0x30] sm:$0xff]
    %v2488 = vld [vmem:[%s2480 + $0x38] sm:$0xff]
    %s2489 = scalar_lea.vmem %s5, 8
    %v2490 = vld [vmem:[%s2489] sm:$0x3]
    %s2491 = scalar_lea.vmem %s5, 10
    %v2492 = vld [vmem:[%s2491] sm:$0x3]
    %2494 = vrot.lane.b32.xlu0 %v2492, 32
    %v2495 = vpop.permute.xlu0 %2494
    %v2497 = vsel %vm581, %v2490, %v2495
    %v2498 = vsel %vm583, %v2497, 0.0
    %s2499 = scalar_lea.vmem %s6, 8
    %v2500 = vld [vmem:[%s2499] sm:$0x3]
    %s2501 = scalar_lea.vmem %s6, 10
    %v2502 = vld [vmem:[%s2501] sm:$0x3]
    %2504 = vrot.lane.b32.xlu0 %v2502, 32
    %v2505 = vpop.permute.xlu0 %2504
    %v2507 = vsel %vm581, %v2500, %v2505
    %v2508 = vsel %vm583, %v2507, 0.0
    %v2509 = vpack.c.bf16 %v2498, %v2498
    %v2518 = vunpack.c.l.b16 %v2481
    %v2519 = vunpack.c.h.b16 %v2481
    %v2520 = vunpack.c.l.b16 %v2482
    %v2521 = vunpack.c.h.b16 %v2482
    %v2522 = vunpack.c.l.b16 %v2483
    %v2523 = vunpack.c.h.b16 %v2483
    %v2524 = vunpack.c.l.b16 %v2484
    %v2525 = vunpack.c.h.b16 %v2484
    %v2526 = vunpack.c.l.b16 %v2485
    %v2527 = vunpack.c.h.b16 %v2485
    %v2528 = vunpack.c.l.b16 %v2486
    %v2529 = vunpack.c.h.b16 %v2486
    %v2530 = vunpack.c.l.b16 %v2487
    %v2531 = vunpack.c.h.b16 %v2487
    %v2532 = vunpack.c.l.b16 %v2488
    %v2533 = vunpack.c.h.b16 %v2488
    %v2534 = vpack.c.b16 %v2520, %v2518
    %v2535 = vpack.c.b16 %v2521, %v2519
    %v2536 = vpack.c.b16 %v2524, %v2522
    %v2537 = vpack.c.b16 %v2525, %v2523
    %v2538 = vpack.c.b16 %v2528, %v2526
    %v2539 = vpack.c.b16 %v2529, %v2527
    %v2540 = vpack.c.b16 %v2532, %v2530
    %v2541 = vpack.c.b16 %v2533, %v2531
    %v2551 = vsel %vm635, %v2509, 0
    %2553 = vmatpush.bf16.msra.mxu0 0
    %2554 = vmatpush.bf16.msra.mxu0 0
    %2555 = vmatpush.bf16.msra.mxu0 0
    %2556 = vmatpush.bf16.msra.mxu0 0
    %2557 = vmatpush.bf16.msra.mxu0 %v2540
    %2558 = vmatpush.bf16.msra.mxu0 %v2538
    %2559 = vmatpush.bf16.msra.mxu0 %v2536
    %2560 = vmatpush.bf16.msra.mxu0 %v2534
    %2561 = vmatmul.bf16.gmra.mxu0 %v2551
    %v2562 = vpop.f32.mrf.mxu0
    %v2563 = vadd.f32 0.0, %v2562
    %v2564 = vpop.f32.mrf.mxu0
    %2565 = vdwg.mxu0
    %2566 = vmatpush.bf16.msra.mxu0 0
    %2567 = vmatpush.bf16.msra.mxu0 0
    %2568 = vmatpush.bf16.msra.mxu0 0
    %2569 = vmatpush.bf16.msra.mxu0 0
    %2570 = vmatpush.bf16.msra.mxu0 %v2541
    %2571 = vmatpush.bf16.msra.mxu0 %v2539
    %2572 = vmatpush.bf16.msra.mxu0 %v2537
    %2573 = vmatpush.bf16.msra.mxu0 %v2535
    %2574 = vmatmul.bf16.gmra.mxu0 %v2551
    %v2575 = vpop.f32.mrf.mxu0
    %v2576 = vadd.f32 0.0, %v2575
    %v2577 = vpop.f32.mrf.mxu0
    %2578 = vdwg.mxu0
    %v2579 = vadd.f32 %v2432, %v2563
    %v2580 = vadd.f32 %v2461, %v2576
    %v2581 = vxor.u32 %v2579, 2147483648
    %v2582 = vxor.u32 %v2580, 2147483648
    %v2583 = vmul.f32 %v2581, 1.442695
    %v2584 = vpow.pop %v2583
    %v2585 = vmul.f32 %v2582, 1.442695
    %v2586 = vpow.pop %v2585
    %v2587 = vadd.f32 %v2584, 1.0
    %v2588 = vadd.f32 %v2586, 1.0
    %v2589 = vrcp.pop %v2587
    %v2590 = vmul.f32 %v2587, %v2589
    %v2591 = vsub.f32 1.0, %v2590
    %v2592 = vmul.f32 %v2589, %v2591
    %v2593 = vadd.f32 %v2589, %v2592
    %vm2594 = vweird.f32 %v2587
    %vm2595 = vweird.f32 %v2589
    %vm2596 = vmor %vm2594, %vm2595
    %v2597 = vsel %vm2596, %v2589, %v2593
    %v2598 = vand.u32 2147483647, %v2587
    %vm2599 = vcmp.eq.f32.partialorder %v2598, 8.507059e+37
    %v2600 = vand.u32 %v2587, 2147483648
    %v2601 = vor.u32 1.1754944e-38, %v2600
    %v2602 = vsel %vm2599, %v2601, %v2597
    %v2603 = vmul.f32 1.0, %v2602
    %v2604 = vrcp.pop %v2588
    %v2605 = vmul.f32 %v2588, %v2604
    %v2606 = vsub.f32 1.0, %v2605
    %v2607 = vmul.f32 %v2604, %v2606
    %v2608 = vadd.f32 %v2604, %v2607
    %vm2609 = vweird.f32 %v2588
    %vm2610 = vweird.f32 %v2604
    %vm2611 = vmor %vm2609, %vm2610
    %v2612 = vsel %vm2611, %v2604, %v2608
    %v2613 = vand.u32 2147483647, %v2588
    %vm2614 = vcmp.eq.f32.partialorder %v2613, 8.507059e+37
    %v2615 = vand.u32 %v2588, 2147483648
    %v2616 = vor.u32 1.1754944e-38, %v2615
    %v2617 = vsel %vm2614, %v2616, %v2612
    %v2618 = vmul.f32 1.0, %v2617
    %v2619 = vtanh.pop %v2580
    %2621 = vrot.lane.b32.xlu0 %v2508, 64
    %v2622 = vpop.permute.xlu0 %2621
    %v2624 = vmul.f32 %v2603, %v2622
    %v2625 = vmul.f32 %v2603, %v2619
    %2627 = vrot.lane.b32.xlu0 %v2625, 64
    %v2628 = vpop.permute.xlu0 %2627
    %v2630 = vadd.f32 %v2624, %v2628
    %v2631 = vtanh.pop %v2630
    %v2632 = vmul.f32 %v2618, %v2631
    %v2633 = vpack.c.bf16 %v2632, %v2632
    %2635 = vrot.lane.b32.xlu0 %v2633, 64
    %v2636 = vpop.permute.xlu0 %2635
    %v2638 = vsel %vm635, %v2636, 0
    %2640 = vmatpush.bf16.msra.mxu0 0
    %2641 = vmatpush.bf16.msra.mxu0 0
    %2642 = vmatpush.bf16.msra.mxu0 0
    %2643 = vmatpush.bf16.msra.mxu0 0
    %2644 = vmatpush.bf16.msra.mxu0 %v2540
    %2645 = vmatpush.bf16.msra.mxu0 %v2538
    %2646 = vmatpush.bf16.msra.mxu0 %v2536
    %2647 = vmatpush.bf16.msra.mxu0 %v2534
    %2648 = vmatmul.bf16.gmra.mxu0 %v2638
    %v2649 = vpop.f32.mrf.mxu0
    %v2650 = vadd.f32 0.0, %v2649
    %v2651 = vpop.f32.mrf.mxu0
    %2652 = vdwg.mxu0
    %2653 = vmatpush.bf16.msra.mxu0 0
    %2654 = vmatpush.bf16.msra.mxu0 0
    %2655 = vmatpush.bf16.msra.mxu0 0
    %2656 = vmatpush.bf16.msra.mxu0 0
    %2657 = vmatpush.bf16.msra.mxu0 %v2541
    %2658 = vmatpush.bf16.msra.mxu0 %v2539
    %2659 = vmatpush.bf16.msra.mxu0 %v2537
    %2660 = vmatpush.bf16.msra.mxu0 %v2535
    %2661 = vmatmul.bf16.gmra.mxu0 %v2638
    %v2662 = vpop.f32.mrf.mxu0
    %v2663 = vadd.f32 0.0, %v2662
    %v2664 = vpop.f32.mrf.mxu0
    %2665 = vdwg.mxu0
    %v2666 = vadd.f32 %v2434, %v2650
    %v2667 = vadd.f32 %v2463, %v2663
    %v2668 = vxor.u32 %v2666, 2147483648
    %v2669 = vxor.u32 %v2667, 2147483648
    %v2670 = vmul.f32 %v2668, 1.442695
    %v2671 = vpow.pop %v2670
    %v2672 = vmul.f32 %v2669, 1.442695
    %v2673 = vpow.pop %v2672
    %v2674 = vadd.f32 %v2671, 1.0
    %v2675 = vadd.f32 %v2673, 1.0
    %v2676 = vrcp.pop %v2674
    %v2677 = vmul.f32 %v2674, %v2676
    %v2678 = vsub.f32 1.0, %v2677
    %v2679 = vmul.f32 %v2676, %v2678
    %v2680 = vadd.f32 %v2676, %v2679
    %vm2681 = vweird.f32 %v2674
    %vm2682 = vweird.f32 %v2676
    %vm2683 = vmor %vm2681, %vm2682
    %v2684 = vsel %vm2683, %v2676, %v2680
    %v2685 = vand.u32 2147483647, %v2674
    %vm2686 = vcmp.eq.f32.partialorder %v2685, 8.507059e+37
    %v2687 = vand.u32 %v2674, 2147483648
    %v2688 = vor.u32 1.1754944e-38, %v2687
    %v2689 = vsel %vm2686, %v2688, %v2684
    %v2690 = vmul.f32 1.0, %v2689
    %v2691 = vrcp.pop %v2675
    %v2692 = vmul.f32 %v2675, %v2691
    %v2693 = vsub.f32 1.0, %v2692
    %v2694 = vmul.f32 %v2691, %v2693
    %v2695 = vadd.f32 %v2691, %v2694
    %vm2696 = vweird.f32 %v2675
    %vm2697 = vweird.f32 %v2691
    %vm2698 = vmor %vm2696, %vm2697
    %v2699 = vsel %vm2698, %v2691, %v2695
    %v2700 = vand.u32 2147483647, %v2675
    %vm2701 = vcmp.eq.f32.partialorder %v2700, 8.507059e+37
    %v2702 = vand.u32 %v2675, 2147483648
    %v2703 = vor.u32 1.1754944e-38, %v2702
    %v2704 = vsel %vm2701, %v2703, %v2699
    %v2705 = vmul.f32 1.0, %v2704
    %v2706 = vtanh.pop %v2667
    %v2707 = vmul.f32 %v2690, %v2630
    %v2708 = vmul.f32 %v2690, %v2706
    %2710 = vrot.lane.b32.xlu0 %v2708, 64
    %v2711 = vpop.permute.xlu0 %2710
    %v2713 = vadd.f32 %v2707, %v2711
    %v2714 = vtanh.pop %v2713
    %v2715 = vmul.f32 %v2705, %v2714
    %v2716 = vpack.c.bf16 %v2715, %v2715
    %2718 = vrot.lane.b32.xlu0 %v2716, 64
    %v2719 = vpop.permute.xlu0 %2718
    %v2721 = vsel %vm635, %v2719, 0
    %2723 = vmatpush.bf16.msra.mxu0 0
    %2724 = vmatpush.bf16.msra.mxu0 0
    %2725 = vmatpush.bf16.msra.mxu0 0
    %2726 = vmatpush.bf16.msra.mxu0 0
    %2727 = vmatpush.bf16.msra.mxu0 %v2540
    %2728 = vmatpush.bf16.msra.mxu0 %v2538
    %2729 = vmatpush.bf16.msra.mxu0 %v2536
    %2730 = vmatpush.bf16.msra.mxu0 %v2534
    %2731 = vmatmul.bf16.gmra.mxu0 %v2721
    %v2732 = vpop.f32.mrf.mxu0
    %v2733 = vadd.f32 0.0, %v2732
    %v2734 = vpop.f32.mrf.mxu0
    %2735 = vdwg.mxu0
    %2736 = vmatpush.bf16.msra.mxu0 0
    %2737 = vmatpush.bf16.msra.mxu0 0
    %2738 = vmatpush.bf16.msra.mxu0 0
    %2739 = vmatpush.bf16.msra.mxu0 0
    %2740 = vmatpush.bf16.msra.mxu0 %v2541
    %2741 = vmatpush.bf16.msra.mxu0 %v2539
    %2742 = vmatpush.bf16.msra.mxu0 %v2537
    %2743 = vmatpush.bf16.msra.mxu0 %v2535
    %2744 = vmatmul.bf16.gmra.mxu0 %v2721
    %v2745 = vpop.f32.mrf.mxu0
    %v2746 = vadd.f32 0.0, %v2745
    %v2747 = vpop.f32.mrf.mxu0
    %2748 = vdwg.mxu0
    %v2749 = vadd.f32 %v2437, %v2733
    %v2750 = vadd.f32 %v2466, %v2746
    %v2751 = vxor.u32 %v2749, 2147483648
    %v2752 = vxor.u32 %v2750, 2147483648
    %v2753 = vmul.f32 %v2751, 1.442695
    %v2754 = vpow.pop %v2753
    %v2755 = vmul.f32 %v2752, 1.442695
    %v2756 = vpow.pop %v2755
    %v2757 = vadd.f32 %v2754, 1.0
    %v2758 = vadd.f32 %v2756, 1.0
    %v2759 = vrcp.pop %v2757
    %v2760 = vmul.f32 %v2757, %v2759
    %v2761 = vsub.f32 1.0, %v2760
    %v2762 = vmul.f32 %v2759, %v2761
    %v2763 = vadd.f32 %v2759, %v2762
    %vm2764 = vweird.f32 %v2757
    %vm2765 = vweird.f32 %v2759
    %vm2766 = vmor %vm2764, %vm2765
    %v2767 = vsel %vm2766, %v2759, %v2763
    %v2768 = vand.u32 2147483647, %v2757
    %vm2769 = vcmp.eq.f32.partialorder %v2768, 8.507059e+37
    %v2770 = vand.u32 %v2757, 2147483648
    %v2771 = vor.u32 1.1754944e-38, %v2770
    %v2772 = vsel %vm2769, %v2771, %v2767
    %v2773 = vmul.f32 1.0, %v2772
    %v2774 = vrcp.pop %v2758
    %v2775 = vmul.f32 %v2758, %v2774
    %v2776 = vsub.f32 1.0, %v2775
    %v2777 = vmul.f32 %v2774, %v2776
    %v2778 = vadd.f32 %v2774, %v2777
    %vm2779 = vweird.f32 %v2758
    %vm2780 = vweird.f32 %v2774
    %vm2781 = vmor %vm2779, %vm2780
    %v2782 = vsel %vm2781, %v2774, %v2778
    %v2783 = vand.u32 2147483647, %v2758
    %vm2784 = vcmp.eq.f32.partialorder %v2783, 8.507059e+37
    %v2785 = vand.u32 %v2758, 2147483648
    %v2786 = vor.u32 1.1754944e-38, %v2785
    %v2787 = vsel %vm2784, %v2786, %v2782
    %v2788 = vmul.f32 1.0, %v2787
    %v2789 = vtanh.pop %v2750
    %v2790 = vmul.f32 %v2773, %v2713
    %v2791 = vmul.f32 %v2773, %v2789
    %2793 = vrot.lane.b32.xlu0 %v2791, 64
    %v2794 = vpop.permute.xlu0 %2793
    %v2796 = vadd.f32 %v2790, %v2794
    %v2797 = vtanh.pop %v2796
    %v2798 = vmul.f32 %v2788, %v2797
    %v2799 = vpack.c.bf16 %v2798, %v2798
    %2801 = vrot.lane.b32.xlu0 %v2799, 64
    %v2802 = vpop.permute.xlu0 %2801
    %v2804 = vsel %vm635, %v2802, 0
    %2806 = vmatpush.bf16.msra.mxu0 0
    %2807 = vmatpush.bf16.msra.mxu0 0
    %2808 = vmatpush.bf16.msra.mxu0 0
    %2809 = vmatpush.bf16.msra.mxu0 0
    %2810 = vmatpush.bf16.msra.mxu0 %v2540
    %2811 = vmatpush.bf16.msra.mxu0 %v2538
    %2812 = vmatpush.bf16.msra.mxu0 %v2536
    %2813 = vmatpush.bf16.msra.mxu0 %v2534
    %2814 = vmatmul.bf16.gmra.mxu0 %v2804
    %v2815 = vpop.f32.mrf.mxu0
    %v2816 = vadd.f32 0.0, %v2815
    %v2817 = vpop.f32.mrf.mxu0
    %2818 = vdwg.mxu0
    %2819 = vmatpush.bf16.msra.mxu0 0
    %2820 = vmatpush.bf16.msra.mxu0 0
    %2821 = vmatpush.bf16.msra.mxu0 0
    %2822 = vmatpush.bf16.msra.mxu0 0
    %2823 = vmatpush.bf16.msra.mxu0 %v2541
    %2824 = vmatpush.bf16.msra.mxu0 %v2539
    %2825 = vmatpush.bf16.msra.mxu0 %v2537
    %2826 = vmatpush.bf16.msra.mxu0 %v2535
    %2827 = vmatmul.bf16.gmra.mxu0 %v2804
    %v2828 = vpop.f32.mrf.mxu0
    %v2829 = vadd.f32 0.0, %v2828
    %v2830 = vpop.f32.mrf.mxu0
    %2831 = vdwg.mxu0
    %v2832 = vadd.f32 %v2439, %v2816
    %v2833 = vadd.f32 %v2468, %v2829
    %v2834 = vxor.u32 %v2832, 2147483648
    %v2835 = vxor.u32 %v2833, 2147483648
    %v2836 = vmul.f32 %v2834, 1.442695
    %v2837 = vpow.pop %v2836
    %v2838 = vmul.f32 %v2835, 1.442695
    %v2839 = vpow.pop %v2838
    %v2840 = vadd.f32 %v2837, 1.0
    %v2841 = vadd.f32 %v2839, 1.0
    %v2842 = vrcp.pop %v2840
    %v2843 = vmul.f32 %v2840, %v2842
    %v2844 = vsub.f32 1.0, %v2843
    %v2845 = vmul.f32 %v2842, %v2844
    %v2846 = vadd.f32 %v2842, %v2845
    %vm2847 = vweird.f32 %v2840
    %vm2848 = vweird.f32 %v2842
    %vm2849 = vmor %vm2847, %vm2848
    %v2850 = vsel %vm2849, %v2842, %v2846
    %v2851 = vand.u32 2147483647, %v2840
    %vm2852 = vcmp.eq.f32.partialorder %v2851, 8.507059e+37
    %v2853 = vand.u32 %v2840, 2147483648
    %v2854 = vor.u32 1.1754944e-38, %v2853
    %v2855 = vsel %vm2852, %v2854, %v2850
    %v2856 = vmul.f32 1.0, %v2855
    %v2857 = vrcp.pop %v2841
    %v2858 = vmul.f32 %v2841, %v2857
    %v2859 = vsub.f32 1.0, %v2858
    %v2860 = vmul.f32 %v2857, %v2859
    %v2861 = vadd.f32 %v2857, %v2860
    %vm2862 = vweird.f32 %v2841
    %vm2863 = vweird.f32 %v2857
    %vm2864 = vmor %vm2862, %vm2863
    %v2865 = vsel %vm2864, %v2857, %v2861
    %v2866 = vand.u32 2147483647, %v2841
    %vm2867 = vcmp.eq.f32.partialorder %v2866, 8.507059e+37
    %v2868 = vand.u32 %v2841, 2147483648
    %v2869 = vor.u32 1.1754944e-38, %v2868
    %v2870 = vsel %vm2867, %v2869, %v2865
    %v2871 = vmul.f32 1.0, %v2870
    %v2872 = vtanh.pop %v2833
    %v2873 = vmul.f32 %v2856, %v2796
    %v2874 = vmul.f32 %v2856, %v2872
    %2876 = vrot.lane.b32.xlu0 %v2874, 64
    %v2877 = vpop.permute.xlu0 %2876
    %v2879 = vadd.f32 %v2873, %v2877
    %v2880 = vtanh.pop %v2879
    %v2881 = vmul.f32 %v2871, %v2880
    %v2882 = vpack.c.bf16 %v2881, %v2881
    %2884 = vrot.lane.b32.xlu0 %v2882, 64
    %v2885 = vpop.permute.xlu0 %2884
    %v2887 = vsel %vm635, %v2885, 0
    %2889 = vmatpush.bf16.msra.mxu0 0
    %2890 = vmatpush.bf16.msra.mxu0 0
    %2891 = vmatpush.bf16.msra.mxu0 0
    %2892 = vmatpush.bf16.msra.mxu0 0
    %2893 = vmatpush.bf16.msra.mxu0 %v2540
    %2894 = vmatpush.bf16.msra.mxu0 %v2538
    %2895 = vmatpush.bf16.msra.mxu0 %v2536
    %2896 = vmatpush.bf16.msra.mxu0 %v2534
    %2897 = vmatmul.bf16.gmra.mxu0 %v2887
    %v2898 = vpop.f32.mrf.mxu0
    %v2899 = vadd.f32 0.0, %v2898
    %v2900 = vpop.f32.mrf.mxu0
    %2901 = vdwg.mxu0
    %2902 = vmatpush.bf16.msra.mxu0 0
    %2903 = vmatpush.bf16.msra.mxu0 0
    %2904 = vmatpush.bf16.msra.mxu0 0
    %2905 = vmatpush.bf16.msra.mxu0 0
    %2906 = vmatpush.bf16.msra.mxu0 %v2541
    %2907 = vmatpush.bf16.msra.mxu0 %v2539
    %2908 = vmatpush.bf16.msra.mxu0 %v2537
    %2909 = vmatpush.bf16.msra.mxu0 %v2535
    %2910 = vmatmul.bf16.gmra.mxu0 %v2887
    %v2911 = vpop.f32.mrf.mxu0
    %v2912 = vadd.f32 0.0, %v2911
    %v2913 = vpop.f32.mrf.mxu0
    %2914 = vdwg.mxu0
    %v2915 = vadd.f32 %v2442, %v2899
    %v2916 = vadd.f32 %v2471, %v2912
    %v2917 = vxor.u32 %v2915, 2147483648
    %v2918 = vxor.u32 %v2916, 2147483648
    %v2919 = vmul.f32 %v2917, 1.442695
    %v2920 = vpow.pop %v2919
    %v2921 = vmul.f32 %v2918, 1.442695
    %v2922 = vpow.pop %v2921
    %v2923 = vadd.f32 %v2920, 1.0
    %v2924 = vadd.f32 %v2922, 1.0
    %v2925 = vrcp.pop %v2923
    %v2926 = vmul.f32 %v2923, %v2925
    %v2927 = vsub.f32 1.0, %v2926
    %v2928 = vmul.f32 %v2925, %v2927
    %v2929 = vadd.f32 %v2925, %v2928
    %vm2930 = vweird.f32 %v2923
    %vm2931 = vweird.f32 %v2925
    %vm2932 = vmor %vm2930, %vm2931
    %v2933 = vsel %vm2932, %v2925, %v2929
    %v2934 = vand.u32 2147483647, %v2923
    %vm2935 = vcmp.eq.f32.partialorder %v2934, 8.507059e+37
    %v2936 = vand.u32 %v2923, 2147483648
    %v2937 = vor.u32 1.1754944e-38, %v2936
    %v2938 = vsel %vm2935, %v2937, %v2933
    %v2939 = vmul.f32 1.0, %v2938
    %v2940 = vrcp.pop %v2924
    %v2941 = vmul.f32 %v2924, %v2940
    %v2942 = vsub.f32 1.0, %v2941
    %v2943 = vmul.f32 %v2940, %v2942
    %v2944 = vadd.f32 %v2940, %v2943
    %vm2945 = vweird.f32 %v2924
    %vm2946 = vweird.f32 %v2940
    %vm2947 = vmor %vm2945, %vm2946
    %v2948 = vsel %vm2947, %v2940, %v2944
    %v2949 = vand.u32 2147483647, %v2924
    %vm2950 = vcmp.eq.f32.partialorder %v2949, 8.507059e+37
    %v2951 = vand.u32 %v2924, 2147483648
    %v2952 = vor.u32 1.1754944e-38, %v2951
    %v2953 = vsel %vm2950, %v2952, %v2948
    %v2954 = vmul.f32 1.0, %v2953
    %v2955 = vtanh.pop %v2916
    %v2956 = vmul.f32 %v2939, %v2879
    %v2957 = vmul.f32 %v2939, %v2955
    %2959 = vrot.lane.b32.xlu0 %v2957, 64
    %v2960 = vpop.permute.xlu0 %2959
    %v2962 = vadd.f32 %v2956, %v2960
    %v2963 = vtanh.pop %v2962
    %v2964 = vmul.f32 %v2954, %v2963
    %v2965 = vpack.c.bf16 %v2964, %v2964
    %2967 = vrot.lane.b32.xlu0 %v2965, 64
    %v2968 = vpop.permute.xlu0 %2967
    %v2970 = vsel %vm635, %v2968, 0
    %2972 = vmatpush.bf16.msra.mxu0 0
    %2973 = vmatpush.bf16.msra.mxu0 0
    %2974 = vmatpush.bf16.msra.mxu0 0
    %2975 = vmatpush.bf16.msra.mxu0 0
    %2976 = vmatpush.bf16.msra.mxu0 %v2540
    %2977 = vmatpush.bf16.msra.mxu0 %v2538
    %2978 = vmatpush.bf16.msra.mxu0 %v2536
    %2979 = vmatpush.bf16.msra.mxu0 %v2534
    %2980 = vmatmul.bf16.gmra.mxu0 %v2970
    %v2981 = vpop.f32.mrf.mxu0
    %v2982 = vadd.f32 0.0, %v2981
    %v2983 = vpop.f32.mrf.mxu0
    %2984 = vdwg.mxu0
    %2985 = vmatpush.bf16.msra.mxu0 0
    %2986 = vmatpush.bf16.msra.mxu0 0
    %2987 = vmatpush.bf16.msra.mxu0 0
    %2988 = vmatpush.bf16.msra.mxu0 0
    %2989 = vmatpush.bf16.msra.mxu0 %v2541
    %2990 = vmatpush.bf16.msra.mxu0 %v2539
    %2991 = vmatpush.bf16.msra.mxu0 %v2537
    %2992 = vmatpush.bf16.msra.mxu0 %v2535
    %2993 = vmatmul.bf16.gmra.mxu0 %v2970
    %v2994 = vpop.f32.mrf.mxu0
    %v2995 = vadd.f32 0.0, %v2994
    %v2996 = vpop.f32.mrf.mxu0
    %2997 = vdwg.mxu0
    %v2998 = vadd.f32 %v2444, %v2982
    %v2999 = vadd.f32 %v2473, %v2995
    %v3000 = vxor.u32 %v2998, 2147483648
    %v3001 = vxor.u32 %v2999, 2147483648
    %v3002 = vmul.f32 %v3000, 1.442695
    %v3003 = vpow.pop %v3002
    %v3004 = vmul.f32 %v3001, 1.442695
    %v3005 = vpow.pop %v3004
    %v3006 = vadd.f32 %v3003, 1.0
    %v3007 = vadd.f32 %v3005, 1.0
    %v3008 = vrcp.pop %v3006
    %v3009 = vmul.f32 %v3006, %v3008
    %v3010 = vsub.f32 1.0, %v3009
    %v3011 = vmul.f32 %v3008, %v3010
    %v3012 = vadd.f32 %v3008, %v3011
    %vm3013 = vweird.f32 %v3006
    %vm3014 = vweird.f32 %v3008
    %vm3015 = vmor %vm3013, %vm3014
    %v3016 = vsel %vm3015, %v3008, %v3012
    %v3017 = vand.u32 2147483647, %v3006
    %vm3018 = vcmp.eq.f32.partialorder %v3017, 8.507059e+37
    %v3019 = vand.u32 %v3006, 2147483648
    %v3020 = vor.u32 1.1754944e-38, %v3019
    %v3021 = vsel %vm3018, %v3020, %v3016
    %v3022 = vmul.f32 1.0, %v3021
    %v3023 = vrcp.pop %v3007
    %v3024 = vmul.f32 %v3007, %v3023
    %v3025 = vsub.f32 1.0, %v3024
    %v3026 = vmul.f32 %v3023, %v3025
    %v3027 = vadd.f32 %v3023, %v3026
    %vm3028 = vweird.f32 %v3007
    %vm3029 = vweird.f32 %v3023
    %vm3030 = vmor %vm3028, %vm3029
    %v3031 = vsel %vm3030, %v3023, %v3027
    %v3032 = vand.u32 2147483647, %v3007
    %vm3033 = vcmp.eq.f32.partialorder %v3032, 8.507059e+37
    %v3034 = vand.u32 %v3007, 2147483648
    %v3035 = vor.u32 1.1754944e-38, %v3034
    %v3036 = vsel %vm3033, %v3035, %v3031
    %v3037 = vmul.f32 1.0, %v3036
    %v3038 = vtanh.pop %v2999
    %v3039 = vmul.f32 %v3022, %v2962
    %v3040 = vmul.f32 %v3022, %v3038
    %3042 = vrot.lane.b32.xlu0 %v3040, 64
    %v3043 = vpop.permute.xlu0 %3042
    %v3045 = vadd.f32 %v3039, %v3043
    %v3046 = vtanh.pop %v3045
    %v3047 = vmul.f32 %v3037, %v3046
    %v3048 = vpack.c.bf16 %v3047, %v3047
    %3050 = vrot.lane.b32.xlu0 %v3048, 64
    %v3051 = vpop.permute.xlu0 %3050
    %v3053 = vsel %vm635, %v3051, 0
    %3055 = vmatpush.bf16.msra.mxu0 0
    %3056 = vmatpush.bf16.msra.mxu0 0
    %3057 = vmatpush.bf16.msra.mxu0 0
    %3058 = vmatpush.bf16.msra.mxu0 0
    %3059 = vmatpush.bf16.msra.mxu0 %v2540
    %3060 = vmatpush.bf16.msra.mxu0 %v2538
    %3061 = vmatpush.bf16.msra.mxu0 %v2536
    %3062 = vmatpush.bf16.msra.mxu0 %v2534
    %3063 = vmatmul.bf16.gmra.mxu0 %v3053
    %v3064 = vpop.f32.mrf.mxu0
    %v3065 = vadd.f32 0.0, %v3064
    %v3066 = vpop.f32.mrf.mxu0
    %3067 = vdwg.mxu0
    %3068 = vmatpush.bf16.msra.mxu0 0
    %3069 = vmatpush.bf16.msra.mxu0 0
    %3070 = vmatpush.bf16.msra.mxu0 0
    %3071 = vmatpush.bf16.msra.mxu0 0
    %3072 = vmatpush.bf16.msra.mxu0 %v2541
    %3073 = vmatpush.bf16.msra.mxu0 %v2539
    %3074 = vmatpush.bf16.msra.mxu0 %v2537
    %3075 = vmatpush.bf16.msra.mxu0 %v2535
    %3076 = vmatmul.bf16.gmra.mxu0 %v3053
    %v3077 = vpop.f32.mrf.mxu0
    %v3078 = vadd.f32 0.0, %v3077
    %v3079 = vpop.f32.mrf.mxu0
    %3080 = vdwg.mxu0
    %v3081 = vadd.f32 %v2447, %v3065
    %v3082 = vadd.f32 %v2476, %v3078
    %v3083 = vxor.u32 %v3081, 2147483648
    %v3084 = vxor.u32 %v3082, 2147483648
    %v3085 = vmul.f32 %v3083, 1.442695
    %v3086 = vpow.pop %v3085
    %v3087 = vmul.f32 %v3084, 1.442695
    %v3088 = vpow.pop %v3087
    %v3089 = vadd.f32 %v3086, 1.0
    %v3090 = vadd.f32 %v3088, 1.0
    %v3091 = vrcp.pop %v3089
    %v3092 = vmul.f32 %v3089, %v3091
    %v3093 = vsub.f32 1.0, %v3092
    %v3094 = vmul.f32 %v3091, %v3093
    %v3095 = vadd.f32 %v3091, %v3094
    %vm3096 = vweird.f32 %v3089
    %vm3097 = vweird.f32 %v3091
    %vm3098 = vmor %vm3096, %vm3097
    %v3099 = vsel %vm3098, %v3091, %v3095
    %v3100 = vand.u32 2147483647, %v3089
    %vm3101 = vcmp.eq.f32.partialorder %v3100, 8.507059e+37
    %v3102 = vand.u32 %v3089, 2147483648
    %v3103 = vor.u32 1.1754944e-38, %v3102
    %v3104 = vsel %vm3101, %v3103, %v3099
    %v3105 = vmul.f32 1.0, %v3104
    %v3106 = vrcp.pop %v3090
    %v3107 = vmul.f32 %v3090, %v3106
    %v3108 = vsub.f32 1.0, %v3107
    %v3109 = vmul.f32 %v3106, %v3108
    %v3110 = vadd.f32 %v3106, %v3109
    %vm3111 = vweird.f32 %v3090
    %vm3112 = vweird.f32 %v3106
    %vm3113 = vmor %vm3111, %vm3112
    %v3114 = vsel %vm3113, %v3106, %v3110
    %v3115 = vand.u32 2147483647, %v3090
    %vm3116 = vcmp.eq.f32.partialorder %v3115, 8.507059e+37
    %v3117 = vand.u32 %v3090, 2147483648
    %v3118 = vor.u32 1.1754944e-38, %v3117
    %v3119 = vsel %vm3116, %v3118, %v3114
    %v3120 = vmul.f32 1.0, %v3119
    %v3121 = vtanh.pop %v3082
    %v3122 = vmul.f32 %v3105, %v3045
    %v3123 = vmul.f32 %v3105, %v3121
    %3125 = vrot.lane.b32.xlu0 %v3123, 64
    %v3126 = vpop.permute.xlu0 %3125
    %v3128 = vadd.f32 %v3122, %v3126
    %v3129 = vtanh.pop %v3128
    %v3130 = vmul.f32 %v3120, %v3129
    %v3131 = vpack.c.bf16 %v3130, %v3130
    %3133 = vrot.lane.b32.xlu0 %v3131, 64
    %v3134 = vpop.permute.xlu0 %3133
    %v3136 = vsel %vm635, %v3134, 0
    %3138 = vmatpush.bf16.msra.mxu0 0
    %3139 = vmatpush.bf16.msra.mxu0 0
    %3140 = vmatpush.bf16.msra.mxu0 0
    %3141 = vmatpush.bf16.msra.mxu0 0
    %3142 = vmatpush.bf16.msra.mxu0 %v2540
    %3143 = vmatpush.bf16.msra.mxu0 %v2538
    %3144 = vmatpush.bf16.msra.mxu0 %v2536
    %3145 = vmatpush.bf16.msra.mxu0 %v2534
    %3146 = vmatmul.bf16.gmra.mxu0 %v3136
    %v3147 = vpop.f32.mrf.mxu0
    %v3148 = vadd.f32 0.0, %v3147
    %v3149 = vpop.f32.mrf.mxu0
    %3150 = vdwg.mxu0
    %3151 = vmatpush.bf16.msra.mxu0 0
    %3152 = vmatpush.bf16.msra.mxu0 0
    %3153 = vmatpush.bf16.msra.mxu0 0
    %3154 = vmatpush.bf16.msra.mxu0 0
    %3155 = vmatpush.bf16.msra.mxu0 %v2541
    %3156 = vmatpush.bf16.msra.mxu0 %v2539
    %3157 = vmatpush.bf16.msra.mxu0 %v2537
    %3158 = vmatpush.bf16.msra.mxu0 %v2535
    %3159 = vmatmul.bf16.gmra.mxu0 %v3136
    %v3160 = vpop.f32.mrf.mxu0
    %v3161 = vadd.f32 0.0, %v3160
    %v3162 = vpop.f32.mrf.mxu0
    %3163 = vdwg.mxu0
    %v3164 = vadd.f32 %v2449, %v3148
    %v3165 = vadd.f32 %v2478, %v3161
    %v3166 = vxor.u32 %v3164, 2147483648
    %v3167 = vxor.u32 %v3165, 2147483648
    %v3168 = vmul.f32 %v3166, 1.442695
    %v3169 = vpow.pop %v3168
    %v3170 = vmul.f32 %v3167, 1.442695
    %v3171 = vpow.pop %v3170
    %v3172 = vadd.f32 %v3169, 1.0
    %v3173 = vadd.f32 %v3171, 1.0
    %v3174 = vrcp.pop %v3172
    %v3175 = vmul.f32 %v3172, %v3174
    %v3176 = vsub.f32 1.0, %v3175
    %v3177 = vmul.f32 %v3174, %v3176
    %v3178 = vadd.f32 %v3174, %v3177
    %vm3179 = vweird.f32 %v3172
    %vm3180 = vweird.f32 %v3174
    %vm3181 = vmor %vm3179, %vm3180
    %v3182 = vsel %vm3181, %v3174, %v3178
    %v3183 = vand.u32 2147483647, %v3172
    %vm3184 = vcmp.eq.f32.partialorder %v3183, 8.507059e+37
    %v3185 = vand.u32 %v3172, 2147483648
    %v3186 = vor.u32 1.1754944e-38, %v3185
    %v3187 = vsel %vm3184, %v3186, %v3182
    %v3188 = vmul.f32 1.0, %v3187
    %v3189 = vrcp.pop %v3173
    %v3190 = vmul.f32 %v3173, %v3189
    %v3191 = vsub.f32 1.0, %v3190
    %v3192 = vmul.f32 %v3189, %v3191
    %v3193 = vadd.f32 %v3189, %v3192
    %vm3194 = vweird.f32 %v3173
    %vm3195 = vweird.f32 %v3189
    %vm3196 = vmor %vm3194, %vm3195
    %v3197 = vsel %vm3196, %v3189, %v3193
    %v3198 = vand.u32 2147483647, %v3173
    %vm3199 = vcmp.eq.f32.partialorder %v3198, 8.507059e+37
    %v3200 = vand.u32 %v3173, 2147483648
    %v3201 = vor.u32 1.1754944e-38, %v3200
    %v3202 = vsel %vm3199, %v3201, %v3197
    %v3203 = vmul.f32 1.0, %v3202
    %v3204 = vtanh.pop %v3165
    %v3205 = vmul.f32 %v3188, %v3128
    %v3206 = vmul.f32 %v3188, %v3204
    %3208 = vrot.lane.b32.xlu0 %v3206, 64
    %v3209 = vpop.permute.xlu0 %3208
    %v3211 = vadd.f32 %v3205, %v3209
    %v3212 = vtanh.pop %v3211
    %v3213 = vmul.f32 %v3203, %v3212
    %3215 = vrot.lane.b32.xlu0 %v3213, 64
    %v3216 = vpop.permute.xlu0 %3215
    %s3218 = scalar_lea.vmem [#allocation12], 8
    %3219 = vst.msk [vmem:[%s3218] sm:$0x3] %vm1304, %v3216
    %3220 = vrot.lane.b32.xlu0 %v3213, 32
    %v3221 = vpop.permute.xlu0 %3220
    %s3223 = scalar_lea.vmem [#allocation12], 10
    %3224 = vst.msk [vmem:[%s3223] sm:$0x3] %vm1304, %v3221
    %3226 = vrot.lane.b32.xlu0 %v3211, 64
    %v3227 = vpop.permute.xlu0 %3226
    %s3229 = scalar_lea.vmem [#allocation14], 8
    %3230 = vst.msk [vmem:[%s3229] sm:$0x3] %vm1304, %v3227
    %3231 = vrot.lane.b32.xlu0 %v3211, 32
    %v3232 = vpop.permute.xlu0 %3231
    %s3234 = scalar_lea.vmem [#allocation14], 10
    %3235 = vst.msk [vmem:[%s3234] sm:$0x3] %vm1304, %v3232
    %3237 = vrot.lane.b32.xlu0 %v2632, 64
    %v3238 = vpop.permute.xlu0 %3237
    %v3240 = vsel %vm581, %v3216, %v3238
    %v3241 = vpack.c.bf16 %v3240, %v3240
    %v3242 = vld [vmem:[%s7] sm:$0xf]
    %v3243 = vld [vmem:[%s7 + $0x4] sm:$0xf]
    %v3244 = vld [vmem:[%s7 + $0x8] sm:$0xf]
    %v3245 = vld [vmem:[%s7 + $0xc] sm:$0xf]
    %v3246 = vld [vmem:[%s7 + $0x10] sm:$0xf]
    %v3247 = vld [vmem:[%s7 + $0x14] sm:$0xf]
    %v3248 = vld [vmem:[%s7 + $0x18] sm:$0xf]
    %v3249 = vld [vmem:[%s7 + $0x1c] sm:$0xf]
    %v3250 = vld [vmem:[%s8] sm:$0x1]
    %v3252 = vperm.slane %v3250, 0
    %v3262 = vunpack.c.l.b16 %v3242
    %v3263 = vunpack.c.l.b16 %v3243
    %v3264 = vunpack.c.l.b16 %v3244
    %v3265 = vunpack.c.l.b16 %v3245
    %v3266 = vunpack.c.l.b16 %v3246
    %v3267 = vunpack.c.l.b16 %v3247
    %v3268 = vunpack.c.l.b16 %v3248
    %v3269 = vunpack.c.l.b16 %v3249
    %v3270 = vpack.c.b16 %v3263, %v3262
    %v3271 = vpack.c.b16 %v3265, %v3264
    %v3272 = vpack.c.b16 %v3267, %v3266
    %v3273 = vpack.c.b16 %v3269, %v3268
    %v3279 = vsel %vm635, %v3241, 0
    %3281 = vmatpush.bf16.msra.mxu0 0
    %3282 = vmatpush.bf16.msra.mxu0 0
    %3283 = vmatpush.bf16.msra.mxu0 0
    %3284 = vmatpush.bf16.msra.mxu0 0
    %3285 = vmatpush.bf16.msra.mxu0 %v3273
    %3286 = vmatpush.bf16.msra.mxu0 %v3272
    %3287 = vmatpush.bf16.msra.mxu0 %v3271
    %3288 = vmatpush.bf16.msra.mxu0 %v3270
    %3289 = vmatmul.bf16.gmra.mxu0 %v3279
    %v3290 = vpop.f32.mrf.mxu0
    %v3291 = vadd.f32 %v3252, %v3290
    %v3292 = vpop.f32.mrf.mxu0
    %3293 = vdwg.mxu0
    %v3294 = vtanh.pop %v3291
    %vm3295 = vcmask 33792
    %3296 = vst.msk [vmem:[#allocation11] sm:$0x3] %vm3295, %v3294
    // Predicated region
    $region54: #{rnn_model_forward.1} parent=1 // pred_check
      _
    $region55: #{rnn_model_forward.1} parent=1 // pred_check_branch
      %3298 = sbr.rel (0) target = $region57
    $region56: #{rnn_model_forward.1} parent=1 // pred_region
      %3300 = vsyncadd [#allocation5], 0
      %s3302 = sshll.u32 [#allocation11], 4
      %s3303 = int_to_ptr.vmem [resolvable:$true] %s3302
      %s3304 = sshll.u32 %s9, 4
      %s3305 = int_to_ptr.hbm [resolvable:$true] %s3304
      %3307 = dma.vmem_to_hbm [thread:$0]  %s3303, 32, %s3305, [#allocation5]
    $region57: #{rnn_model_forward.1} parent=1 // pred_fallthru
      _
    // Predicated region
    $region58: #{rnn_model_forward.1} parent=1 // pred_check
      _
    $region59: #{rnn_model_forward.1} parent=1 // pred_check_branch
      %3309 = sbr.rel (0) target = $region61
    $region60: #{rnn_model_forward.1} parent=1 // pred_region
      %3311 = vsyncadd [#allocation13], 0
      %s3312 = sshll.u32 [#allocation12], 4
      %s3313 = int_to_ptr.vmem [resolvable:$true] %s3312
      %s3314 = sshll.u32 %s10, 4
      %s3315 = int_to_ptr.hbm [resolvable:$true] %s3314
      %3320 = dma.vmem_to_hbm [thread:$0]  %s3313, 192, %s3315, [#allocation13], 32, 32, 2
    $region61: #{rnn_model_forward.1} parent=1 // pred_fallthru
      _
    // Predicated region
    $region62: #{rnn_model_forward.1} parent=1 // pred_check
      _
    $region63: #{rnn_model_forward.1} parent=1 // pred_check_branch
      %3322 = sbr.rel (0) target = $region65
    $region64: #{rnn_model_forward.1} parent=1 // pred_region
      %3324 = vsyncadd [#allocation13], 0
      %s3325 = sshll.u32 [#allocation14], 4
      %s3326 = int_to_ptr.vmem [resolvable:$true] %s3325
      %s3327 = sshll.u32 %s11, 4
      %s3328 = int_to_ptr.hbm [resolvable:$true] %s3327
      %3333 = dma.vmem_to_hbm [thread:$0]  %s3326, 192, %s3328, [#allocation13], 32, 32, 2
    $region65: #{rnn_model_forward.1} parent=1 // pred_fallthru
      _
    // Predicated region
    $region66: #{rnn_model_forward.1} parent=1 // pred_check
      _
    $region67: #{rnn_model_forward.1} parent=1 // pred_check_branch
      %3335 = sbr.rel (0) target = $region69
    $region68: #{rnn_model_forward.1} parent=1 // pred_region
      %3337 = dma.done [#allocation5], 32
    $region69: #{rnn_model_forward.1} parent=1 // pred_fallthru
      _
    // Predicated region
    $region70: #{rnn_model_forward.1} parent=1 // pred_check
      _
    $region71: #{rnn_model_forward.1} parent=1 // pred_check_branch
      %3339 = sbr.rel (0) target = $region73
    $region72: #{rnn_model_forward.1} parent=1 // pred_region
      %3341 = dma.done [#allocation13], 192
    $region73: #{rnn_model_forward.1} parent=1 // pred_fallthru
      _
    // Predicated region
    $region74: #{rnn_model_forward.1} parent=1 // pred_check
      _
    $region75: #{rnn_model_forward.1} parent=1 // pred_check_branch
      %3343 = sbr.rel (0) target = $region77
    $region76: #{rnn_model_forward.1} parent=1 // pred_region
      %3345 = dma.done [#allocation13], 192
    $region77: #{rnn_model_forward.1} parent=1 // pred_fallthru
      _
    %3346 = vsyncpa [#allocation4], 1
    %3347 = vsyncpa [#allocation9], 1
    %3348 = vsyncpa [#allocation5], 1
    %3349 = vsyncpa [#allocation13], 1
    %3350 = vsyncpa [#allocation6], 1

</llo_original>
